<compile_context>
chip_gen: v5e
topology: v5e:2x2
jax: 0.10.0
libtpu: 0.0.40
codegen_flags: <defaults>
</compile_context>

<pallas_src>
import functools

import jax
import jax.numpy as jnp
from jax import lax
from jax.experimental import pallas as pl
from jax.experimental.pallas import tpu as pltpu


# ---------------------------------------------------------------------------
# device-aware constants & small helpers
# ---------------------------------------------------------------------------
def _default_vmem_limit():
    """Scoped-VMEM budget derived from the device (<=64 MiB; ~32 MiB on v7x)."""
    try:
        phys = int(pltpu.get_tpu_info().vmem_capacity_bytes)
    except Exception:
        return 48 * 1024 * 1024          # conservative fallback (fits v5e/v6e/v7x)
    return max(32 * 1024 * 1024, min(phys // 2, 64 * 1024 * 1024))


_VMEM_LIMIT = _default_vmem_limit()


def _round_up(n, m):
    return ((n + m - 1) // m) * m


def _pick_row_tile(rows, cap=512):
    """Largest row tile (multiple of 8, <= cap) dividing rows; prefer >=2 tiles."""
    divs = [d for d in range(8, min(rows, cap) + 1, 8) if rows % d == 0]
    if not divs:
        return rows
    multi = [d for d in divs if rows // d >= 2]
    return max(multi) if multi else max(divs)


def _pick_tk(mlp_dim):
    """MLP hidden-dim tile; bigger K slices when the VMEM budget allows."""
    prefs = (1024, 768, 512, 384, 256, 128) if _VMEM_LIMIT >= 48 * 1024 * 1024 \
        else (512, 384, 256, 128)
    for tk in prefs:
        if mlp_dim % tk == 0 and mlp_dim // tk >= 2:
            return tk
    return mlp_dim


def _pick_heads_per_block(H, Dh):
    """Smallest head group whose lane width hp*Dh is a multiple of 128."""
    for hp in range(1, H + 1):
        if H % hp == 0 and (hp * Dh) % 128 == 0:
            return hp
    return H


def _full_spec(shape):
    # full-array block for a grid=() call
    return pl.BlockSpec(shape, lambda s=shape: (0,) * len(s))


def _cparams(*sem):
    return pltpu.CompilerParams(dimension_semantics=sem,
                                vmem_limit_bytes=_VMEM_LIMIT)


def _layer_norm(x, gamma, beta, eps):
    mu = jnp.mean(x, axis=-1, keepdims=True)
    var = jnp.mean(jnp.square(x - mu), axis=-1, keepdims=True)
    return (x - mu) * jax.lax.rsqrt(var + eps) * gamma + beta


def _gelu(x):
    # exact (erf) GELU, matching torch.nn.GELU default
    return 0.5 * x * (1.0 + jax.lax.erf(x * jnp.float32(0.7071067811865476)))


# ---------------------------------------------------------------------------
# Pallas kernels
# ---------------------------------------------------------------------------
def patch_embed_kernel(p_ref, w_ref, b_ref, o_ref):
    # conv_proj (16x16 stride-16 conv) expressed as a row-tiled patch matmul
    o_ref[...] = (jnp.dot(p_ref[...], w_ref[...],
                          preferred_element_type=jnp.float32) + b_ref[...])


def ln_qkv_kernel(x_ref, g_ref, b_ref, w_ref, bias_ref, o_ref):
    # pre-LN + fused QKV projection, row-tiled over B*S_r tokens
    h = _layer_norm(x_ref[...], g_ref[...], b_ref[...], 1e-6)
    o_ref[...] = (jnp.dot(h.astype(jnp.bfloat16), w_ref[...],
                          preferred_element_type=jnp.float32)
                  + bias_ref[...]).astype(jnp.bfloat16)


def attn_core_kernel(q_ref, k_ref, v_ref, o_ref, *, S, S_r, hp, Dh):
    """One (batch, head-group) tile: hp heads, keys masked beyond position S."""
    q = q_ref[0]                                   # (S_r, hp*Dh) bf16
    k = k_ref[0]
    v = v_ref[0]
    scale = jnp.float32(1.0 / (Dh ** 0.5))
    if S_r > S:
        key_valid = lax.broadcasted_iota(jnp.int32, (1, S_r), 1) < S
    outs = []
    for hh in range(hp):                           # static unroll over head group
        sl = slice(hh * Dh, (hh + 1) * Dh)
        s = lax.dot_general(q[:, sl], k[:, sl],
                            (((1,), (1,)), ((), ())),
                            preferred_element_type=jnp.float32) * scale
        if S_r > S:
            s = jnp.where(key_valid, s, jnp.float32(-1e9))   # mask padded keys
        s = s - jnp.max(s, axis=-1, keepdims=True)
        p = jnp.exp(s)
        p = p * pl.reciprocal(jnp.sum(p, axis=-1, keepdims=True), approx=True)
        outs.append(jnp.dot(p.astype(jnp.bfloat16), v[:, sl],
                            preferred_element_type=jnp.float32))
    ctx = outs[0] if hp == 1 else jnp.concatenate(outs, axis=-1)
    o_ref[0] = ctx.astype(jnp.bfloat16)            # lane-dense (S_r, hp*Dh) store


def proj_mlp_kernel(x_ref, ctx_ref, wo_ref, bo_ref, ln2g_ref, ln2b_ref,
                    w1_ref, b1_ref, w2_ref, b2_ref, o_ref,
                    y_scr, h_scr, acc_scr):
    # grid = (row_tiles, mlp_k_tiles); k is the reduction ("arbitrary") axis.
    kk = pl.program_id(1)

    @pl.when(kk == 0)
    def _():
        # attention output projection (single full-width matmul) + residual 1
        attn = (jnp.dot(ctx_ref[...], wo_ref[...],
                        preferred_element_type=jnp.float32) + bo_ref[...])
        y = x_ref[...] + attn                        # dropout == identity
        y_scr[...] = y
        h_scr[...] = _layer_norm(y, ln2g_ref[...], ln2b_ref[...],
                                 1e-6).astype(jnp.bfloat16)
        acc_scr[...] = jnp.zeros_like(acc_scr)

    # MLP tile: fc1 slice -> GELU -> fc2 slice, accumulated in f32 VMEM
    m = _gelu(jnp.dot(h_scr[...], w1_ref[...],
                      preferred_element_type=jnp.float32) + b1_ref[...])
    acc_scr[...] += jnp.dot(m.astype(jnp.bfloat16), w2_ref[...],
                            preferred_element_type=jnp.float32)

    @pl.when(kk == pl.num_programs(1) - 1)
    def _():
        o_ref[...] = y_scr[...] + acc_scr[...] + b2_ref[...]   # residual 2


def head_kernel(x_ref, encg_ref, encb_ref, clsg_ref, clsb_ref,
                w1_ref, b1_ref, w2_ref, b2_ref, w3_ref, b3_ref, o_ref):
    """Encoder final LN (CLS token) + classifier: LN -> Lin -> GELU -> Lin -> GELU -> Lin."""
    x = _layer_norm(x_ref[...], encg_ref[...], encb_ref[...], 1e-6)   # encoder.ln
    x = _layer_norm(x, clsg_ref[...], clsb_ref[...], 1e-5)            # classifier LN
    h = _gelu(jnp.dot(x.astype(jnp.bfloat16), w1_ref[...],
                      preferred_element_type=jnp.float32) + b1_ref[...])
    h = _gelu(jnp.dot(h.astype(jnp.bfloat16), w2_ref[...],
                      preferred_element_type=jnp.float32) + b2_ref[...])
    o_ref[...] = jnp.dot(h.astype(jnp.bfloat16), w3_ref[...],
                         preferred_element_type=jnp.float32) + b3_ref[...]


# ---------------------------------------------------------------------------
# wrappers around pallas_call
# ---------------------------------------------------------------------------
def _patch_embed(patches, w_patch, b_patch):
    rows, cpp = patches.shape
    D = w_patch.shape[1]
    rows_pad = _round_up(rows, 8)
    if rows_pad != rows:
        patches = jnp.pad(patches, ((0, rows_pad - rows), (0, 0)))
    tm = _pick_row_tile(rows_pad)
    out = pl.pallas_call(
        patch_embed_kernel,
        out_shape=jax.ShapeDtypeStruct((rows_pad, D), jnp.float32),
        grid=(rows_pad // tm,),
        in_specs=[pl.BlockSpec((tm, cpp), lambda i: (i, 0)),
                  pl.BlockSpec((cpp, D), lambda i: (0, 0)),
                  pl.BlockSpec((1, D), lambda i: (0, 0))],
        out_specs=pl.BlockSpec((tm, D), lambda i: (i, 0)),
        compiler_params=_cparams("parallel"),
    )(patches, w_patch, b_patch)
    return out[:rows] if rows_pad != rows else out


def _ln_qkv(x2d, layer, tm):
    rows, D = x2d.shape
    D3 = layer['w_qkv'].shape[1]
    return pl.pallas_call(
        ln_qkv_kernel,
        out_shape=jax.ShapeDtypeStruct((rows, D3), jnp.bfloat16),
        grid=(rows // tm,),
        in_specs=[pl.BlockSpec((tm, D), lambda i: (i, 0)),
                  pl.BlockSpec((1, D), lambda i: (0, 0)),
                  pl.BlockSpec((1, D), lambda i: (0, 0)),
                  pl.BlockSpec((D, D3), lambda i: (0, 0)),
                  pl.BlockSpec((1, D3), lambda i: (0, 0))],
        out_specs=pl.BlockSpec((tm, D3), lambda i: (i, 0)),
        compiler_params=_cparams("parallel"),
    )(x2d, layer['ln1_g'], layer['ln1_b'], layer['w_qkv'], layer['b_qkv'])


def _attention(qkv3, *, S, S_r, H, Dh, hp):
    """Grid (B, head-groups); Q/K/V head-group slices read directly from qkv3."""
    B = qkv3.shape[0]
    D = H * Dh
    W = hp * Dh                   # 128-lane head-group width
    nhb = H // hp                 # number of head groups
    kernel = functools.partial(attn_core_kernel, S=S, S_r=S_r, hp=hp, Dh=Dh)

    def col_spec(off):
        # column block `off + g` inside the (B, S_r, 3D) fused QKV buffer
        return pl.BlockSpec((1, S_r, W), lambda b, g, off=off: (b, 0, off + g))

    return pl.pallas_call(
        kernel,
        out_shape=jax.ShapeDtypeStruct((B, S_r, D), jnp.bfloat16),
        grid=(B, nhb),
        in_specs=[col_spec(0), col_spec(nhb), col_spec(2 * nhb)],
        out_specs=pl.BlockSpec((1, S_r, W), lambda b, g: (b, 0, g)),
        compiler_params=_cparams("parallel", "parallel"),
    )(qkv3, qkv3, qkv3)


def _proj_mlp(x2d, ctx2d, layer, tm, tk):
    rows, D = x2d.shape
    mlp = layer['w_fc1'].shape[1]
    return pl.pallas_call(
        proj_mlp_kernel,
        out_shape=jax.ShapeDtypeStruct((rows, D), jnp.float32),
        grid=(rows // tm, mlp // tk),
        in_specs=[pl.BlockSpec((tm, D), lambda i, k: (i, 0)),    # residual x
                  pl.BlockSpec((tm, D), lambda i, k: (i, 0)),    # attention ctx
                  pl.BlockSpec((D, D), lambda i, k: (0, 0)),     # wo
                  pl.BlockSpec((1, D), lambda i, k: (0, 0)),     # bo
                  pl.BlockSpec((1, D), lambda i, k: (0, 0)),     # ln2 gamma
                  pl.BlockSpec((1, D), lambda i, k: (0, 0)),     # ln2 beta
                  pl.BlockSpec((D, tk), lambda i, k: (0, k)),    # w_fc1 K-slice
                  pl.BlockSpec((1, tk), lambda i, k: (0, k)),    # b_fc1 K-slice
                  pl.BlockSpec((tk, D), lambda i, k: (k, 0)),    # w_fc2 K-slice
                  pl.BlockSpec((1, D), lambda i, k: (0, 0))],    # b_fc2
        out_specs=pl.BlockSpec((tm, D), lambda i, k: (i, 0)),
        scratch_shapes=[pltpu.VMEM((tm, D), jnp.float32),        # y (post-attn)
                        pltpu.VMEM((tm, D), jnp.bfloat16),       # LN2(y)
                        pltpu.VMEM((tm, D), jnp.float32)],       # MLP accumulator
        compiler_params=_cparams("parallel", "arbitrary"),
    )(x2d, ctx2d, layer['w_out'], layer['b_out'],
      layer['ln2_g'], layer['ln2_b'],
      layer['w_fc1'], layer['b_fc1'], layer['w_fc2'], layer['b_fc2'])


def _classifier_head(cls_tok, p):
    args = (cls_tok, p['enc_ln_g'], p['enc_ln_b'], p['cls_ln_g'], p['cls_ln_b'],
            p['w1'], p['b1'], p['w2'], p['b2'], p['w3'], p['b3'])
    out_shape = (cls_tok.shape[0], p['w3'].shape[1])
    return pl.pallas_call(
        head_kernel,
        out_shape=jax.ShapeDtypeStruct(out_shape, jnp.float32),
        in_specs=[_full_spec(a.shape) for a in args],
        out_specs=_full_spec(out_shape),
        compiler_params=pltpu.CompilerParams(vmem_limit_bytes=_VMEM_LIMIT),
    )(*args)


# ---------------------------------------------------------------------------
# forward pass
# ---------------------------------------------------------------------------
def vit_forward(x_nchw, params):
    """Forward pass of TorchVisionViT (inference semantics)."""
    B, C, Himg, Wimg = x_nchw.shape
    P = params['patch']
    D = params['embed_dim']
    H = params['num_heads']
    Dh = D // H
    Hp, Wp = Himg // P, Wimg // P
    N = Hp * Wp
    S = N + 1
    S_r = _round_up(S, 8)                      # sublane-friendly; no 256 blow-up

    # --- conv_proj as row-tiled patch matmul (bf16 patches halve input DMA) ---
    patches = (x_nchw.reshape(B, C, Hp, P, Wp, P)
               .transpose(0, 2, 4, 1, 3, 5)
               .reshape(B * N, C * P * P)).astype(jnp.bfloat16)
    tokens = _patch_embed(patches, params['conv_w'], params['conv_b']).reshape(B, N, D)

    # --- class token + positional embedding; pad sequence only to multiple of 8 ---
    cls = jnp.broadcast_to(params['class_token'].astype(jnp.float32), (B, 1, D))
    x = jnp.concatenate([cls, tokens], axis=1) + params['pos_embedding']
    x = jnp.pad(x, ((0, 0), (0, S_r - S), (0, 0)))
    # TODO(synk): encoder/classifier dropout layers are identity (inference mode).

    rows = B * S_r
    tm = _pick_row_tile(rows)
    tk = _pick_tk(params['layers'][0]['w_fc1'].shape[1])
    hp = _pick_heads_per_block(H, Dh)
    assert (hp * Dh) % 128 == 0, "attention head-group width must be 128-lane aligned"
    x2d = x.reshape(rows, D)                   # residual stream (f32)

    # --- transformer encoder blocks (only free reshapes between kernels) ---
    for layer in params['layers']:
        qkv3 = _ln_qkv(x2d, layer, tm).reshape(B, S_r, 3 * D)      # (B,S_r,3D) bf16
        ctx3 = _attention(qkv3, S=S, S_r=S_r, H=H, Dh=Dh, hp=hp)   # (B,S_r,D) bf16
        x2d = _proj_mlp(x2d, ctx3.reshape(rows, D), layer, tm, tk)

    # --- encoder final LN + classification head (fused kernel, CLS token only) ---
    cls_tok = x2d.reshape(B, S_r, D)[:, 0, :]                      # (B, D)
    return _classifier_head(cls_tok, params)


# ---------------------------------------------------------------------------
# deterministic synthetic parameter init (weights stored bf16, pre-transposed)
# ---------------------------------------------------------------------------
def init_params(key, *, C, P, D, num_heads, num_layers, mlp_dim,
                h1, h2, num_classes, seq_len):
    keys = iter(jax.random.split(key, 8 + 8 * num_layers))

    def nrm(shape, std=0.02, dtype=jnp.bfloat16):
        return (jax.random.normal(next(keys), shape, jnp.float32) * std).astype(dtype)

    layers = []
    for _ in range(num_layers):
        layers.append(dict(
            ln1_g=jnp.ones((1, D), jnp.float32), ln1_b=jnp.zeros((1, D), jnp.float32),
            w_qkv=nrm((D, 3 * D)), b_qkv=jnp.zeros((1, 3 * D), jnp.float32),
            w_out=nrm((D, D)), b_out=jnp.zeros((1, D), jnp.float32),
            ln2_g=jnp.ones((1, D), jnp.float32), ln2_b=jnp.zeros((1, D), jnp.float32),
            w_fc1=nrm((D, mlp_dim)), b_fc1=jnp.zeros((1, mlp_dim), jnp.float32),
            w_fc2=nrm((mlp_dim, D)), b_fc2=jnp.zeros((1, D), jnp.float32),
        ))

    return dict(
        patch=P, embed_dim=D, num_heads=num_heads,
        # conv_proj weight pre-flattened/transposed: (C*P*P, D) == torch weight.reshape(D,-1).T
        conv_w=nrm((C * P * P, D)), conv_b=jnp.zeros((1, D), jnp.float32),
        class_token=jnp.zeros((1, 1, D), jnp.float32),
        pos_embedding=nrm((1, seq_len, D), dtype=jnp.float32),
        layers=layers,
        enc_ln_g=jnp.ones((1, D), jnp.float32), enc_ln_b=jnp.zeros((1, D), jnp.float32),
        cls_ln_g=jnp.ones((1, D), jnp.float32), cls_ln_b=jnp.zeros((1, D), jnp.float32),
        w1=nrm((D, h1)), b1=jnp.zeros((1, h1), jnp.float32),
        w2=nrm((h1, h2)), b2=jnp.zeros((1, h2), jnp.float32),
        w3=nrm((h2, num_classes)), b3=jnp.zeros((1, num_classes), jnp.float32),
    )


# ---------------------------------------------------------------------------
if __name__ == "__main__":
    # small config consistent with the ViT forward (real ViT-B/16: D=768, 12 layers,
    # 12 heads, 224x224, mlp=3072; shrunk here but structurally identical —
    # D chosen so the 128-lane head-group / lane-density constraints are exercised)
    B, C, IMG, P = 2, 3, 32, 16
    D, NUM_HEADS, NUM_LAYERS, MLP = 128, 2, 2, 512
    H1, H2, NUM_CLASSES = 512, 256, 1
    SEQ = (IMG // P) * (IMG // P) + 1               # patches + CLS token

    root = jax.random.PRNGKey(0)
    k_params, k_x = jax.random.split(root)
    params = init_params(k_params, C=C, P=P, D=D, num_heads=NUM_HEADS,
                         num_layers=NUM_LAYERS, mlp_dim=MLP,
                         h1=H1, h2=H2, num_classes=NUM_CLASSES, seq_len=SEQ)

    x = jax.random.normal(k_x, (B, C, IMG, IMG), jnp.float32)   # NCHW, like PyTorch

    fwd = jax.jit(lambda xx: vit_forward(xx, params))
    out = jax.block_until_ready(fwd(x))

    assert out.shape == (B, NUM_CLASSES), out.shape
    assert bool(jnp.all(jnp.isfinite(out)))
    print("KERNEL_OK")
</pallas_src>

<mosaic_0001>
module attributes {stable_mosaic.version = 11 : i64} {
  func.func @ln_qkv_kernel(%arg0: i32, %arg1: memref<8x128xf32, #tpu.memory_space<vmem>>, %arg2: memref<1x128xf32, #tpu.memory_space<vmem>>, %arg3: memref<1x128xf32, #tpu.memory_space<vmem>>, %arg4: memref<128x384xbf16, #tpu.memory_space<vmem>>, %arg5: memref<1x384xf32, #tpu.memory_space<vmem>>, %arg6: memref<8x384xbf16, #tpu.memory_space<vmem>>) attributes {dimension_semantics = [#tpu.dimension_semantics<parallel>], iteration_bounds = array<i64: 2>, scalar_prefetch = 0 : i64, scratch_operands = 0 : i64, tpu.core_type = #tpu.core_type<tc>, window_params = [{transform_indices = @transform_0, window_bounds = array<i64: 8, 128>}, {pipeline_mode = #tpu.pipeline_mode<synchronous>, transform_indices = @transform_1, window_bounds = array<i64: 1, 128>}, {pipeline_mode = #tpu.pipeline_mode<synchronous>, transform_indices = @transform_2, window_bounds = array<i64: 1, 128>}, {pipeline_mode = #tpu.pipeline_mode<synchronous>, transform_indices = @transform_3, window_bounds = array<i64: 128, 384>}, {pipeline_mode = #tpu.pipeline_mode<synchronous>, transform_indices = @transform_4, window_bounds = array<i64: 1, 384>}, {transform_indices = @transform_5, window_bounds = array<i64: 8, 384>}]} {
    %c0 = arith.constant 0 : index
    %c0_0 = arith.constant 0 : index
    %0 = vector.load %arg1[%c0, %c0_0] : memref<8x128xf32, #tpu.memory_space<vmem>>, vector<8x128xf32>
    %c0_1 = arith.constant 0 : index
    %c0_2 = arith.constant 0 : index
    %1 = vector.load %arg2[%c0_1, %c0_2] : memref<1x128xf32, #tpu.memory_space<vmem>>, vector<1x128xf32>
    %c0_3 = arith.constant 0 : index
    %c0_4 = arith.constant 0 : index
    %2 = vector.load %arg3[%c0_3, %c0_4] : memref<1x128xf32, #tpu.memory_space<vmem>>, vector<1x128xf32>
    %cst = arith.constant dense<0.000000e+00> : vector<8xf32>
    %3 = vector.multi_reduction <add>, %0, %cst [1] : vector<8x128xf32> to vector<8xf32>
    %4 = vector.shape_cast %3 : vector<8xf32> to vector<8x1xf32>
    %cst_5 = arith.constant 1.280000e+02 : f32
    %5 = vector.broadcast %cst_5 : f32 to vector<8x1xf32>
    %6 = arith.divf %4, %5 : vector<8x1xf32>
    %7 = vector.broadcast %6 : vector<8x1xf32> to vector<8x128xf32>
    %8 = arith.subf %0, %7 : vector<8x128xf32>
    %9 = arith.mulf %8, %8 : vector<8x128xf32>
    %cst_6 = arith.constant dense<0.000000e+00> : vector<8xf32>
    %10 = vector.multi_reduction <add>, %9, %cst_6 [1] : vector<8x128xf32> to vector<8xf32>
    %11 = vector.shape_cast %10 : vector<8xf32> to vector<8x1xf32>
    %cst_7 = arith.constant 1.280000e+02 : f32
    %12 = vector.broadcast %cst_7 : f32 to vector<8x1xf32>
    %13 = arith.divf %11, %12 : vector<8x1xf32>
    %14 = vector.broadcast %6 : vector<8x1xf32> to vector<8x128xf32>
    %15 = arith.subf %0, %14 : vector<8x128xf32>
    %cst_8 = arith.constant 9.99999997E-7 : f32
    %16 = vector.broadcast %cst_8 : f32 to vector<8x1xf32>
    %17 = arith.addf %13, %16 : vector<8x1xf32>
    %18 = math.rsqrt %17 : vector<8x1xf32>
    %19 = vector.broadcast %18 : vector<8x1xf32> to vector<8x128xf32>
    %20 = arith.mulf %15, %19 : vector<8x128xf32>
    %21 = vector.broadcast %1 : vector<1x128xf32> to vector<8x128xf32>
    %22 = arith.mulf %20, %21 : vector<8x128xf32>
    %23 = vector.broadcast %2 : vector<1x128xf32> to vector<8x128xf32>
    %24 = arith.addf %22, %23 : vector<8x128xf32>
    %25 = arith.truncf %24 : vector<8x128xf32> to vector<8x128xbf16>
    %c0_9 = arith.constant 0 : index
    %c0_10 = arith.constant 0 : index
    %26 = vector.load %arg4[%c0_9, %c0_10] : memref<128x384xbf16, #tpu.memory_space<vmem>>, vector<128x384xbf16>
    %cst_11 = arith.constant dense<0.000000e+00> : vector<8x384xf32>
    %27 = tpu.matmul %25, %26, %cst_11 {dimension_numbers = #tpu.dot_dimension_numbers<[1], [0], [0], [1], [0, 0, 1, 1], [], []>} : vector<8x128xbf16>, vector<128x384xbf16>, vector<8x384xf32> -> vector<8x384xf32>
    %c0_12 = arith.constant 0 : index
    %c0_13 = arith.constant 0 : index
    %28 = vector.load %arg5[%c0_12, %c0_13] : memref<1x384xf32, #tpu.memory_space<vmem>>, vector<1x384xf32>
    %29 = vector.broadcast %28 : vector<1x384xf32> to vector<8x384xf32>
    %30 = arith.addf %27, %29 : vector<8x384xf32>
    %31 = arith.truncf %30 : vector<8x384xf32> to vector<8x384xbf16>
    %c0_14 = arith.constant 0 : index
    %c0_15 = arith.constant 0 : index
    %32 = vector.load %arg6[%c0_14, %c0_15] : memref<8x384xbf16, #tpu.memory_space<vmem>>, vector<8x384xbf16>
    tpu.vector_store %arg6[%c0_14, %c0_15], %31 {strides = array<i32>} : memref<8x384xbf16, #tpu.memory_space<vmem>>, vector<8x384xbf16>,
    return
  }
  func.func @transform_0(%arg0: i32) -> (i32, i32) {
    %c0_i32 = arith.constant 0 : i32
    %c0_i32_0 = arith.constant 0 : i32
    return %arg0, %c0_i32 : i32, i32
  }
  func.func @transform_1(%arg0: i32) -> (i32, i32) {
    %c0_i32 = arith.constant 0 : i32
    %c0_i32_0 = arith.constant 0 : i32
    %c0_i32_1 = arith.constant 0 : i32
    return %c0_i32, %c0_i32_0 : i32, i32
  }
  func.func @transform_2(%arg0: i32) -> (i32, i32) {
    %c0_i32 = arith.constant 0 : i32
    %c0_i32_0 = arith.constant 0 : i32
    %c0_i32_1 = arith.constant 0 : i32
    return %c0_i32, %c0_i32_0 : i32, i32
  }
  func.func @transform_3(%arg0: i32) -> (i32, i32) {
    %c0_i32 = arith.constant 0 : i32
    %c0_i32_0 = arith.constant 0 : i32
    %c0_i32_1 = arith.constant 0 : i32
    return %c0_i32, %c0_i32_0 : i32, i32
  }
  func.func @transform_4(%arg0: i32) -> (i32, i32) {
    %c0_i32 = arith.constant 0 : i32
    %c0_i32_0 = arith.constant 0 : i32
    %c0_i32_1 = arith.constant 0 : i32
    return %c0_i32, %c0_i32_0 : i32, i32
  }
  func.func @transform_5(%arg0: i32) -> (i32, i32) {
    %c0_i32 = arith.constant 0 : i32
    %c0_i32_0 = arith.constant 0 : i32
    return %arg0, %c0_i32 : i32, i32
  }
}

module attributes {stable_mosaic.version = 11 : i64} {
  func.func @patch_embed_kernel(%arg0: i32, %arg1: memref<8x768xbf16, #tpu.memory_space<vmem>>, %arg2: memref<768x128xbf16, #tpu.memory_space<vmem>>, %arg3: memref<1x128xf32, #tpu.memory_space<vmem>>, %arg4: memref<8x128xf32, #tpu.memory_space<vmem>>) attributes {dimension_semantics = [#tpu.dimension_semantics<parallel>], iteration_bounds = array<i64: 1>, scalar_prefetch = 0 : i64, scratch_operands = 0 : i64, tpu.core_type = #tpu.core_type<tc>, window_params = [{transform_indices = @transform_0, window_bounds = array<i64: 8, 768>}, {pipeline_mode = #tpu.pipeline_mode<synchronous>, transform_indices = @transform_1, window_bounds = array<i64: 768, 128>}, {pipeline_mode = #tpu.pipeline_mode<synchronous>, transform_indices = @transform_2, window_bounds = array<i64: 1, 128>}, {transform_indices = @transform_3, window_bounds = array<i64: 8, 128>}]} {
    %c0 = arith.constant 0 : index
    %c0_0 = arith.constant 0 : index
    %0 = vector.load %arg1[%c0, %c0_0] : memref<8x768xbf16, #tpu.memory_space<vmem>>, vector<8x768xbf16>
    %c0_1 = arith.constant 0 : index
    %c0_2 = arith.constant 0 : index
    %1 = vector.load %arg2[%c0_1, %c0_2] : memref<768x128xbf16, #tpu.memory_space<vmem>>, vector<768x128xbf16>
    %cst = arith.constant dense<0.000000e+00> : vector<8x128xf32>
    %2 = tpu.matmul %0, %1, %cst {dimension_numbers = #tpu.dot_dimension_numbers<[1], [0], [0], [1], [0, 0, 1, 1], [], []>} : vector<8x768xbf16>, vector<768x128xbf16>, vector<8x128xf32> -> vector<8x128xf32>
    %c0_3 = arith.constant 0 : index
    %c0_4 = arith.constant 0 : index
    %3 = vector.load %arg3[%c0_3, %c0_4] : memref<1x128xf32, #tpu.memory_space<vmem>>, vector<1x128xf32>
    %4 = vector.broadcast %3 : vector<1x128xf32> to vector<8x128xf32>
    %5 = arith.addf %2, %4 : vector<8x128xf32>
    %c0_5 = arith.constant 0 : index
    %c0_6 = arith.constant 0 : index
    %6 = vector.load %arg4[%c0_5, %c0_6] : memref<8x128xf32, #tpu.memory_space<vmem>>, vector<8x128xf32>
    tpu.vector_store %arg4[%c0_5, %c0_6], %5 {strides = array<i32>} : memref<8x128xf32, #tpu.memory_space<vmem>>, vector<8x128xf32>,
    return
  }
  func.func @transform_0(%arg0: i32) -> (i32, i32) {
    %c0_i32 = arith.constant 0 : i32
    %c0_i32_0 = arith.constant 0 : i32
    return %arg0, %c0_i32 : i32, i32
  }
  func.func @transform_1(%arg0: i32) -> (i32, i32) {
    %c0_i32 = arith.constant 0 : i32
    %c0_i32_0 = arith.constant 0 : i32
    %c0_i32_1 = arith.constant 0 : i32
    return %c0_i32, %c0_i32_0 : i32, i32
  }
  func.func @transform_2(%arg0: i32) -> (i32, i32) {
    %c0_i32 = arith.constant 0 : i32
    %c0_i32_0 = arith.constant 0 : i32
    %c0_i32_1 = arith.constant 0 : i32
    return %c0_i32, %c0_i32_0 : i32, i32
  }
  func.func @transform_3(%arg0: i32) -> (i32, i32) {
    %c0_i32 = arith.constant 0 : i32
    %c0_i32_0 = arith.constant 0 : i32
    return %arg0, %c0_i32 : i32, i32
  }
}

module attributes {stable_mosaic.version = 11 : i64} {
  func.func @attn_core_kernel(%arg0: i32, %arg1: i32, %arg2: memref<1x8x128xbf16, #tpu.memory_space<vmem>>, %arg3: memref<1x8x128xbf16, #tpu.memory_space<vmem>>, %arg4: memref<1x8x128xbf16, #tpu.memory_space<vmem>>, %arg5: memref<1x8x128xbf16, #tpu.memory_space<vmem>>) attributes {dimension_semantics = [#tpu.dimension_semantics<parallel>, #tpu.dimension_semantics<parallel>], iteration_bounds = array<i64: 2, 1>, scalar_prefetch = 0 : i64, scratch_operands = 0 : i64, tpu.core_type = #tpu.core_type<tc>, window_params = [{transform_indices = @transform_0, window_bounds = array<i64: 1, 8, 128>}, {transform_indices = @transform_1, window_bounds = array<i64: 1, 8, 128>}, {transform_indices = @transform_2, window_bounds = array<i64: 1, 8, 128>}, {transform_indices = @transform_3, window_bounds = array<i64: 1, 8, 128>}]} {
    %c0 = arith.constant 0 : index
    %c0_0 = arith.constant 0 : index
    %c0_1 = arith.constant 0 : index
    %0 = vector.load %arg2[%c0, %c0_0, %c0_1] : memref<1x8x128xbf16, #tpu.memory_space<vmem>>, vector<1x8x128xbf16>
    %1 = vector.shape_cast %0 : vector<1x8x128xbf16> to vector<8x128xbf16>
    %c0_2 = arith.constant 0 : index
    %c0_3 = arith.constant 0 : index
    %c0_4 = arith.constant 0 : index
    %2 = vector.load %arg3[%c0_2, %c0_3, %c0_4] : memref<1x8x128xbf16, #tpu.memory_space<vmem>>, vector<1x8x128xbf16>
    %3 = vector.shape_cast %2 : vector<1x8x128xbf16> to vector<8x128xbf16>
    %c0_5 = arith.constant 0 : index
    %c0_6 = arith.constant 0 : index
    %c0_7 = arith.constant 0 : index
    %4 = vector.load %arg4[%c0_5, %c0_6, %c0_7] : memref<1x8x128xbf16, #tpu.memory_space<vmem>>, vector<1x8x128xbf16>
    %5 = vector.shape_cast %4 : vector<1x8x128xbf16> to vector<8x128xbf16>
    %6 = tpu.iota {dimensions = array<i32: 1>} : vector<1x8xi32>
    %c5_i32 = arith.constant 5 : i32
    %7 = vector.broadcast %c5_i32 : i32 to vector<1x8xi32>
    %8 = arith.cmpi slt, %6, %7 : vector<1x8xi32>
    %9 = vector.extract_strided_slice %1 {offsets = [0, 0], sizes = [8, 64], strides = [1, 1]} : vector<8x128xbf16> to vector<8x64xbf16>
    %10 = vector.extract_strided_slice %3 {offsets = [0, 0], sizes = [8, 64], strides = [1, 1]} : vector<8x128xbf16> to vector<8x64xbf16>
    %cst = arith.constant dense<0.000000e+00> : vector<8x8xf32>
    %11 = tpu.matmul %9, %10, %cst {dimension_numbers = #tpu.dot_dimension_numbers<[1], [1], [0], [0], [0, 0, 1, 0], [], []>} : vector<8x64xbf16>, vector<8x64xbf16>, vector<8x8xf32> -> vector<8x8xf32>
    %cst_8 = arith.constant 1.250000e-01 : f32
    %12 = vector.broadcast %cst_8 : f32 to vector<8x8xf32>
    %13 = arith.mulf %11, %12 : vector<8x8xf32>
    %cst_9 = arith.constant -1.000000e+09 : f32
    %14 = vector.shape_cast %8 : vector<1x8xi1> to vector<1x8xi1>
    %15 = vector.broadcast %14 : vector<1x8xi1> to vector<8x8xi1>
    %16 = vector.broadcast %cst_9 : f32 to vector<8x8xf32>
    %17 = arith.select %15, %13, %16 : vector<8x8xi1>, vector<8x8xf32>
    %cst_10 = arith.constant dense<0xFF800000> : vector<8xf32>
    %18 = vector.multi_reduction <maximumf>, %17, %cst_10 [1] : vector<8x8xf32> to vector<8xf32>
    %19 = vector.shape_cast %18 : vector<8xf32> to vector<8x1xf32>
    %20 = vector.broadcast %19 : vector<8x1xf32> to vector<8x8xf32>
    %21 = arith.subf %17, %20 : vector<8x8xf32>
    %22 = math.exp %21 : vector<8x8xf32>
    %cst_11 = arith.constant dense<0.000000e+00> : vector<8xf32>
    %23 = vector.multi_reduction <add>, %22, %cst_11 [1] : vector<8x8xf32> to vector<8xf32>
    %24 = vector.shape_cast %23 : vector<8xf32> to vector<8x1xf32>
    %25 = tpu.reciprocal %24 {approx = true} : vector<8x1xf32> -> vector<8x1xf32>
    %26 = vector.broadcast %25 : vector<8x1xf32> to vector<8x8xf32>
    %27 = arith.mulf %22, %26 : vector<8x8xf32>
    %28 = arith.truncf %27 : vector<8x8xf32> to vector<8x8xbf16>
    %29 = vector.extract_strided_slice %5 {offsets = [0, 0], sizes = [8, 64], strides = [1, 1]} : vector<8x128xbf16> to vector<8x64xbf16>
    %cst_12 = arith.constant dense<0.000000e+00> : vector<8x64xf32>
    %30 = tpu.matmul %28, %29, %cst_12 {dimension_numbers = #tpu.dot_dimension_numbers<[1], [0], [0], [1], [0, 0, 1, 1], [], []>} : vector<8x8xbf16>, vector<8x64xbf16>, vector<8x64xf32> -> vector<8x64xf32>
    %31 = vector.extract_strided_slice %1 {offsets = [0, 64], sizes = [8, 64], strides = [1, 1]} : vector<8x128xbf16> to vector<8x64xbf16>
    %32 = vector.extract_strided_slice %3 {offsets = [0, 64], sizes = [8, 64], strides = [1, 1]} : vector<8x128xbf16> to vector<8x64xbf16>
    %cst_13 = arith.constant dense<0.000000e+00> : vector<8x8xf32>
    %33 = tpu.matmul %31, %32, %cst_13 {dimension_numbers = #tpu.dot_dimension_numbers<[1], [1], [0], [0], [0, 0, 1, 0], [], []>} : vector<8x64xbf16>, vector<8x64xbf16>, vector<8x8xf32> -> vector<8x8xf32>
    %cst_14 = arith.constant 1.250000e-01 : f32
    %34 = vector.broadcast %cst_14 : f32 to vector<8x8xf32>
    %35 = arith.mulf %33, %34 : vector<8x8xf32>
    %cst_15 = arith.constant -1.000000e+09 : f32
    %36 = vector.shape_cast %8 : vector<1x8xi1> to vector<1x8xi1>
    %37 = vector.broadcast %36 : vector<1x8xi1> to vector<8x8xi1>
    %38 = vector.broadcast %cst_15 : f32 to vector<8x8xf32>
    %39 = arith.select %37, %35, %38 : vector<8x8xi1>, vector<8x8xf32>
    %cst_16 = arith.constant dense<0xFF800000> : vector<8xf32>
    %40 = vector.multi_reduction <maximumf>, %39, %cst_16 [1] : vector<8x8xf32> to vector<8xf32>
    %41 = vector.shape_cast %40 : vector<8xf32> to vector<8x1xf32>
    %42 = vector.broadcast %41 : vector<8x1xf32> to vector<8x8xf32>
    %43 = arith.subf %39, %42 : vector<8x8xf32>
    %44 = math.exp %43 : vector<8x8xf32>
    %cst_17 = arith.constant dense<0.000000e+00> : vector<8xf32>
    %45 = vector.multi_reduction <add>, %44, %cst_17 [1] : vector<8x8xf32> to vector<8xf32>
    %46 = vector.shape_cast %45 : vector<8xf32> to vector<8x1xf32>
    %47 = tpu.reciprocal %46 {approx = true} : vector<8x1xf32> -> vector<8x1xf32>
    %48 = vector.broadcast %47 : vector<8x1xf32> to vector<8x8xf32>
    %49 = arith.mulf %44, %48 : vector<8x8xf32>
    %50 = arith.truncf %49 : vector<8x8xf32> to vector<8x8xbf16>
    %51 = vector.extract_strided_slice %5 {offsets = [0, 64], sizes = [8, 64], strides = [1, 1]} : vector<8x128xbf16> to vector<8x64xbf16>
    %cst_18 = arith.constant dense<0.000000e+00> : vector<8x64xf32>
    %52 = tpu.matmul %50, %51, %cst_18 {dimension_numbers = #tpu.dot_dimension_numbers<[1], [0], [0], [1], [0, 0, 1, 1], [], []>} : vector<8x8xbf16>, vector<8x64xbf16>, vector<8x64xf32> -> vector<8x64xf32>
    %53 = tpu.concatenate %30, %52 in 1 : vector<8x64xf32>, vector<8x64xf32> -> vector<8x128xf32>
    %54 = arith.truncf %53 : vector<8x128xf32> to vector<8x128xbf16>
    %c0_19 = arith.constant 0 : index
    %c0_20 = arith.constant 0 : index
    %c0_21 = arith.constant 0 : index
    %55 = vector.load %arg5[%c0_19, %c0_20, %c0_21] : memref<1x8x128xbf16, #tpu.memory_space<vmem>>, vector<1x8x128xbf16>
    %56 = vector.shape_cast %55 : vector<1x8x128xbf16> to vector<8x128xbf16>
    %57 = vector.shape_cast %54 : vector<8x128xbf16> to vector<1x8x128xbf16>
    tpu.vector_store %arg5[%c0_19, %c0_20, %c0_21], %57 {strides = array<i32>} : memref<1x8x128xbf16, #tpu.memory_space<vmem>>, vector<1x8x128xbf16>,
    return
  }
  func.func @transform_0(%arg0: i32, %arg1: i32) -> (i32, i32, i32) {
    %c0_i32 = arith.constant 0 : i32
    %0 = arith.addi %c0_i32, %arg1 : i32
    %c0_i32_0 = arith.constant 0 : i32
    %c0_i32_1 = arith.constant 0 : i32
    return %arg0, %c0_i32_0, %0 : i32, i32, i32
  }
  func.func @transform_1(%arg0: i32, %arg1: i32) -> (i32, i32, i32) {
    %c1_i32 = arith.constant 1 : i32
    %0 = arith.addi %c1_i32, %arg1 : i32
    %c0_i32 = arith.constant 0 : i32
    %c0_i32_0 = arith.constant 0 : i32
    return %arg0, %c0_i32, %0 : i32, i32, i32
  }
  func.func @transform_2(%arg0: i32, %arg1: i32) -> (i32, i32, i32) {
    %c2_i32 = arith.constant 2 : i32
    %0 = arith.addi %c2_i32, %arg1 : i32
    %c0_i32 = arith.constant 0 : i32
    %c0_i32_0 = arith.constant 0 : i32
    return %arg0, %c0_i32, %0 : i32, i32, i32
  }
  func.func @transform_3(%arg0: i32, %arg1: i32) -> (i32, i32, i32) {
    %c0_i32 = arith.constant 0 : i32
    %c0_i32_0 = arith.constant 0 : i32
    return %arg0, %c0_i32, %arg1 : i32, i32, i32
  }
}

module attributes {stable_mosaic.version = 11 : i64} {
  func.func @proj_mlp_kernel(%arg0: i32, %arg1: i32, %arg2: memref<8x128xf32, #tpu.memory_space<vmem>>, %arg3: memref<8x128xbf16, #tpu.memory_space<vmem>>, %arg4: memref<128x128xbf16, #tpu.memory_space<vmem>>, %arg5: memref<1x128xf32, #tpu.memory_space<vmem>>, %arg6: memref<1x128xf32, #tpu.memory_space<vmem>>, %arg7: memref<1x128xf32, #tpu.memory_space<vmem>>, %arg8: memref<128x256xbf16, #tpu.memory_space<vmem>>, %arg9: memref<1x256xf32, #tpu.memory_space<vmem>>, %arg10: memref<256x128xbf16, #tpu.memory_space<vmem>>, %arg11: memref<1x128xf32, #tpu.memory_space<vmem>>, %arg12: memref<8x128xf32, #tpu.memory_space<vmem>>, %arg13: memref<8x128xf32, #tpu.memory_space<vmem>>, %arg14: memref<8x128xbf16, #tpu.memory_space<vmem>>, %arg15: memref<8x128xf32, #tpu.memory_space<vmem>>) attributes {dimension_semantics = [#tpu.dimension_semantics<parallel>, #tpu.dimension_semantics<arbitrary>], iteration_bounds = array<i64: 2, 2>, scalar_prefetch = 0 : i64, scratch_operands = 3 : i64, tpu.core_type = #tpu.core_type<tc>, window_params = [{transform_indices = @transform_0, window_bounds = array<i64: 8, 128>}, {transform_indices = @transform_1, window_bounds = array<i64: 8, 128>}, {pipeline_mode = #tpu.pipeline_mode<synchronous>, transform_indices = @transform_2, window_bounds = array<i64: 128, 128>}, {pipeline_mode = #tpu.pipeline_mode<synchronous>, transform_indices = @transform_3, window_bounds = array<i64: 1, 128>}, {pipeline_mode = #tpu.pipeline_mode<synchronous>, transform_indices = @transform_4, window_bounds = array<i64: 1, 128>}, {pipeline_mode = #tpu.pipeline_mode<synchronous>, transform_indices = @transform_5, window_bounds = array<i64: 1, 128>}, {transform_indices = @transform_6, window_bounds = array<i64: 128, 256>}, {transform_indices = @transform_7, window_bounds = array<i64: 1, 256>}, {transform_indices = @transform_8, window_bounds = array<i64: 256, 128>}, {pipeline_mode = #tpu.pipeline_mode<synchronous>, transform_indices = @transform_9, window_bounds = array<i64: 1, 128>}, {transform_indices = @transform_10, window_bounds = array<i64: 8, 128>}]} {
    %c0_i32 = arith.constant 0 : i32
    %0 = arith.cmpi eq, %arg1, %c0_i32 : i32
    %1 = arith.extui %0 : i1 to i32
    %c0_i32_0 = arith.constant 0 : i32
    %2 = arith.cmpi ne, %1, %c0_i32_0 : i32
    scf.if %2 {
      %c0_17 = arith.constant 0 : index
      %c0_18 = arith.constant 0 : index
      %26 = vector.load %arg3[%c0_17, %c0_18] : memref<8x128xbf16, #tpu.memory_space<vmem>>, vector<8x128xbf16>
      %c0_19 = arith.constant 0 : index
      %c0_20 = arith.constant 0 : index
      %27 = vector.load %arg4[%c0_19, %c0_20] : memref<128x128xbf16, #tpu.memory_space<vmem>>, vector<128x128xbf16>
      %cst_21 = arith.constant dense<0.000000e+00> : vector<8x128xf32>
      %28 = tpu.matmul %26, %27, %cst_21 {dimension_numbers = #tpu.dot_dimension_numbers<[1], [0], [0], [1], [0, 0, 1, 1], [], []>} : vector<8x128xbf16>, vector<128x128xbf16>, vector<8x128xf32> -> vector<8x128xf32>
      %c0_22 = arith.constant 0 : index
      %c0_23 = arith.constant 0 : index
      %29 = vector.load %arg5[%c0_22, %c0_23] : memref<1x128xf32, #tpu.memory_space<vmem>>, vector<1x128xf32>
      %30 = vector.broadcast %29 : vector<1x128xf32> to vector<8x128xf32>
      %31 = arith.addf %28, %30 : vector<8x128xf32>
      %c0_24 = arith.constant 0 : index
      %c0_25 = arith.constant 0 : index
      %32 = vector.load %arg2[%c0_24, %c0_25] : memref<8x128xf32, #tpu.memory_space<vmem>>, vector<8x128xf32>
      %33 = arith.addf %32, %31 : vector<8x128xf32>
      %c0_26 = arith.constant 0 : index
      %c0_27 = arith.constant 0 : index
      %34 = vector.load %arg13[%c0_26, %c0_27] : memref<8x128xf32, #tpu.memory_space<vmem>>, vector<8x128xf32>
      tpu.vector_store %arg13[%c0_26, %c0_27], %33 {strides = array<i32>} : memref<8x128xf32, #tpu.memory_space<vmem>>, vector<8x128xf32>,
      %c0_28 = arith.constant 0 : index
      %c0_29 = arith.constant 0 : index
      %35 = vector.load %arg6[%c0_28, %c0_29] : memref<1x128xf32, #tpu.memory_space<vmem>>, vector<1x128xf32>
      %c0_30 = arith.constant 0 : index
      %c0_31 = arith.constant 0 : index
      %36 = vector.load %arg7[%c0_30, %c0_31] : memref<1x128xf32, #tpu.memory_space<vmem>>, vector<1x128xf32>
      %cst_32 = arith.constant dense<0.000000e+00> : vector<8xf32>
      %37 = vector.multi_reduction <add>, %33, %cst_32 [1] : vector<8x128xf32> to vector<8xf32>
      %38 = vector.shape_cast %37 : vector<8xf32> to vector<8x1xf32>
      %cst_33 = arith.constant 1.280000e+02 : f32
      %39 = vector.broadcast %cst_33 : f32 to vector<8x1xf32>
      %40 = arith.divf %38, %39 : vector<8x1xf32>
      %41 = vector.broadcast %40 : vector<8x1xf32> to vector<8x128xf32>
      %42 = arith.subf %33, %41 : vector<8x128xf32>
      %43 = arith.mulf %42, %42 : vector<8x128xf32>
      %cst_34 = arith.constant dense<0.000000e+00> : vector<8xf32>
      %44 = vector.multi_reduction <add>, %43, %cst_34 [1] : vector<8x128xf32> to vector<8xf32>
      %45 = vector.shape_cast %44 : vector<8xf32> to vector<8x1xf32>
      %cst_35 = arith.constant 1.280000e+02 : f32
      %46 = vector.broadcast %cst_35 : f32 to vector<8x1xf32>
      %47 = arith.divf %45, %46 : vector<8x1xf32>
      %48 = vector.broadcast %40 : vector<8x1xf32> to vector<8x128xf32>
      %49 = arith.subf %33, %48 : vector<8x128xf32>
      %cst_36 = arith.constant 9.99999997E-7 : f32
      %50 = vector.broadcast %cst_36 : f32 to vector<8x1xf32>
      %51 = arith.addf %47, %50 : vector<8x1xf32>
      %52 = math.rsqrt %51 : vector<8x1xf32>
      %53 = vector.broadcast %52 : vector<8x1xf32> to vector<8x128xf32>
      %54 = arith.mulf %49, %53 : vector<8x128xf32>
      %55 = vector.broadcast %35 : vector<1x128xf32> to vector<8x128xf32>
      %56 = arith.mulf %54, %55 : vector<8x128xf32>
      %57 = vector.broadcast %36 : vector<1x128xf32> to vector<8x128xf32>
      %58 = arith.addf %56, %57 : vector<8x128xf32>
      %59 = arith.truncf %58 : vector<8x128xf32> to vector<8x128xbf16>
      %c0_37 = arith.constant 0 : index
      %c0_38 = arith.constant 0 : index
      %60 = vector.load %arg14[%c0_37, %c0_38] : memref<8x128xbf16, #tpu.memory_space<vmem>>, vector<8x128xbf16>
      tpu.vector_store %arg14[%c0_37, %c0_38], %59 {strides = array<i32>} : memref<8x128xbf16, #tpu.memory_space<vmem>>, vector<8x128xbf16>,
      %cst_39 = arith.constant 0.000000e+00 : f32
      %61 = vector.broadcast %cst_39 : f32 to vector<8x128xf32>
      %c0_40 = arith.constant 0 : index
      %c0_41 = arith.constant 0 : index
      %62 = vector.load %arg15[%c0_40, %c0_41] : memref<8x128xf32, #tpu.memory_space<vmem>>, vector<8x128xf32>
      tpu.vector_store %arg15[%c0_40, %c0_41], %61 {strides = array<i32>} : memref<8x128xf32, #tpu.memory_space<vmem>>, vector<8x128xf32>,
    } else {
    }
    %c0 = arith.constant 0 : index
    %c0_1 = arith.constant 0 : index
    %3 = vector.load %arg14[%c0, %c0_1] : memref<8x128xbf16, #tpu.memory_space<vmem>>, vector<8x128xbf16>
    %c0_2 = arith.constant 0 : index
    %c0_3 = arith.constant 0 : index
    %4 = vector.load %arg8[%c0_2, %c0_3] : memref<128x256xbf16, #tpu.memory_space<vmem>>, vector<128x256xbf16>
    %cst = arith.constant dense<0.000000e+00> : vector<8x256xf32>
    %5 = tpu.matmul %3, %4, %cst {dimension_numbers = #tpu.dot_dimension_numbers<[1], [0], [0], [1], [0, 0, 1, 1], [], []>} : vector<8x128xbf16>, vector<128x256xbf16>, vector<8x256xf32> -> vector<8x256xf32>
    %c0_4 = arith.constant 0 : index
    %c0_5 = arith.constant 0 : index
    %6 = vector.load %arg9[%c0_4, %c0_5] : memref<1x256xf32, #tpu.memory_space<vmem>>, vector<1x256xf32>
    %7 = vector.broadcast %6 : vector<1x256xf32> to vector<8x256xf32>
    %8 = arith.addf %5, %7 : vector<8x256xf32>
    %cst_6 = arith.constant 5.000000e-01 : f32
    %9 = vector.broadcast %cst_6 : f32 to vector<8x256xf32>
    %10 = arith.mulf %9, %8 : vector<8x256xf32>
    %cst_7 = arith.constant 0.707106769 : f32
    %11 = vector.broadcast %cst_7 : f32 to vector<8x256xf32>
    %12 = arith.mulf %8, %11 : vector<8x256xf32>
    %13 = math.erf %12 : vector<8x256xf32>
    %cst_8 = arith.constant 1.000000e+00 : f32
    %14 = vector.broadcast %cst_8 : f32 to vector<8x256xf32>
    %15 = arith.addf %14, %13 : vector<8x256xf32>
    %16 = arith.mulf %10, %15 : vector<8x256xf32>
    %c0_9 = arith.constant 0 : index
    %c0_10 = arith.constant 0 : index
    %17 = vector.load %arg15[%c0_9, %c0_10] : memref<8x128xf32, #tpu.memory_space<vmem>>, vector<8x128xf32>
    %18 = arith.truncf %16 : vector<8x256xf32> to vector<8x256xbf16>
    %c0_11 = arith.constant 0 : index
    %c0_12 = arith.constant 0 : index
    %19 = vector.load %arg10[%c0_11, %c0_12] : memref<256x128xbf16, #tpu.memory_space<vmem>>, vector<256x128xbf16>
    %cst_13 = arith.constant dense<0.000000e+00> : vector<8x128xf32>
    %20 = tpu.matmul %18, %19, %cst_13 {dimension_numbers = #tpu.dot_dimension_numbers<[1], [0], [0], [1], [0, 0, 1, 1], [], []>} : vector<8x256xbf16>, vector<256x128xbf16>, vector<8x128xf32> -> vector<8x128xf32>
    %21 = arith.addf %17, %20 : vector<8x128xf32>
    %c0_14 = arith.constant 0 : index
    %c0_15 = arith.constant 0 : index
    %22 = vector.load %arg15[%c0_14, %c0_15] : memref<8x128xf32, #tpu.memory_space<vmem>>, vector<8x128xf32>
    tpu.vector_store %arg15[%c0_14, %c0_15], %21 {strides = array<i32>} : memref<8x128xf32, #tpu.memory_space<vmem>>, vector<8x128xf32>,
    %c1_i32 = arith.constant 1 : i32
    %23 = arith.cmpi eq, %arg1, %c1_i32 : i32
    %24 = arith.extui %23 : i1 to i32
    %c0_i32_16 = arith.constant 0 : i32
    %25 = arith.cmpi ne, %24, %c0_i32_16 : i32
    scf.if %25 {
      %c0_17 = arith.constant 0 : index
      %c0_18 = arith.constant 0 : index
      %26 = vector.load %arg13[%c0_17, %c0_18] : memref<8x128xf32, #tpu.memory_space<vmem>>, vector<8x128xf32>
      %c0_19 = arith.constant 0 : index
      %c0_20 = arith.constant 0 : index
      %27 = vector.load %arg15[%c0_19, %c0_20] : memref<8x128xf32, #tpu.memory_space<vmem>>, vector<8x128xf32>
      %28 = arith.addf %26, %27 : vector<8x128xf32>
      %c0_21 = arith.constant 0 : index
      %c0_22 = arith.constant 0 : index
      %29 = vector.load %arg11[%c0_21, %c0_22] : memref<1x128xf32, #tpu.memory_space<vmem>>, vector<1x128xf32>
      %30 = vector.broadcast %29 : vector<1x128xf32> to vector<8x128xf32>
      %31 = arith.addf %28, %30 : vector<8x128xf32>
      %c0_23 = arith.constant 0 : index
      %c0_24 = arith.constant 0 : index
      %32 = vector.load %arg12[%c0_23, %c0_24] : memref<8x128xf32, #tpu.memory_space<vmem>>, vector<8x128xf32>
      tpu.vector_store %arg12[%c0_23, %c0_24], %31 {strides = array<i32>} : memref<8x128xf32, #tpu.memory_space<vmem>>, vector<8x128xf32>,
    } else {
    }
    return
  }
  func.func @transform_0(%arg0: i32, %arg1: i32) -> (i32, i32) {
    %c0_i32 = arith.constant 0 : i32
    %c0_i32_0 = arith.constant 0 : i32
    return %arg0, %c0_i32 : i32, i32
  }
  func.func @transform_1(%arg0: i32, %arg1: i32) -> (i32, i32) {
    %c0_i32 = arith.constant 0 : i32
    %c0_i32_0 = arith.constant 0 : i32
    return %arg0, %c0_i32 : i32, i32
  }
  func.func @transform_2(%arg0: i32, %arg1: i32) -> (i32, i32) {
    %c0_i32 = arith.constant 0 : i32
    %c0_i32_0 = arith.constant 0 : i32
    %c0_i32_1 = arith.constant 0 : i32
    return %c0_i32, %c0_i32_0 : i32, i32
  }
  func.func @transform_3(%arg0: i32, %arg1: i32) -> (i32, i32) {
    %c0_i32 = arith.constant 0 : i32
    %c0_i32_0 = arith.constant 0 : i32
    %c0_i32_1 = arith.constant 0 : i32
    return %c0_i32, %c0_i32_0 : i32, i32
  }
  func.func @transform_4(%arg0: i32, %arg1: i32) -> (i32, i32) {
    %c0_i32 = arith.constant 0 : i32
    %c0_i32_0 = arith.constant 0 : i32
    %c0_i32_1 = arith.constant 0 : i32
    return %c0_i32, %c0_i32_0 : i32, i32
  }
  func.func @transform_5(%arg0: i32, %arg1: i32) -> (i32, i32) {
    %c0_i32 = arith.constant 0 : i32
    %c0_i32_0 = arith.constant 0 : i32
    %c0_i32_1 = arith.constant 0 : i32
    return %c0_i32, %c0_i32_0 : i32, i32
  }
  func.func @transform_6(%arg0: i32, %arg1: i32) -> (i32, i32) {
    %c0_i32 = arith.constant 0 : i32
    %c0_i32_0 = arith.constant 0 : i32
    return %c0_i32, %arg1 : i32, i32
  }
  func.func @transform_7(%arg0: i32, %arg1: i32) -> (i32, i32) {
    %c0_i32 = arith.constant 0 : i32
    %c0_i32_0 = arith.constant 0 : i32
    return %c0_i32, %arg1 : i32, i32
  }
  func.func @transform_8(%arg0: i32, %arg1: i32) -> (i32, i32) {
    %c0_i32 = arith.constant 0 : i32
    %c0_i32_0 = arith.constant 0 : i32
    return %arg1, %c0_i32 : i32, i32
  }
  func.func @transform_9(%arg0: i32, %arg1: i32) -> (i32, i32) {
    %c0_i32 = arith.constant 0 : i32
    %c0_i32_0 = arith.constant 0 : i32
    %c0_i32_1 = arith.constant 0 : i32
    return %c0_i32, %c0_i32_0 : i32, i32
  }
  func.func @transform_10(%arg0: i32, %arg1: i32) -> (i32, i32) {
    %c0_i32 = arith.constant 0 : i32
    %c0_i32_0 = arith.constant 0 : i32
    return %arg0, %c0_i32 : i32, i32
  }
}

module attributes {stable_mosaic.version = 11 : i64} {
  func.func @proj_mlp_kernel(%arg0: i32, %arg1: i32, %arg2: memref<8x128xf32, #tpu.memory_space<vmem>>, %arg3: memref<8x128xbf16, #tpu.memory_space<vmem>>, %arg4: memref<128x128xbf16, #tpu.memory_space<vmem>>, %arg5: memref<1x128xf32, #tpu.memory_space<vmem>>, %arg6: memref<1x128xf32, #tpu.memory_space<vmem>>, %arg7: memref<1x128xf32, #tpu.memory_space<vmem>>, %arg8: memref<128x256xbf16, #tpu.memory_space<vmem>>, %arg9: memref<1x256xf32, #tpu.memory_space<vmem>>, %arg10: memref<256x128xbf16, #tpu.memory_space<vmem>>, %arg11: memref<1x128xf32, #tpu.memory_space<vmem>>, %arg12: memref<8x128xf32, #tpu.memory_space<vmem>>, %arg13: memref<8x128xf32, #tpu.memory_space<vmem>>, %arg14: memref<8x128xbf16, #tpu.memory_space<vmem>>, %arg15: memref<8x128xf32, #tpu.memory_space<vmem>>) attributes {dimension_semantics = [#tpu.dimension_semantics<parallel>, #tpu.dimension_semantics<arbitrary>], iteration_bounds = array<i64: 2, 2>, scalar_prefetch = 0 : i64, scratch_operands = 3 : i64, tpu.core_type = #tpu.core_type<tc>, window_params = [{transform_indices = @transform_0, window_bounds = array<i64: 8, 128>}, {transform_indices = @transform_1, window_bounds = array<i64: 8, 128>}, {pipeline_mode = #tpu.pipeline_mode<synchronous>, transform_indices = @transform_2, window_bounds = array<i64: 128, 128>}, {pipeline_mode = #tpu.pipeline_mode<synchronous>, transform_indices = @transform_3, window_bounds = array<i64: 1, 128>}, {pipeline_mode = #tpu.pipeline_mode<synchronous>, transform_indices = @transform_4, window_bounds = array<i64: 1, 128>}, {pipeline_mode = #tpu.pipeline_mode<synchronous>, transform_indices = @transform_5, window_bounds = array<i64: 1, 128>}, {transform_indices = @transform_6, window_bounds = array<i64: 128, 256>}, {transform_indices = @transform_7, window_bounds = array<i64: 1, 256>}, {transform_indices = @transform_8, window_bounds = array<i64: 256, 128>}, {pipeline_mode = #tpu.pipeline_mode<synchronous>, transform_indices = @transform_9, window_bounds = array<i64: 1, 128>}, {transform_indices = @transform_10, window_bounds = array<i64: 8, 128>}]} {
    %c0_i32 = arith.constant 0 : i32
    %0 = arith.cmpi eq, %arg1, %c0_i32 : i32
    %1 = arith.extui %0 : i1 to i32
    %c0_i32_0 = arith.constant 0 : i32
    %2 = arith.cmpi ne, %1, %c0_i32_0 : i32
    scf.if %2 {
      %c0_17 = arith.constant 0 : index
      %c0_18 = arith.constant 0 : index
      %26 = vector.load %arg3[%c0_17, %c0_18] : memref<8x128xbf16, #tpu.memory_space<vmem>>, vector<8x128xbf16>
      %c0_19 = arith.constant 0 : index
      %c0_20 = arith.constant 0 : index
      %27 = vector.load %arg4[%c0_19, %c0_20] : memref<128x128xbf16, #tpu.memory_space<vmem>>, vector<128x128xbf16>
      %cst_21 = arith.constant dense<0.000000e+00> : vector<8x128xf32>
      %28 = tpu.matmul %26, %27, %cst_21 {dimension_numbers = #tpu.dot_dimension_numbers<[1], [0], [0], [1], [0, 0, 1, 1], [], []>} : vector<8x128xbf16>, vector<128x128xbf16>, vector<8x128xf32> -> vector<8x128xf32>
      %c0_22 = arith.constant 0 : index
      %c0_23 = arith.constant 0 : index
      %29 = vector.load %arg5[%c0_22, %c0_23] : memref<1x128xf32, #tpu.memory_space<vmem>>, vector<1x128xf32>
      %30 = vector.broadcast %29 : vector<1x128xf32> to vector<8x128xf32>
      %31 = arith.addf %28, %30 : vector<8x128xf32>
      %c0_24 = arith.constant 0 : index
      %c0_25 = arith.constant 0 : index
      %32 = vector.load %arg2[%c0_24, %c0_25] : memref<8x128xf32, #tpu.memory_space<vmem>>, vector<8x128xf32>
      %33 = arith.addf %32, %31 : vector<8x128xf32>
      %c0_26 = arith.constant 0 : index
      %c0_27 = arith.constant 0 : index
      %34 = vector.load %arg13[%c0_26, %c0_27] : memref<8x128xf32, #tpu.memory_space<vmem>>, vector<8x128xf32>
      tpu.vector_store %arg13[%c0_26, %c0_27], %33 {strides = array<i32>} : memref<8x128xf32, #tpu.memory_space<vmem>>, vector<8x128xf32>,
      %c0_28 = arith.constant 0 : index
      %c0_29 = arith.constant 0 : index
      %35 = vector.load %arg6[%c0_28, %c0_29] : memref<1x128xf32, #tpu.memory_space<vmem>>, vector<1x128xf32>
      %c0_30 = arith.constant 0 : index
      %c0_31 = arith.constant 0 : index
      %36 = vector.load %arg7[%c0_30, %c0_31] : memref<1x128xf32, #tpu.memory_space<vmem>>, vector<1x128xf32>
      %cst_32 = arith.constant dense<0.000000e+00> : vector<8xf32>
      %37 = vector.multi_reduction <add>, %33, %cst_32 [1] : vector<8x128xf32> to vector<8xf32>
      %38 = vector.shape_cast %37 : vector<8xf32> to vector<8x1xf32>
      %cst_33 = arith.constant 1.280000e+02 : f32
      %39 = vector.broadcast %cst_33 : f32 to vector<8x1xf32>
      %40 = arith.divf %38, %39 : vector<8x1xf32>
      %41 = vector.broadcast %40 : vector<8x1xf32> to vector<8x128xf32>
      %42 = arith.subf %33, %41 : vector<8x128xf32>
      %43 = arith.mulf %42, %42 : vector<8x128xf32>
      %cst_34 = arith.constant dense<0.000000e+00> : vector<8xf32>
      %44 = vector.multi_reduction <add>, %43, %cst_34 [1] : vector<8x128xf32> to vector<8xf32>
      %45 = vector.shape_cast %44 : vector<8xf32> to vector<8x1xf32>
      %cst_35 = arith.constant 1.280000e+02 : f32
      %46 = vector.broadcast %cst_35 : f32 to vector<8x1xf32>
      %47 = arith.divf %45, %46 : vector<8x1xf32>
      %48 = vector.broadcast %40 : vector<8x1xf32> to vector<8x128xf32>
      %49 = arith.subf %33, %48 : vector<8x128xf32>
      %cst_36 = arith.constant 9.99999997E-7 : f32
      %50 = vector.broadcast %cst_36 : f32 to vector<8x1xf32>
      %51 = arith.addf %47, %50 : vector<8x1xf32>
      %52 = math.rsqrt %51 : vector<8x1xf32>
      %53 = vector.broadcast %52 : vector<8x1xf32> to vector<8x128xf32>
      %54 = arith.mulf %49, %53 : vector<8x128xf32>
      %55 = vector.broadcast %35 : vector<1x128xf32> to vector<8x128xf32>
      %56 = arith.mulf %54, %55 : vector<8x128xf32>
      %57 = vector.broadcast %36 : vector<1x128xf32> to vector<8x128xf32>
      %58 = arith.addf %56, %57 : vector<8x128xf32>
      %59 = arith.truncf %58 : vector<8x128xf32> to vector<8x128xbf16>
      %c0_37 = arith.constant 0 : index
      %c0_38 = arith.constant 0 : index
      %60 = vector.load %arg14[%c0_37, %c0_38] : memref<8x128xbf16, #tpu.memory_space<vmem>>, vector<8x128xbf16>
      tpu.vector_store %arg14[%c0_37, %c0_38], %59 {strides = array<i32>} : memref<8x128xbf16, #tpu.memory_space<vmem>>, vector<8x128xbf16>,
      %cst_39 = arith.constant 0.000000e+00 : f32
      %61 = vector.broadcast %cst_39 : f32 to vector<8x128xf32>
      %c0_40 = arith.constant 0 : index
      %c0_41 = arith.constant 0 : index
      %62 = vector.load %arg15[%c0_40, %c0_41] : memref<8x128xf32, #tpu.memory_space<vmem>>, vector<8x128xf32>
      tpu.vector_store %arg15[%c0_40, %c0_41], %61 {strides = array<i32>} : memref<8x128xf32, #tpu.memory_space<vmem>>, vector<8x128xf32>,
    } else {
    }
    %c0 = arith.constant 0 : index
    %c0_1 = arith.constant 0 : index
    %3 = vector.load %arg14[%c0, %c0_1] : memref<8x128xbf16, #tpu.memory_space<vmem>>, vector<8x128xbf16>
    %c0_2 = arith.constant 0 : index
    %c0_3 = arith.constant 0 : index
    %4 = vector.load %arg8[%c0_2, %c0_3] : memref<128x256xbf16, #tpu.memory_space<vmem>>, vector<128x256xbf16>
    %cst = arith.constant dense<0.000000e+00> : vector<8x256xf32>
    %5 = tpu.matmul %3, %4, %cst {dimension_numbers = #tpu.dot_dimension_numbers<[1], [0], [0], [1], [0, 0, 1, 1], [], []>} : vector<8x128xbf16>, vector<128x256xbf16>, vector<8x256xf32> -> vector<8x256xf32>
    %c0_4 = arith.constant 0 : index
    %c0_5 = arith.constant 0 : index
    %6 = vector.load %arg9[%c0_4, %c0_5] : memref<1x256xf32, #tpu.memory_space<vmem>>, vector<1x256xf32>
    %7 = vector.broadcast %6 : vector<1x256xf32> to vector<8x256xf32>
    %8 = arith.addf %5, %7 : vector<8x256xf32>
    %cst_6 = arith.constant 5.000000e-01 : f32
    %9 = vector.broadcast %cst_6 : f32 to vector<8x256xf32>
    %10 = arith.mulf %9, %8 : vector<8x256xf32>
    %cst_7 = arith.constant 0.707106769 : f32
    %11 = vector.broadcast %cst_7 : f32 to vector<8x256xf32>
    %12 = arith.mulf %8, %11 : vector<8x256xf32>
    %13 = math.erf %12 : vector<8x256xf32>
    %cst_8 = arith.constant 1.000000e+00 : f32
    %14 = vector.broadcast %cst_8 : f32 to vector<8x256xf32>
    %15 = arith.addf %14, %13 : vector<8x256xf32>
    %16 = arith.mulf %10, %15 : vector<8x256xf32>
    %c0_9 = arith.constant 0 : index
    %c0_10 = arith.constant 0 : index
    %17 = vector.load %arg15[%c0_9, %c0_10] : memref<8x128xf32, #tpu.memory_space<vmem>>, vector<8x128xf32>
    %18 = arith.truncf %16 : vector<8x256xf32> to vector<8x256xbf16>
    %c0_11 = arith.constant 0 : index
    %c0_12 = arith.constant 0 : index
    %19 = vector.load %arg10[%c0_11, %c0_12] : memref<256x128xbf16, #tpu.memory_space<vmem>>, vector<256x128xbf16>
    %cst_13 = arith.constant dense<0.000000e+00> : vector<8x128xf32>
    %20 = tpu.matmul %18, %19, %cst_13 {dimension_numbers = #tpu.dot_dimension_numbers<[1], [0], [0], [1], [0, 0, 1, 1], [], []>} : vector<8x256xbf16>, vector<256x128xbf16>, vector<8x128xf32> -> vector<8x128xf32>
    %21 = arith.addf %17, %20 : vector<8x128xf32>
    %c0_14 = arith.constant 0 : index
    %c0_15 = arith.constant 0 : index
    %22 = vector.load %arg15[%c0_14, %c0_15] : memref<8x128xf32, #tpu.memory_space<vmem>>, vector<8x128xf32>
    tpu.vector_store %arg15[%c0_14, %c0_15], %21 {strides = array<i32>} : memref<8x128xf32, #tpu.memory_space<vmem>>, vector<8x128xf32>,
    %c1_i32 = arith.constant 1 : i32
    %23 = arith.cmpi eq, %arg1, %c1_i32 : i32
    %24 = arith.extui %23 : i1 to i32
    %c0_i32_16 = arith.constant 0 : i32
    %25 = arith.cmpi ne, %24, %c0_i32_16 : i32
    scf.if %25 {
      %c0_17 = arith.constant 0 : index
      %c0_18 = arith.constant 0 : index
      %26 = vector.load %arg13[%c0_17, %c0_18] : memref<8x128xf32, #tpu.memory_space<vmem>>, vector<8x128xf32>
      %c0_19 = arith.constant 0 : index
      %c0_20 = arith.constant 0 : index
      %27 = vector.load %arg15[%c0_19, %c0_20] : memref<8x128xf32, #tpu.memory_space<vmem>>, vector<8x128xf32>
      %28 = arith.addf %26, %27 : vector<8x128xf32>
      %c0_21 = arith.constant 0 : index
      %c0_22 = arith.constant 0 : index
      %29 = vector.load %arg11[%c0_21, %c0_22] : memref<1x128xf32, #tpu.memory_space<vmem>>, vector<1x128xf32>
      %30 = vector.broadcast %29 : vector<1x128xf32> to vector<8x128xf32>
      %31 = arith.addf %28, %30 : vector<8x128xf32>
      %c0_23 = arith.constant 0 : index
      %c0_24 = arith.constant 0 : index
      %32 = vector.load %arg12[%c0_23, %c0_24] : memref<8x128xf32, #tpu.memory_space<vmem>>, vector<8x128xf32>
      tpu.vector_store %arg12[%c0_23, %c0_24], %31 {strides = array<i32>} : memref<8x128xf32, #tpu.memory_space<vmem>>, vector<8x128xf32>,
    } else {
    }
    return
  }
  func.func @transform_0(%arg0: i32, %arg1: i32) -> (i32, i32) {
    %c0_i32 = arith.constant 0 : i32
    %c0_i32_0 = arith.constant 0 : i32
    return %arg0, %c0_i32 : i32, i32
  }
  func.func @transform_1(%arg0: i32, %arg1: i32) -> (i32, i32) {
    %c0_i32 = arith.constant 0 : i32
    %c0_i32_0 = arith.constant 0 : i32
    return %arg0, %c0_i32 : i32, i32
  }
  func.func @transform_2(%arg0: i32, %arg1: i32) -> (i32, i32) {
    %c0_i32 = arith.constant 0 : i32
    %c0_i32_0 = arith.constant 0 : i32
    %c0_i32_1 = arith.constant 0 : i32
    return %c0_i32, %c0_i32_0 : i32, i32
  }
  func.func @transform_3(%arg0: i32, %arg1: i32) -> (i32, i32) {
    %c0_i32 = arith.constant 0 : i32
    %c0_i32_0 = arith.constant 0 : i32
    %c0_i32_1 = arith.constant 0 : i32
    return %c0_i32, %c0_i32_0 : i32, i32
  }
  func.func @transform_4(%arg0: i32, %arg1: i32) -> (i32, i32) {
    %c0_i32 = arith.constant 0 : i32
    %c0_i32_0 = arith.constant 0 : i32
    %c0_i32_1 = arith.constant 0 : i32
    return %c0_i32, %c0_i32_0 : i32, i32
  }
  func.func @transform_5(%arg0: i32, %arg1: i32) -> (i32, i32) {
    %c0_i32 = arith.constant 0 : i32
    %c0_i32_0 = arith.constant 0 : i32
    %c0_i32_1 = arith.constant 0 : i32
    return %c0_i32, %c0_i32_0 : i32, i32
  }
  func.func @transform_6(%arg0: i32, %arg1: i32) -> (i32, i32) {
    %c0_i32 = arith.constant 0 : i32
    %c0_i32_0 = arith.constant 0 : i32
    return %c0_i32, %arg1 : i32, i32
  }
  func.func @transform_7(%arg0: i32, %arg1: i32) -> (i32, i32) {
    %c0_i32 = arith.constant 0 : i32
    %c0_i32_0 = arith.constant 0 : i32
    return %c0_i32, %arg1 : i32, i32
  }
  func.func @transform_8(%arg0: i32, %arg1: i32) -> (i32, i32) {
    %c0_i32 = arith.constant 0 : i32
    %c0_i32_0 = arith.constant 0 : i32
    return %arg1, %c0_i32 : i32, i32
  }
  func.func @transform_9(%arg0: i32, %arg1: i32) -> (i32, i32) {
    %c0_i32 = arith.constant 0 : i32
    %c0_i32_0 = arith.constant 0 : i32
    %c0_i32_1 = arith.constant 0 : i32
    return %c0_i32, %c0_i32_0 : i32, i32
  }
  func.func @transform_10(%arg0: i32, %arg1: i32) -> (i32, i32) {
    %c0_i32 = arith.constant 0 : i32
    %c0_i32_0 = arith.constant 0 : i32
    return %arg0, %c0_i32 : i32, i32
  }
}

module attributes {stable_mosaic.version = 11 : i64} {
  func.func @head_kernel(%arg0: memref<2x128xf32, #tpu.memory_space<vmem>>, %arg1: memref<1x128xf32, #tpu.memory_space<vmem>>, %arg2: memref<1x128xf32, #tpu.memory_space<vmem>>, %arg3: memref<1x128xf32, #tpu.memory_space<vmem>>, %arg4: memref<1x128xf32, #tpu.memory_space<vmem>>, %arg5: memref<128x512xbf16, #tpu.memory_space<vmem>>, %arg6: memref<1x512xf32, #tpu.memory_space<vmem>>, %arg7: memref<512x256xbf16, #tpu.memory_space<vmem>>, %arg8: memref<1x256xf32, #tpu.memory_space<vmem>>, %arg9: memref<256x1xbf16, #tpu.memory_space<vmem>>, %arg10: memref<1x1xf32, #tpu.memory_space<vmem>>, %arg11: memref<2x1xf32, #tpu.memory_space<vmem>>) attributes {dimension_semantics = [], scalar_prefetch = 0 : i64, scratch_operands = 0 : i64, tpu.core_type = #tpu.core_type<tc>} {
    %c0 = arith.constant 0 : index
    %c0_0 = arith.constant 0 : index
    %0 = vector.load %arg0[%c0, %c0_0] : memref<2x128xf32, #tpu.memory_space<vmem>>, vector<2x128xf32>
    %c0_1 = arith.constant 0 : index
    %c0_2 = arith.constant 0 : index
    %1 = vector.load %arg1[%c0_1, %c0_2] : memref<1x128xf32, #tpu.memory_space<vmem>>, vector<1x128xf32>
    %c0_3 = arith.constant 0 : index
    %c0_4 = arith.constant 0 : index
    %2 = vector.load %arg2[%c0_3, %c0_4] : memref<1x128xf32, #tpu.memory_space<vmem>>, vector<1x128xf32>
    %cst = arith.constant dense<0.000000e+00> : vector<2xf32>
    %3 = vector.multi_reduction <add>, %0, %cst [1] : vector<2x128xf32> to vector<2xf32>
    %4 = vector.shape_cast %3 : vector<2xf32> to vector<2x1xf32>
    %cst_5 = arith.constant 1.280000e+02 : f32
    %5 = vector.broadcast %cst_5 : f32 to vector<2x1xf32>
    %6 = arith.divf %4, %5 : vector<2x1xf32>
    %7 = vector.broadcast %6 : vector<2x1xf32> to vector<2x128xf32>
    %8 = arith.subf %0, %7 : vector<2x128xf32>
    %9 = arith.mulf %8, %8 : vector<2x128xf32>
    %cst_6 = arith.constant dense<0.000000e+00> : vector<2xf32>
    %10 = vector.multi_reduction <add>, %9, %cst_6 [1] : vector<2x128xf32> to vector<2xf32>
    %11 = vector.shape_cast %10 : vector<2xf32> to vector<2x1xf32>
    %cst_7 = arith.constant 1.280000e+02 : f32
    %12 = vector.broadcast %cst_7 : f32 to vector<2x1xf32>
    %13 = arith.divf %11, %12 : vector<2x1xf32>
    %14 = vector.broadcast %6 : vector<2x1xf32> to vector<2x128xf32>
    %15 = arith.subf %0, %14 : vector<2x128xf32>
    %cst_8 = arith.constant 9.99999997E-7 : f32
    %16 = vector.broadcast %cst_8 : f32 to vector<2x1xf32>
    %17 = arith.addf %13, %16 : vector<2x1xf32>
    %18 = math.rsqrt %17 : vector<2x1xf32>
    %19 = vector.broadcast %18 : vector<2x1xf32> to vector<2x128xf32>
    %20 = arith.mulf %15, %19 : vector<2x128xf32>
    %21 = vector.broadcast %1 : vector<1x128xf32> to vector<2x128xf32>
    %22 = arith.mulf %20, %21 : vector<2x128xf32>
    %23 = vector.broadcast %2 : vector<1x128xf32> to vector<2x128xf32>
    %24 = arith.addf %22, %23 : vector<2x128xf32>
    %c0_9 = arith.constant 0 : index
    %c0_10 = arith.constant 0 : index
    %25 = vector.load %arg3[%c0_9, %c0_10] : memref<1x128xf32, #tpu.memory_space<vmem>>, vector<1x128xf32>
    %c0_11 = arith.constant 0 : index
    %c0_12 = arith.constant 0 : index
    %26 = vector.load %arg4[%c0_11, %c0_12] : memref<1x128xf32, #tpu.memory_space<vmem>>, vector<1x128xf32>
    %cst_13 = arith.constant dense<0.000000e+00> : vector<2xf32>
    %27 = vector.multi_reduction <add>, %24, %cst_13 [1] : vector<2x128xf32> to vector<2xf32>
    %28 = vector.shape_cast %27 : vector<2xf32> to vector<2x1xf32>
    %cst_14 = arith.constant 1.280000e+02 : f32
    %29 = vector.broadcast %cst_14 : f32 to vector<2x1xf32>
    %30 = arith.divf %28, %29 : vector<2x1xf32>
    %31 = vector.broadcast %30 : vector<2x1xf32> to vector<2x128xf32>
    %32 = arith.subf %24, %31 : vector<2x128xf32>
    %33 = arith.mulf %32, %32 : vector<2x128xf32>
    %cst_15 = arith.constant dense<0.000000e+00> : vector<2xf32>
    %34 = vector.multi_reduction <add>, %33, %cst_15 [1] : vector<2x128xf32> to vector<2xf32>
    %35 = vector.shape_cast %34 : vector<2xf32> to vector<2x1xf32>
    %cst_16 = arith.constant 1.280000e+02 : f32
    %36 = vector.broadcast %cst_16 : f32 to vector<2x1xf32>
    %37 = arith.divf %35, %36 : vector<2x1xf32>
    %38 = vector.broadcast %30 : vector<2x1xf32> to vector<2x128xf32>
    %39 = arith.subf %24, %38 : vector<2x128xf32>
    %cst_17 = arith.constant 9.99999974E-6 : f32
    %40 = vector.broadcast %cst_17 : f32 to vector<2x1xf32>
    %41 = arith.addf %37, %40 : vector<2x1xf32>
    %42 = math.rsqrt %41 : vector<2x1xf32>
    %43 = vector.broadcast %42 : vector<2x1xf32> to vector<2x128xf32>
    %44 = arith.mulf %39, %43 : vector<2x128xf32>
    %45 = vector.broadcast %25 : vector<1x128xf32> to vector<2x128xf32>
    %46 = arith.mulf %44, %45 : vector<2x128xf32>
    %47 = vector.broadcast %26 : vector<1x128xf32> to vector<2x128xf32>
    %48 = arith.addf %46, %47 : vector<2x128xf32>
    %49 = arith.truncf %48 : vector<2x128xf32> to vector<2x128xbf16>
    %c0_18 = arith.constant 0 : index
    %c0_19 = arith.constant 0 : index
    %50 = vector.load %arg5[%c0_18, %c0_19] : memref<128x512xbf16, #tpu.memory_space<vmem>>, vector<128x512xbf16>
    %cst_20 = arith.constant dense<0.000000e+00> : vector<2x512xf32>
    %51 = tpu.matmul %49, %50, %cst_20 {dimension_numbers = #tpu.dot_dimension_numbers<[1], [0], [0], [1], [0, 0, 1, 1], [], []>} : vector<2x128xbf16>, vector<128x512xbf16>, vector<2x512xf32> -> vector<2x512xf32>
    %c0_21 = arith.constant 0 : index
    %c0_22 = arith.constant 0 : index
    %52 = vector.load %arg6[%c0_21, %c0_22] : memref<1x512xf32, #tpu.memory_space<vmem>>, vector<1x512xf32>
    %53 = vector.broadcast %52 : vector<1x512xf32> to vector<2x512xf32>
    %54 = arith.addf %51, %53 : vector<2x512xf32>
    %cst_23 = arith.constant 5.000000e-01 : f32
    %55 = vector.broadcast %cst_23 : f32 to vector<2x512xf32>
    %56 = arith.mulf %55, %54 : vector<2x512xf32>
    %cst_24 = arith.constant 0.707106769 : f32
    %57 = vector.broadcast %cst_24 : f32 to vector<2x512xf32>
    %58 = arith.mulf %54, %57 : vector<2x512xf32>
    %59 = math.erf %58 : vector<2x512xf32>
    %cst_25 = arith.constant 1.000000e+00 : f32
    %60 = vector.broadcast %cst_25 : f32 to vector<2x512xf32>
    %61 = arith.addf %60, %59 : vector<2x512xf32>
    %62 = arith.mulf %56, %61 : vector<2x512xf32>
    %63 = arith.truncf %62 : vector<2x512xf32> to vector<2x512xbf16>
    %c0_26 = arith.constant 0 : index
    %c0_27 = arith.constant 0 : index
    %64 = vector.load %arg7[%c0_26, %c0_27] : memref<512x256xbf16, #tpu.memory_space<vmem>>, vector<512x256xbf16>
    %cst_28 = arith.constant dense<0.000000e+00> : vector<2x256xf32>
    %65 = tpu.matmul %63, %64, %cst_28 {dimension_numbers = #tpu.dot_dimension_numbers<[1], [0], [0], [1], [0, 0, 1, 1], [], []>} : vector<2x512xbf16>, vector<512x256xbf16>, vector<2x256xf32> -> vector<2x256xf32>
    %c0_29 = arith.constant 0 : index
    %c0_30 = arith.constant 0 : index
    %66 = vector.load %arg8[%c0_29, %c0_30] : memref<1x256xf32, #tpu.memory_space<vmem>>, vector<1x256xf32>
    %67 = vector.broadcast %66 : vector<1x256xf32> to vector<2x256xf32>
    %68 = arith.addf %65, %67 : vector<2x256xf32>
    %cst_31 = arith.constant 5.000000e-01 : f32
    %69 = vector.broadcast %cst_31 : f32 to vector<2x256xf32>
    %70 = arith.mulf %69, %68 : vector<2x256xf32>
    %cst_32 = arith.constant 0.707106769 : f32
    %71 = vector.broadcast %cst_32 : f32 to vector<2x256xf32>
    %72 = arith.mulf %68, %71 : vector<2x256xf32>
    %73 = math.erf %72 : vector<2x256xf32>
    %cst_33 = arith.constant 1.000000e+00 : f32
    %74 = vector.broadcast %cst_33 : f32 to vector<2x256xf32>
    %75 = arith.addf %74, %73 : vector<2x256xf32>
    %76 = arith.mulf %70, %75 : vector<2x256xf32>
    %77 = arith.truncf %76 : vector<2x256xf32> to vector<2x256xbf16>
    %c0_34 = arith.constant 0 : index
    %c0_35 = arith.constant 0 : index
    %78 = vector.load %arg9[%c0_34, %c0_35] : memref<256x1xbf16, #tpu.memory_space<vmem>>, vector<256x1xbf16>
    %cst_36 = arith.constant dense<0.000000e+00> : vector<2x1xf32>
    %79 = tpu.matmul %77, %78, %cst_36 {dimension_numbers = #tpu.dot_dimension_numbers<[1], [0], [0], [1], [0, 0, 1, 1], [], []>} : vector<2x256xbf16>, vector<256x1xbf16>, vector<2x1xf32> -> vector<2x1xf32>
    %c0_37 = arith.constant 0 : index
    %c0_38 = arith.constant 0 : index
    %80 = vector.load %arg10[%c0_37, %c0_38] : memref<1x1xf32, #tpu.memory_space<vmem>>, vector<1x1xf32>
    %81 = vector.broadcast %80 : vector<1x1xf32> to vector<2x1xf32>
    %82 = arith.addf %79, %81 : vector<2x1xf32>
    %c0_39 = arith.constant 0 : index
    %c0_40 = arith.constant 0 : index
    %83 = vector.load %arg11[%c0_39, %c0_40] : memref<2x1xf32, #tpu.memory_space<vmem>>, vector<2x1xf32>
    tpu.vector_store %arg11[%c0_39, %c0_40], %82 {strides = array<i32>} : memref<2x1xf32, #tpu.memory_space<vmem>>, vector<2x1xf32>,
    return
  }
}

</mosaic_0001>

<llo_original>
// kernel: _lambda_.10
$region0: #{_lambda_.10}
  #allocation0 [shape = 'u32[]', space=smem, size = 0x4, offset = 0x4, fixed_abs, tag = 'smem constant byte address 0x4 - core index']
  #allocation1 [shape = 'u32[72,128]{1,0:T(1,128)}', space=vmem, size = 0x9000, scoped, tag = 'internal scratch']
  %s0 = inlined_call_operand.vmem [shape: bf16[2,8,384], index: 0, kind: input, shape index: {}, may-alias: {0,1,2}]
  %s1 = inlined_call_operand.vmem [shape: bf16[2,8,384], index: 1, kind: input, shape index: {}, may-alias: {0,1,2}]
  %s2 = inlined_call_operand.vmem [shape: bf16[2,8,384], index: 2, kind: input, shape index: {}, may-alias: {0,1,2}]
  %s3 = inlined_call_operand.vmem [shape: bf16[2,8,128], index: 3, kind: output, shape index: {}]
  %s4 = sld [smem:[#allocation0]]
  $region45: #{_lambda_.10} parent=0
    _
  %s6 = ssub.s32 1, %s4
  %s7 = scalar_select 0, %s6, %s4
  loop: start=0, step=1, limit=4
  $region2: #{_lambda_.10} parent=0 // loop_pre_header
    _
  $region3: #{_lambda_.10} parent=0 // loop_header
    %s9 = sphi 0, %s13
    %p10 = scmp.ge.s32.totalorder %s9, 4
    %s16 = sphi 0, %s28
    %s17 = sphi 0, %s24
    %s18 = sphi 0, %s16
    %s19 = sphi 0, %s17
    %s20 = sphi 0, %s18
    %s21 = sphi 0, %s19
    %s33 = sphi 0, %s35
    %s36 = sphi 0, %s33
    %s37 = sphi 0, %s36
    %s53 = sphi 0, %s37
    %s63 = sphi 0, %s65
    %s66 = sphi 0, %s63
    %s67 = sphi 0, %s66
    %s83 = sphi 0, %s67
    %s93 = sphi 0, %s95
    %s96 = sphi 0, %s93
    %s97 = sphi 0, %s96
    %s113 = sphi 0, %s97
    %s121 = sphi 0, %s123
    %s124 = sphi 0, %s121
    %s125 = sphi 0, %s124
    %s141 = sphi 0, %s125
  $region4: #{_lambda_.10} parent=0 // loop_header_branch
    %12 = sbr.rel (%p10) target = $region8
  $region5: #{_lambda_.10} parent=0 // loop_body
    %s14 = ssub.s32 %s9, 1
    %s15 = ssub.s32 %s9, 2
    %s22 = sadd.s32 1, %s17
    %p23 = scmp.ge.s32.totalorder %s22, 1
    %s24 = scalar_select %p23, 0, %s22
    %s25 = sadd.s32 1, %s16
    %s26 = scalar_select %p23, %s25, %s16
    %p27 = scmp.ge.s32.totalorder %s26, 2
    %s28 = scalar_select %p27, 0, %s26
    %s29 = ssub.s32 %s16, %s28
    %s30 = ssub.s32 %s17, %s24
    %s31 = sor.u32 %s29, %s30
    %p32 = scmp.eq.s32.totalorder %s31, 0
    %s34 = sadd.s32 %s33, 1
    %s35 = scalar_select %p32, %s33, %s34
    %p38 = pneg %p32
    %p39 = scmp.eq.s32.totalorder %s9, 1
    %p40 = por %p38, %p39
    %p41 = scmp.ne.s32.totalorder %s33, %s36
    %p42 = scmp.eq.s32.totalorder %s9, 0
    %p43 = por %p41, %p42
    %p44 = scmp.ne.s32.totalorder %s33, %s36
    %p45 = scmp.eq.s32.totalorder %s14, 1
    %p46 = por %p44, %p45
    %p47 = scmp.ne.s32.totalorder %s36, %s37
    %p48 = scmp.eq.s32.totalorder %s14, 0
    %p49 = por %p47, %p48
    %p50 = scmp.ne.s32.totalorder %s36, %s37
    %p51 = scmp.eq.s32.totalorder %s15, 1
    %p52 = por %p50, %p51
    %p54 = scmp.ne.s32.totalorder %s37, %s53
    %p55 = scmp.eq.s32.totalorder %s15, 0
    %p56 = por %p54, %p55
    %s57 = sadd.s32 %s17, 1
    %s58 = sadd.s32 %s24, 1
    %s59 = ssub.s32 %s16, %s28
    %s60 = ssub.s32 %s57, %s58
    %s61 = sor.u32 %s59, %s60
    %p62 = scmp.eq.s32.totalorder %s61, 0
    %s64 = sadd.s32 %s63, 1
    %s65 = scalar_select %p62, %s63, %s64
    %p68 = pneg %p62
    %p69 = scmp.eq.s32.totalorder %s9, 1
    %p70 = por %p68, %p69
    %p71 = scmp.ne.s32.totalorder %s63, %s66
    %p72 = scmp.eq.s32.totalorder %s9, 0
    %p73 = por %p71, %p72
    %p74 = scmp.ne.s32.totalorder %s63, %s66
    %p75 = scmp.eq.s32.totalorder %s14, 1
    %p76 = por %p74, %p75
    %p77 = scmp.ne.s32.totalorder %s66, %s67
    %p78 = scmp.eq.s32.totalorder %s14, 0
    %p79 = por %p77, %p78
    %p80 = scmp.ne.s32.totalorder %s66, %s67
    %p81 = scmp.eq.s32.totalorder %s15, 1
    %p82 = por %p80, %p81
    %p84 = scmp.ne.s32.totalorder %s67, %s83
    %p85 = scmp.eq.s32.totalorder %s15, 0
    %p86 = por %p84, %p85
    %s87 = sadd.s32 %s17, 2
    %s88 = sadd.s32 %s24, 2
    %s89 = ssub.s32 %s16, %s28
    %s90 = ssub.s32 %s87, %s88
    %s91 = sor.u32 %s89, %s90
    %p92 = scmp.eq.s32.totalorder %s91, 0
    %s94 = sadd.s32 %s93, 1
    %s95 = scalar_select %p92, %s93, %s94
    %p98 = pneg %p92
    %p99 = scmp.eq.s32.totalorder %s9, 1
    %p100 = por %p98, %p99
    %p101 = scmp.ne.s32.totalorder %s93, %s96
    %p102 = scmp.eq.s32.totalorder %s9, 0
    %p103 = por %p101, %p102
    %p104 = scmp.ne.s32.totalorder %s93, %s96
    %p105 = scmp.eq.s32.totalorder %s14, 1
    %p106 = por %p104, %p105
    %p107 = scmp.ne.s32.totalorder %s96, %s97
    %p108 = scmp.eq.s32.totalorder %s14, 0
    %p109 = por %p107, %p108
    %p110 = scmp.ne.s32.totalorder %s96, %s97
    %p111 = scmp.eq.s32.totalorder %s15, 1
    %p112 = por %p110, %p111
    %p114 = scmp.ne.s32.totalorder %s97, %s113
    %p115 = scmp.eq.s32.totalorder %s15, 0
    %p116 = por %p114, %p115
    %s117 = ssub.s32 %s16, %s28
    %s118 = ssub.s32 %s17, %s24
    %s119 = sor.u32 %s117, %s118
    %p120 = scmp.eq.s32.totalorder %s119, 0
    %s122 = sadd.s32 %s121, 1
    %s123 = scalar_select %p120, %s121, %s122
    %p126 = pneg %p120
    %p127 = scmp.eq.s32.totalorder %s9, 1
    %p128 = por %p126, %p127
    %p129 = scmp.ne.s32.totalorder %s121, %s124
    %p130 = scmp.eq.s32.totalorder %s9, 0
    %p131 = por %p129, %p130
    %p132 = scmp.ne.s32.totalorder %s121, %s124
    %p133 = scmp.eq.s32.totalorder %s14, 1
    %p134 = por %p132, %p133
    %p135 = scmp.ne.s32.totalorder %s124, %s125
    %p136 = scmp.eq.s32.totalorder %s14, 0
    %p137 = por %p135, %p136
    %p138 = scmp.ne.s32.totalorder %s124, %s125
    %p139 = scmp.eq.s32.totalorder %s15, 1
    %p140 = por %p138, %p139
    %p142 = scmp.ne.s32.totalorder %s125, %s141
    %p143 = scmp.eq.s32.totalorder %s15, 0
    %p144 = por %p142, %p143
    %p145 = scmp.le.s32.totalorder 1, %s9
    %p146 = scmp.lt.s32.totalorder %s9, 3
    %p147 = pnand %p145, %p146
    %p148 = pneg %p147
    // Predicated region
    $region9: #{_lambda_.10} parent=5 // pred_check
      _
    $region10: #{_lambda_.10} parent=5 // pred_check_branch
      %150 = sbr.rel (%p147) target = $region12
    $region11: #{_lambda_.10} parent=5 // pred_region
      %s151 = ssub.s32 %s9, 1
    $region12: #{_lambda_.10} parent=5 // pred_fallthru
      _
    %p152 = scmp.lt.s32.totalorder %s9, 2
    // Predicated region
    $region13: #{_lambda_.10} parent=5 // pred_check
      %p153 = pneg %p152
    $region14: #{_lambda_.10} parent=5 // pred_check_branch
      %155 = sbr.rel (%p153) target = $region16
    $region15: #{_lambda_.10} parent=5 // pred_region
      // Predicated region
      $region17: #{_lambda_.10} parent=15 // pred_check
        %p156 = pneg %p43
      $region18: #{_lambda_.10} parent=15 // pred_check_branch
        %158 = sbr.rel (%p156) target = $region20
      $region19: #{_lambda_.10} parent=15 // pred_region
        %p159 = scmp.lt.s32.totalorder %s16, 1
        %s160 = scalar_select %p159, %s16, 1
        %p161 = scmp.lt.s32.totalorder %s17, 2
        %s162 = scalar_select %p161, %s17, 2
        %s163 = smul.addr %s160, 3
        %s164 = sadd.s32 %s162, %s163
        %s165 = smul.addr %s164, 4
        %s166 = scalar_lea.vmem %s0, %s165
      $region20: #{_lambda_.10} parent=15 // pred_fallthru
        _
      // Predicated region
      $region21: #{_lambda_.10} parent=15 // pred_check
        %p167 = pneg %p73
      $region22: #{_lambda_.10} parent=15 // pred_check_branch
        %169 = sbr.rel (%p167) target = $region24
      $region23: #{_lambda_.10} parent=15 // pred_region
        %s170 = sadd.s32 %s17, 1
        %p171 = scmp.lt.s32.totalorder %s16, 1
        %s172 = scalar_select %p171, %s16, 1
        %p173 = scmp.lt.s32.totalorder %s170, 2
        %s174 = scalar_select %p173, %s170, 2
        %s175 = smul.addr %s172, 3
        %s176 = sadd.s32 %s174, %s175
        %s177 = smul.addr %s176, 4
        %s178 = scalar_lea.vmem %s1, %s177
        %s179 = sadd.s32 %s17, 1
      $region24: #{_lambda_.10} parent=15 // pred_fallthru
        _
      // Predicated region
      $region25: #{_lambda_.10} parent=15 // pred_check
        %p180 = pneg %p103
      $region26: #{_lambda_.10} parent=15 // pred_check_branch
        %182 = sbr.rel (%p180) target = $region28
      $region27: #{_lambda_.10} parent=15 // pred_region
        %s183 = sadd.s32 %s17, 2
        %p184 = scmp.lt.s32.totalorder %s16, 1
        %s185 = scalar_select %p184, %s16, 1
        %p186 = scmp.lt.s32.totalorder %s183, 2
        %s187 = scalar_select %p186, %s183, 2
        %s188 = smul.addr %s185, 3
        %s189 = sadd.s32 %s187, %s188
        %s190 = smul.addr %s189, 4
        %s191 = scalar_lea.vmem %s2, %s190
        %s192 = sadd.s32 %s17, 2
      $region28: #{_lambda_.10} parent=15 // pred_fallthru
        _
    $region16: #{_lambda_.10} parent=5 // pred_fallthru
      _
    %p193 = scmp.le.s32.totalorder 1, %s9
    %p194 = scmp.lt.s32.totalorder %s9, 3
    %p195 = pnand %p193, %p194
    %p196 = pneg %p195
    // Predicated region
    $region29: #{_lambda_.10} parent=5 // pred_check
      _
    $region30: #{_lambda_.10} parent=5 // pred_check_branch
      %198 = sbr.rel (%p195) target = $region32
    $region31: #{_lambda_.10} parent=5 // pred_region
      %s199 = ssub.s32 %s9, 1
      %p200 = scmp.lt.s32.totalorder %s18, 1
      %s201 = scalar_select %p200, %s18, 1
      %p202 = scmp.lt.s32.totalorder %s19, 2
      %s203 = scalar_select %p202, %s19, 2
      %s204 = smul.addr %s201, 3
      %s205 = sadd.s32 %s203, %s204
      %s206 = smul.addr %s205, 4
      %s207 = scalar_lea.vmem %s0, %s206
      %p208 = pneg %p49
      %p209 = pneg %p46
      %s210 = sadd.s32 %s19, 1
      %p211 = scmp.lt.s32.totalorder %s18, 1
      %s212 = scalar_select %p211, %s18, 1
      %p213 = scmp.lt.s32.totalorder %s210, 2
      %s214 = scalar_select %p213, %s210, 2
      %s215 = smul.addr %s212, 3
      %s216 = sadd.s32 %s214, %s215
      %s217 = smul.addr %s216, 4
      %s218 = scalar_lea.vmem %s1, %s217
      %p219 = pneg %p79
      %p220 = pneg %p76
      %s221 = sadd.s32 %s19, 2
      %p222 = scmp.lt.s32.totalorder %s18, 1
      %s223 = scalar_select %p222, %s18, 1
      %p224 = scmp.lt.s32.totalorder %s221, 2
      %s225 = scalar_select %p224, %s221, 2
      %s226 = smul.addr %s223, 3
      %s227 = sadd.s32 %s225, %s226
      %s228 = smul.addr %s227, 4
      %s229 = scalar_lea.vmem %s2, %s228
      %p230 = pneg %p109
      %p231 = pneg %p106
      %p232 = pneg %p137
      %p233 = pneg %p134
      %p234 = scmp.lt.s32.totalorder %s18, 1
      %s235 = scalar_select %p234, %s18, 1
      %p236 = scmp.lt.s32.totalorder %s19, 0
      %s237 = scalar_select %p236, %s19, 0
      %s238 = sadd.s32 %s237, %s235
      %s239 = smul.addr %s238, 4
      %s240 = scalar_lea.vmem %s3, %s239
      %p241 = scmp.lt.s32.totalorder %s18, 1
      %s242 = scalar_select %p241, %s18, 1
      %p243 = scmp.lt.s32.totalorder %s19, 2
      %s244 = scalar_select %p243, %s19, 2
      %s245 = smul.addr %s242, 3
      %s246 = sadd.s32 %s244, %s245
      %s247 = smul.addr %s246, 4
      %s248 = scalar_lea.vmem %s0, %s247
      %s249 = sadd.s32 %s19, 1
      %p250 = scmp.lt.s32.totalorder %s18, 1
      %s251 = scalar_select %p250, %s18, 1
      %p252 = scmp.lt.s32.totalorder %s249, 2
      %s253 = scalar_select %p252, %s249, 2
      %s254 = smul.addr %s251, 3
      %s255 = sadd.s32 %s253, %s254
      %s256 = smul.addr %s255, 4
      %s257 = scalar_lea.vmem %s1, %s256
      %s258 = sadd.s32 %s19, 1
      %s259 = sadd.s32 %s19, 2
      %p260 = scmp.lt.s32.totalorder %s18, 1
      %s261 = scalar_select %p260, %s18, 1
      %p262 = scmp.lt.s32.totalorder %s259, 2
      %s263 = scalar_select %p262, %s259, 2
      %s264 = smul.addr %s261, 3
      %s265 = sadd.s32 %s263, %s264
      %s266 = smul.addr %s265, 4
      %s267 = scalar_lea.vmem %s2, %s266
      %s268 = sadd.s32 %s19, 2
      %p269 = scmp.lt.s32.totalorder %s18, 1
      %s270 = scalar_select %p269, %s18, 1
      %p271 = scmp.lt.s32.totalorder %s19, 0
      %s272 = scalar_select %p271, %s19, 0
      %s273 = sadd.s32 %s272, %s270
      %s274 = smul.addr %s273, 4
      %s275 = scalar_lea.vmem %s3, %s274
      %v277 = vld [vmem:[%s248] sm:$0xf]
      %v278 = vld [vmem:[%s257] sm:$0xf]
      %v279 = vld [vmem:[%s267] sm:$0xf]
      %v280 = vlaneseq
      %v281 = vand.u32 %v280, 127
      %vm282 = vcmp.lt.s32.totalorder %v281, 5
      %vm283 = vcmask 523264
      %v285 = vsel %vm283, %v277, 0
      %v288 = vsel %vm283, %v278, 0
      %290 = vmatpush.bf16.xpose.msra.mxu0 0
      %291 = vmatpush.bf16.xpose.msra.mxu0 0
      %292 = vmatpush.bf16.xpose.msra.mxu0 0
      %293 = vmatpush.bf16.xpose.msra.mxu0 0
      %294 = vmatpush.bf16.xpose.msra.mxu0 0
      %295 = vmatpush.bf16.xpose.msra.mxu0 0
      %296 = vmatpush.bf16.xpose.msra.mxu0 0
      %297 = vmatpush.bf16.xpose.msra.mxu0 %v288
      %298 = vmatmul.bf16.gmra.mxu0 %v285
      %v299 = vpop.f32.mrf.mxu0
      %v300 = vadd.f32 0.0, %v299
      %v301 = vpop.f32.mrf.mxu0
      %302 = vdwg.mxu0
      %v303 = vmul.f32 %v300, 0.125
      %v304 = vsel %vm282, 1, 0
      %vm305 = vcmp.eq.s32.totalorder %v304, 1
      %v306 = vsel %vm305, %v303, -1e+09
      %vm307 = vcmask 64512
      %v308 = vsel %vm307, %v306, -inf
      %309 = vmax.xlane.f32.xlu0 %v308
      %v310 = vpop.xlane.xlu0 %309
      %v311 = vsub.f32 %v306, %v310
      %v312 = vmul.f32 %v311, 1.442695
      %v313 = vpow.pop %v312
      %v314 = vsel %vm307, %v313, 0.0
      %315 = vadd.xlane.f32.xlu0 %v314
      %v316 = vpop.xlane.xlu0 %315
      %v317 = vrcp.pop %v316
      %v318 = vmul.f32 %v313, %v317
      %v319 = vpack.c.bf16 %v318, %v318
      %v321 = vsel %vm307, %v319, 0
      %vm323 = vcmask 1043456
      %v325 = vsel %vm323, %v279, 0
      %327 = vmatpush.bf16.msra.mxu0 0
      %328 = vmatpush.bf16.msra.mxu0 0
      %329 = vmatpush.bf16.msra.mxu0 0
      %330 = vmatpush.bf16.msra.mxu0 0
      %331 = vmatpush.bf16.msra.mxu0 0
      %332 = vmatpush.bf16.msra.mxu0 0
      %333 = vmatpush.bf16.msra.mxu0 0
      %334 = vmatpush.bf16.msra.mxu0 %v325
      %335 = vmatmul.bf16.gmra.mxu0 %v321
      %v336 = vpop.f32.mrf.mxu0
      %v337 = vadd.f32 0.0, %v336
      %v338 = vpop.f32.mrf.mxu0
      %339 = vdwg.mxu0
      %v341 = vunpack.c.l.b16 %v277
      %v342 = vpack.c.b16 %v341, %v341
      %343 = vrot.lane.b32.xlu0 %v342, 64
      %v344 = vpop.permute.xlu0 %343
      %v346 = vunpack.c.l.b16 %v278
      %v347 = vpack.c.b16 %v346, %v346
      %348 = vrot.lane.b32.xlu0 %v347, 64
      %v349 = vpop.permute.xlu0 %348
      %v351 = vsel %vm283, %v344, 0
      %v354 = vsel %vm283, %v349, 0
      %356 = vmatpush.bf16.xpose.msra.mxu0 0
      %357 = vmatpush.bf16.xpose.msra.mxu0 0
      %358 = vmatpush.bf16.xpose.msra.mxu0 0
      %359 = vmatpush.bf16.xpose.msra.mxu0 0
      %360 = vmatpush.bf16.xpose.msra.mxu0 0
      %361 = vmatpush.bf16.xpose.msra.mxu0 0
      %362 = vmatpush.bf16.xpose.msra.mxu0 0
      %363 = vmatpush.bf16.xpose.msra.mxu0 %v354
      %364 = vmatmul.bf16.gmra.mxu0 %v351
      %v365 = vpop.f32.mrf.mxu0
      %v366 = vadd.f32 0.0, %v365
      %v367 = vpop.f32.mrf.mxu0
      %368 = vdwg.mxu0
      %v369 = vmul.f32 %v366, 0.125
      %v370 = vsel %vm305, %v369, -1e+09
      %v371 = vsel %vm307, %v370, -inf
      %372 = vmax.xlane.f32.xlu0 %v371
      %v373 = vpop.xlane.xlu0 %372
      %v374 = vsub.f32 %v370, %v373
      %v375 = vmul.f32 %v374, 1.442695
      %v376 = vpow.pop %v375
      %v377 = vsel %vm307, %v376, 0.0
      %378 = vadd.xlane.f32.xlu0 %v377
      %v379 = vpop.xlane.xlu0 %378
      %v380 = vrcp.pop %v379
      %v381 = vmul.f32 %v376, %v380
      %v382 = vpack.c.bf16 %v381, %v381
      %v384 = vunpack.c.l.b16 %v279
      %v385 = vpack.c.b16 %v384, %v384
      %386 = vrot.lane.b32.xlu0 %v385, 64
      %v387 = vpop.permute.xlu0 %386
      %v389 = vsel %vm307, %v382, 0
      %v392 = vsel %vm323, %v387, 0
      %394 = vmatpush.bf16.msra.mxu0 0
      %395 = vmatpush.bf16.msra.mxu0 0
      %396 = vmatpush.bf16.msra.mxu0 0
      %397 = vmatpush.bf16.msra.mxu0 0
      %398 = vmatpush.bf16.msra.mxu0 0
      %399 = vmatpush.bf16.msra.mxu0 0
      %400 = vmatpush.bf16.msra.mxu0 0
      %401 = vmatpush.bf16.msra.mxu0 %v392
      %402 = vmatmul.bf16.gmra.mxu0 %v389
      %v403 = vpop.f32.mrf.mxu0
      %v404 = vadd.f32 0.0, %v403
      %v405 = vpop.f32.mrf.mxu0
      %406 = vdwg.mxu0
      %408 = vrot.lane.b32.xlu0 %v404, 64
      %v409 = vpop.permute.xlu0 %408
      %v411 = vsel %vm283, %v337, %v409
      %v412 = vpack.c.bf16 %v411, %v411
      %413 = vst [vmem:[%s275] sm:$0xf] %v412
      %p414 = scmp.lt.s32.totalorder %s18, 1
      %s415 = scalar_select %p414, %s18, 1
      %p416 = scmp.lt.s32.totalorder %s19, 0
      %s417 = scalar_select %p416, %s19, 0
      %s418 = sadd.s32 %s417, %s415
      %s419 = smul.addr %s418, 4
      %s420 = scalar_lea.vmem %s3, %s419
      // Predicated region
      $region33: #{_lambda_.10} parent=31 // pred_check
        %p421 = pneg %p134
      $region34: #{_lambda_.10} parent=31 // pred_check_branch
        %423 = sbr.rel (%p421) target = $region36
      $region35: #{_lambda_.10} parent=31 // pred_region
        _
      $region36: #{_lambda_.10} parent=31 // pred_fallthru
        _
    $region32: #{_lambda_.10} parent=5 // pred_fallthru
      _
    %p424 = scmp.le.s32.totalorder 2, %s9
    // Predicated region
    $region37: #{_lambda_.10} parent=5 // pred_check
      %p425 = pneg %p424
    $region38: #{_lambda_.10} parent=5 // pred_check_branch
      %427 = sbr.rel (%p425) target = $region40
    $region39: #{_lambda_.10} parent=5 // pred_region
      %s428 = ssub.s32 %s9, 2
      // Predicated region
      $region41: #{_lambda_.10} parent=39 // pred_check
        %p429 = pneg %p140
      $region42: #{_lambda_.10} parent=39 // pred_check_branch
        %431 = sbr.rel (%p429) target = $region44
      $region43: #{_lambda_.10} parent=39 // pred_region
        %p432 = scmp.lt.s32.totalorder %s20, 1
        %s433 = scalar_select %p432, %s20, 1
        %p434 = scmp.lt.s32.totalorder %s21, 0
        %s435 = scalar_select %p434, %s21, 0
        %s436 = sadd.s32 %s435, %s433
        %s437 = smul.addr %s436, 4
        %s438 = scalar_lea.vmem %s3, %s437
      $region44: #{_lambda_.10} parent=39 // pred_fallthru
        _
    $region40: #{_lambda_.10} parent=5 // pred_fallthru
      _
  $region6: #{_lambda_.10} parent=0 // loop_footer
    %s13 = sadd.s32 1, %s9
  $region7: #{_lambda_.10} parent=0 // loop_footer_branch
    %8 = sbr.rel target = $region3
  $region8: #{_lambda_.10} parent=0 // loop_exit
    _

// kernel: _lambda_.9
$region0: #{_lambda_.9}
  #allocation0 [shape = 'u32[]', space=smem, size = 0x4, offset = 0x4, fixed_abs, tag = 'smem constant byte address 0x4 - core index']
  #allocation1 [shape = 'u32[72,128]{1,0:T(1,128)}', space=vmem, size = 0x9000, scoped, tag = 'internal scratch']
  %s0 = inlined_call_operand.vmem [shape: f32[16,128], index: 0, kind: input, shape index: {}]
  %s1 = inlined_call_operand.vmem [shape: f32[1,128], index: 1, kind: input, shape index: {}]
  %s2 = inlined_call_operand.vmem [shape: f32[1,128], index: 2, kind: input, shape index: {}]
  %s3 = inlined_call_operand.hbm [shape: bf16[128,384], index: 3, kind: input, shape index: {}]
  %s4 = inlined_call_operand.vmem [shape: f32[1,384], index: 4, kind: input, shape index: {}]
  %s5 = inlined_call_operand.vmem [shape: bf16[16,384], index: 5, kind: output, shape index: {}]
  %s6 = sld [smem:[#allocation0]]
  $region57: #{_lambda_.9} parent=0
    _
  %s8 = ssub.s32 1, %s6
  %s9 = scalar_select 0, %s8, %s6
  $region1: #{_lambda_.9} parent=0
    #allocation2 [shape = 'u8[98304]{0}', space=vmem, size = 0x18000, scoped, tag = 'input window, operand 3, single buffered']
    #allocation3 [shape = 's32[2]{0}', space=sflag, size = 0x8, scoped, tag = 'scoped memory for _lambda_.9']
    %10 = vsyncpa [#allocation3], 0
    loop: start=0, step=1, limit=4
    $region2: #{_lambda_.9} parent=1 // loop_pre_header
      _
    $region3: #{_lambda_.9} parent=1 // loop_header
      %s12 = sphi 0, %s16
      %p13 = scmp.ge.s32.totalorder %s12, 4
      %s22 = sphi 0, %s24
      %s25 = sphi 0, %s22
      %s26 = sphi 0, %s25
      %s42 = sphi 0, %s26
      %s46 = sphi 0, %s46
      %s48 = sphi 0, %s46
      %s49 = sphi 0, %s48
      %s63 = sphi 0, %s49
      %s67 = sphi 0, %s67
      %s69 = sphi 0, %s67
      %s70 = sphi 0, %s69
      %s84 = sphi 0, %s70
      %s88 = sphi 0, %s88
      %s90 = sphi 0, %s88
      %s91 = sphi 0, %s90
      %s105 = sphi 0, %s91
      %s109 = sphi 0, %s109
      %s111 = sphi 0, %s109
      %s112 = sphi 0, %s111
      %s126 = sphi 0, %s112
      %s132 = sphi 0, %s134
      %s135 = sphi 0, %s132
      %s136 = sphi 0, %s135
      %s152 = sphi 0, %s136
    $region4: #{_lambda_.9} parent=1 // loop_header_branch
      %15 = sbr.rel (%p13) target = $region8
    $region5: #{_lambda_.9} parent=1 // loop_body
      %s17 = ssub.s32 %s12, 1
      %s18 = ssub.s32 %s12, 2
      %s19 = sadd.s32 %s12, 1
      %s20 = ssub.s32 %s12, %s19
      %p21 = scmp.eq.s32.totalorder %s20, 0
      %s23 = sadd.s32 %s22, 1
      %s24 = scalar_select %p21, %s22, %s23
      %p27 = pneg %p21
      %p28 = scmp.eq.s32.totalorder %s12, 1
      %p29 = por %p27, %p28
      %p30 = scmp.ne.s32.totalorder %s22, %s25
      %p31 = scmp.eq.s32.totalorder %s12, 0
      %p32 = por %p30, %p31
      %p33 = scmp.ne.s32.totalorder %s22, %s25
      %p34 = scmp.eq.s32.totalorder %s17, 1
      %p35 = por %p33, %p34
      %p36 = scmp.ne.s32.totalorder %s25, %s26
      %p37 = scmp.eq.s32.totalorder %s17, 0
      %p38 = por %p36, %p37
      %p39 = scmp.ne.s32.totalorder %s25, %s26
      %p40 = scmp.eq.s32.totalorder %s18, 1
      %p41 = por %p39, %p40
      %p43 = scmp.ne.s32.totalorder %s26, %s42
      %p44 = scmp.eq.s32.totalorder %s18, 0
      %p45 = por %p43, %p44
      %s47 = sadd.s32 %s46, 1
      %p50 = scmp.eq.s32.totalorder %s12, 1
      %p51 = scmp.ne.s32.totalorder %s46, %s48
      %p52 = scmp.eq.s32.totalorder %s12, 0
      %p53 = por %p51, %p52
      %p54 = scmp.ne.s32.totalorder %s46, %s48
      %p55 = scmp.eq.s32.totalorder %s17, 1
      %p56 = por %p54, %p55
      %p57 = scmp.ne.s32.totalorder %s48, %s49
      %p58 = scmp.eq.s32.totalorder %s17, 0
      %p59 = por %p57, %p58
      %p60 = scmp.ne.s32.totalorder %s48, %s49
      %p61 = scmp.eq.s32.totalorder %s18, 1
      %p62 = por %p60, %p61
      %p64 = scmp.ne.s32.totalorder %s49, %s63
      %p65 = scmp.eq.s32.totalorder %s18, 0
      %p66 = por %p64, %p65
      %s68 = sadd.s32 %s67, 1
      %p71 = scmp.eq.s32.totalorder %s12, 1
      %p72 = scmp.ne.s32.totalorder %s67, %s69
      %p73 = scmp.eq.s32.totalorder %s12, 0
      %p74 = por %p72, %p73
      %p75 = scmp.ne.s32.totalorder %s67, %s69
      %p76 = scmp.eq.s32.totalorder %s17, 1
      %p77 = por %p75, %p76
      %p78 = scmp.ne.s32.totalorder %s69, %s70
      %p79 = scmp.eq.s32.totalorder %s17, 0
      %p80 = por %p78, %p79
      %p81 = scmp.ne.s32.totalorder %s69, %s70
      %p82 = scmp.eq.s32.totalorder %s18, 1
      %p83 = por %p81, %p82
      %p85 = scmp.ne.s32.totalorder %s70, %s84
      %p86 = scmp.eq.s32.totalorder %s18, 0
      %p87 = por %p85, %p86
      %s89 = sadd.s32 %s88, 1
      %p92 = scmp.eq.s32.totalorder %s12, 1
      %p93 = scmp.ne.s32.totalorder %s88, %s90
      %p94 = scmp.eq.s32.totalorder %s12, 0
      %p95 = por %p93, %p94
      %p96 = scmp.ne.s32.totalorder %s88, %s90
      %p97 = scmp.eq.s32.totalorder %s17, 1
      %p98 = por %p96, %p97
      %p99 = scmp.ne.s32.totalorder %s90, %s91
      %p100 = scmp.eq.s32.totalorder %s17, 0
      %p101 = por %p99, %p100
      %p102 = scmp.ne.s32.totalorder %s90, %s91
      %p103 = scmp.eq.s32.totalorder %s18, 1
      %p104 = por %p102, %p103
      %p106 = scmp.ne.s32.totalorder %s91, %s105
      %p107 = scmp.eq.s32.totalorder %s18, 0
      %p108 = por %p106, %p107
      %s110 = sadd.s32 %s109, 1
      %p113 = scmp.eq.s32.totalorder %s12, 1
      %p114 = scmp.ne.s32.totalorder %s109, %s111
      %p115 = scmp.eq.s32.totalorder %s12, 0
      %p116 = por %p114, %p115
      %p117 = scmp.ne.s32.totalorder %s109, %s111
      %p118 = scmp.eq.s32.totalorder %s17, 1
      %p119 = por %p117, %p118
      %p120 = scmp.ne.s32.totalorder %s111, %s112
      %p121 = scmp.eq.s32.totalorder %s17, 0
      %p122 = por %p120, %p121
      %p123 = scmp.ne.s32.totalorder %s111, %s112
      %p124 = scmp.eq.s32.totalorder %s18, 1
      %p125 = por %p123, %p124
      %p127 = scmp.ne.s32.totalorder %s112, %s126
      %p128 = scmp.eq.s32.totalorder %s18, 0
      %p129 = por %p127, %p128
      %s130 = ssub.s32 %s12, %s19
      %p131 = scmp.eq.s32.totalorder %s130, 0
      %s133 = sadd.s32 %s132, 1
      %s134 = scalar_select %p131, %s132, %s133
      %p137 = pneg %p131
      %p138 = scmp.eq.s32.totalorder %s12, 1
      %p139 = por %p137, %p138
      %p140 = scmp.ne.s32.totalorder %s132, %s135
      %p141 = scmp.eq.s32.totalorder %s12, 0
      %p142 = por %p140, %p141
      %p143 = scmp.ne.s32.totalorder %s132, %s135
      %p144 = scmp.eq.s32.totalorder %s17, 1
      %p145 = por %p143, %p144
      %p146 = scmp.ne.s32.totalorder %s135, %s136
      %p147 = scmp.eq.s32.totalorder %s17, 0
      %p148 = por %p146, %p147
      %p149 = scmp.ne.s32.totalorder %s135, %s136
      %p150 = scmp.eq.s32.totalorder %s18, 1
      %p151 = por %p149, %p150
      %p153 = scmp.ne.s32.totalorder %s136, %s152
      %p154 = scmp.eq.s32.totalorder %s18, 0
      %p155 = por %p153, %p154
      %p156 = scmp.le.s32.totalorder 1, %s12
      %p157 = scmp.lt.s32.totalorder %s12, 3
      %p158 = pnand %p156, %p157
      %p159 = pneg %p158
      // Predicated region
      $region9: #{_lambda_.9} parent=5 // pred_check
        _
      $region10: #{_lambda_.9} parent=5 // pred_check_branch
        %161 = sbr.rel (%p158) target = $region12
      $region11: #{_lambda_.9} parent=5 // pred_region
        %s162 = ssub.s32 %s12, 1
        // Predicated region
        $region13: #{_lambda_.9} parent=11 // pred_check
          %p163 = pneg %p59
        $region14: #{_lambda_.9} parent=11 // pred_check_branch
          %165 = sbr.rel (%p163) target = $region16
        $region15: #{_lambda_.9} parent=11 // pred_region
          _
        $region16: #{_lambda_.9} parent=11 // pred_fallthru
          _
        // Predicated region
        $region17: #{_lambda_.9} parent=11 // pred_check
          %p166 = pneg %p80
        $region18: #{_lambda_.9} parent=11 // pred_check_branch
          %168 = sbr.rel (%p166) target = $region20
        $region19: #{_lambda_.9} parent=11 // pred_region
          _
        $region20: #{_lambda_.9} parent=11 // pred_fallthru
          _
        // Predicated region
        $region21: #{_lambda_.9} parent=11 // pred_check
          %p169 = pneg %p101
        $region22: #{_lambda_.9} parent=11 // pred_check_branch
          %171 = sbr.rel (%p169) target = $region24
        $region23: #{_lambda_.9} parent=11 // pred_region
          %173 = vsyncadd [#allocation3], 0
          %s174 = sshll.u32 %s3, 4
          %s175 = int_to_ptr.hbm [resolvable:$true] %s174
          %s176 = sshll.u32 [#allocation2], 4
          %s177 = int_to_ptr.vmem [resolvable:$true] %s176
          %182 = dma.hbm_to_vmem [thread:$0]  %s175, 3072, %s177, [#allocation3], 192, 192, 12
        $region24: #{_lambda_.9} parent=11 // pred_fallthru
          _
        // Predicated region
        $region25: #{_lambda_.9} parent=11 // pred_check
          %p183 = pneg %p122
        $region26: #{_lambda_.9} parent=11 // pred_check_branch
          %185 = sbr.rel (%p183) target = $region28
        $region27: #{_lambda_.9} parent=11 // pred_region
          _
        $region28: #{_lambda_.9} parent=11 // pred_fallthru
          _
      $region12: #{_lambda_.9} parent=5 // pred_fallthru
        _
      %p186 = scmp.lt.s32.totalorder %s12, 2
      // Predicated region
      $region29: #{_lambda_.9} parent=5 // pred_check
        %p187 = pneg %p186
      $region30: #{_lambda_.9} parent=5 // pred_check_branch
        %189 = sbr.rel (%p187) target = $region32
      $region31: #{_lambda_.9} parent=5 // pred_region
        // Predicated region
        $region33: #{_lambda_.9} parent=31 // pred_check
          %p190 = pneg %p32
        $region34: #{_lambda_.9} parent=31 // pred_check_branch
          %192 = sbr.rel (%p190) target = $region36
        $region35: #{_lambda_.9} parent=31 // pred_region
          %p193 = scmp.lt.s32.totalorder %s12, 1
          %s194 = scalar_select %p193, %s12, 1
          %s195 = smul.addr %s194, 8
          %s196 = scalar_lea.vmem %s0, %s195
        $region36: #{_lambda_.9} parent=31 // pred_fallthru
          _
      $region32: #{_lambda_.9} parent=5 // pred_fallthru
        _
      %p197 = scmp.le.s32.totalorder 1, %s12
      %p198 = scmp.lt.s32.totalorder %s12, 3
      %p199 = pnand %p197, %p198
      %p200 = pneg %p199
      // Predicated region
      $region37: #{_lambda_.9} parent=5 // pred_check
        _
      $region38: #{_lambda_.9} parent=5 // pred_check_branch
        %202 = sbr.rel (%p199) target = $region40
      $region39: #{_lambda_.9} parent=5 // pred_region
        %s203 = ssub.s32 %s12, 1
        // Predicated region
        $region41: #{_lambda_.9} parent=39 // pred_check
          %p204 = pneg %p101
        $region42: #{_lambda_.9} parent=39 // pred_check_branch
          %206 = sbr.rel (%p204) target = $region44
        $region43: #{_lambda_.9} parent=39 // pred_region
          %208 = dma.done [#allocation3], 3072
        $region44: #{_lambda_.9} parent=39 // pred_fallthru
          _
        %p209 = scmp.lt.s32.totalorder %s17, 1
        %s210 = scalar_select %p209, %s17, 1
        %s211 = smul.addr %s210, 8
        %s212 = scalar_lea.vmem %s0, %s211
        %p213 = pneg %p38
        %p214 = pneg %p35
        %p215 = pneg %p59
        %p216 = pneg %p56
        %p217 = pneg %p80
        %p218 = pneg %p77
        %p219 = pneg %p101
        %p220 = pneg %p98
        %p221 = pneg %p122
        %p222 = pneg %p119
        %p223 = pneg %p148
        %p224 = pneg %p145
        %p225 = scmp.lt.s32.totalorder %s17, 1
        %s226 = scalar_select %p225, %s17, 1
        %s227 = smul.addr %s226, 3
        %s228 = smul.addr %s227, 4
        %s229 = scalar_lea.vmem %s5, %s228
        %p230 = scmp.lt.s32.totalorder %s17, 1
        %s231 = scalar_select %p230, %s17, 1
        %s232 = smul.addr %s231, 8
        %s233 = scalar_lea.vmem %s0, %s232
        %p234 = scmp.lt.s32.totalorder %s17, 1
        %s235 = scalar_select %p234, %s17, 1
        %s236 = smul.addr %s235, 3
        %s237 = smul.addr %s236, 4
        %s238 = scalar_lea.vmem %s5, %s237
        %v239 = vld [vmem:[%s233] sm:$0xff]
        %v240 = vld [vmem:[%s1] sm:$0x1]
        %v241 = vld [vmem:[%s2] sm:$0x1]
        %242 = vadd.xlane.f32.xlu0 %v239
        %v243 = vpop.xlane.xlu0 %242
        %v244 = vrcp.pop 128.0
        %v245 = vmul.f32 128.0, %v244
        %v246 = vsub.f32 1.0, %v245
        %v247 = vmul.f32 %v244, %v246
        %v248 = vadd.f32 %v244, %v247
        %vm249 = vweird.f32 %v244
        %v250 = vsel %vm249, %v244, %v248
        %v251 = vmul.f32 %v243, %v250
        %v252 = vsub.f32 %v239, %v251
        %v253 = vmul.f32 %v252, %v252
        %254 = vadd.xlane.f32.xlu0 %v253
        %v255 = vpop.xlane.xlu0 %254
        %v256 = vmul.f32 %v255, %v250
        %v257 = vadd.f32 %v256, 1e-06
        %v258 = vrsqrt.pop %v257
        %v259 = vmul.f32 %v258, %v257
        %v260 = vmul.f32 %v259, %v258
        %v261 = vmul.f32 0.5, %v260
        %v262 = vsub.f32 1.5, %v261
        %v263 = vmul.f32 %v258, %v262
        %vm264 = vweird.f32 %v257
        %vm265 = vweird.f32 %v258
        %vm266 = vmor %vm264, %vm265
        %v267 = vsel %vm266, %v258, %v263
        %v268 = vmul.f32 %v252, %v267
        %v270 = vperm.slane %v240, 0
        %v272 = vmul.f32 %v268, %v270
        %v274 = vperm.slane %v241, 0
        %v276 = vadd.f32 %v272, %v274
        %v277 = vpack.c.bf16 %v276, %v276
        %v278 = vld [vmem:[#allocation2] sm:$0xff]
        %v279 = vld [vmem:[#allocation2 + $0x8] sm:$0xf]
        %v280 = vld [vmem:[#allocation2 + $0xc] sm:$0xff]
        %v281 = vld [vmem:[#allocation2 + $0x14] sm:$0xf]
        %v282 = vld [vmem:[#allocation2 + $0x18] sm:$0xff]
        %v283 = vld [vmem:[#allocation2 + $0x20] sm:$0xf]
        %v284 = vld [vmem:[#allocation2 + $0x24] sm:$0xff]
        %v285 = vld [vmem:[#allocation2 + $0x2c] sm:$0xf]
        %v286 = vld [vmem:[#allocation2 + $0x30] sm:$0xff]
        %v287 = vld [vmem:[#allocation2 + $0x38] sm:$0xf]
        %v288 = vld [vmem:[#allocation2 + $0x3c] sm:$0xff]
        %v289 = vld [vmem:[#allocation2 + $0x44] sm:$0xf]
        %v290 = vld [vmem:[#allocation2 + $0x48] sm:$0xff]
        %v291 = vld [vmem:[#allocation2 + $0x50] sm:$0xf]
        %v292 = vld [vmem:[#allocation2 + $0x54] sm:$0xff]
        %v293 = vld [vmem:[#allocation2 + $0x5c] sm:$0xf]
        %v294 = vld [vmem:[#allocation2 + $0x60] sm:$0xff]
        %v295 = vld [vmem:[#allocation2 + $0x68] sm:$0xf]
        %v296 = vld [vmem:[#allocation2 + $0x6c] sm:$0xff]
        %v297 = vld [vmem:[#allocation2 + $0x74] sm:$0xf]
        %v298 = vld [vmem:[#allocation2 + $0x78] sm:$0xff]
        %v299 = vld [vmem:[#allocation2 + $0x80] sm:$0xf]
        %v300 = vld [vmem:[#allocation2 + $0x84] sm:$0xff]
        %v301 = vld [vmem:[#allocation2 + $0x8c] sm:$0xf]
        %v302 = vld [vmem:[#allocation2 + $0x90] sm:$0xff]
        %v303 = vld [vmem:[#allocation2 + $0x98] sm:$0xf]
        %v304 = vld [vmem:[#allocation2 + $0x9c] sm:$0xff]
        %v305 = vld [vmem:[#allocation2 + $0xa4] sm:$0xf]
        %v306 = vld [vmem:[#allocation2 + $0xa8] sm:$0xff]
        %v307 = vld [vmem:[#allocation2 + $0xb0] sm:$0xf]
        %v308 = vld [vmem:[#allocation2 + $0xb4] sm:$0xff]
        %v309 = vld [vmem:[#allocation2 + $0xbc] sm:$0xf]
        %v310 = vld [vmem:[%s4] sm:$0x7]
        %v312 = vperm.slane %v310, 0
        %v313 = vperm.slane %v310, 1
        %v314 = vperm.slane %v310, 2
        %v350 = vunpack.c.l.b16 %v278
        %v351 = vunpack.c.h.b16 %v278
        %v352 = vunpack.c.l.b16 %v279
        %v353 = vunpack.c.l.b16 %v280
        %v354 = vunpack.c.h.b16 %v280
        %v355 = vunpack.c.l.b16 %v281
        %v356 = vunpack.c.l.b16 %v282
        %v357 = vunpack.c.h.b16 %v282
        %v358 = vunpack.c.l.b16 %v283
        %v359 = vunpack.c.l.b16 %v284
        %v360 = vunpack.c.h.b16 %v284
        %v361 = vunpack.c.l.b16 %v285
        %v362 = vunpack.c.l.b16 %v286
        %v363 = vunpack.c.h.b16 %v286
        %v364 = vunpack.c.l.b16 %v287
        %v365 = vunpack.c.l.b16 %v288
        %v366 = vunpack.c.h.b16 %v288
        %v367 = vunpack.c.l.b16 %v289
        %v368 = vunpack.c.l.b16 %v290
        %v369 = vunpack.c.h.b16 %v290
        %v370 = vunpack.c.l.b16 %v291
        %v371 = vunpack.c.l.b16 %v292
        %v372 = vunpack.c.h.b16 %v292
        %v373 = vunpack.c.l.b16 %v293
        %v374 = vunpack.c.l.b16 %v294
        %v375 = vunpack.c.h.b16 %v294
        %v376 = vunpack.c.l.b16 %v295
        %v377 = vunpack.c.l.b16 %v296
        %v378 = vunpack.c.h.b16 %v296
        %v379 = vunpack.c.l.b16 %v297
        %v380 = vunpack.c.l.b16 %v298
        %v381 = vunpack.c.h.b16 %v298
        %v382 = vunpack.c.l.b16 %v299
        %v383 = vunpack.c.l.b16 %v300
        %v384 = vunpack.c.h.b16 %v300
        %v385 = vunpack.c.l.b16 %v301
        %v386 = vunpack.c.l.b16 %v302
        %v387 = vunpack.c.h.b16 %v302
        %v388 = vunpack.c.l.b16 %v303
        %v389 = vunpack.c.l.b16 %v304
        %v390 = vunpack.c.h.b16 %v304
        %v391 = vunpack.c.l.b16 %v305
        %v392 = vunpack.c.l.b16 %v306
        %v393 = vunpack.c.h.b16 %v306
        %v394 = vunpack.c.l.b16 %v307
        %v395 = vunpack.c.l.b16 %v308
        %v396 = vunpack.c.h.b16 %v308
        %v397 = vunpack.c.l.b16 %v309
        %v398 = vpack.c.b16 %v353, %v350
        %v399 = vpack.c.b16 %v354, %v351
        %v400 = vpack.c.b16 %v355, %v352
        %v401 = vpack.c.b16 %v359, %v356
        %v402 = vpack.c.b16 %v360, %v357
        %v403 = vpack.c.b16 %v361, %v358
        %v404 = vpack.c.b16 %v365, %v362
        %v405 = vpack.c.b16 %v366, %v363
        %v406 = vpack.c.b16 %v367, %v364
        %v407 = vpack.c.b16 %v371, %v368
        %v408 = vpack.c.b16 %v372, %v369
        %v409 = vpack.c.b16 %v373, %v370
        %v410 = vpack.c.b16 %v377, %v374
        %v411 = vpack.c.b16 %v378, %v375
        %v412 = vpack.c.b16 %v379, %v376
        %v413 = vpack.c.b16 %v383, %v380
        %v414 = vpack.c.b16 %v384, %v381
        %v415 = vpack.c.b16 %v385, %v382
        %v416 = vpack.c.b16 %v389, %v386
        %v417 = vpack.c.b16 %v390, %v387
        %v418 = vpack.c.b16 %v391, %v388
        %v419 = vpack.c.b16 %v395, %v392
        %v420 = vpack.c.b16 %v396, %v393
        %v421 = vpack.c.b16 %v397, %v394
        %446 = vmatpush.bf16.msra.mxu0 %v419
        %447 = vmatpush.bf16.msra.mxu0 %v416
        %448 = vmatpush.bf16.msra.mxu0 %v413
        %449 = vmatpush.bf16.msra.mxu0 %v410
        %450 = vmatpush.bf16.msra.mxu0 %v407
        %451 = vmatpush.bf16.msra.mxu0 %v404
        %452 = vmatpush.bf16.msra.mxu0 %v401
        %453 = vmatpush.bf16.msra.mxu0 %v398
        %454 = vmatmul.bf16.gmra.mxu0 %v277
        %v455 = vpop.f32.mrf.mxu0
        %v456 = vadd.f32 %v312, %v455
        %v457 = vpop.f32.mrf.mxu0
        %458 = vdwg.mxu0
        %459 = vmatpush.bf16.msra.mxu0 %v420
        %460 = vmatpush.bf16.msra.mxu0 %v417
        %461 = vmatpush.bf16.msra.mxu0 %v414
        %462 = vmatpush.bf16.msra.mxu0 %v411
        %463 = vmatpush.bf16.msra.mxu0 %v408
        %464 = vmatpush.bf16.msra.mxu0 %v405
        %465 = vmatpush.bf16.msra.mxu0 %v402
        %466 = vmatpush.bf16.msra.mxu0 %v399
        %467 = vmatmul.bf16.gmra.mxu0 %v277
        %v468 = vpop.f32.mrf.mxu0
        %v469 = vadd.f32 %v313, %v468
        %v470 = vpop.f32.mrf.mxu0
        %471 = vdwg.mxu0
        %472 = vmatpush.bf16.msra.mxu0 %v421
        %473 = vmatpush.bf16.msra.mxu0 %v418
        %474 = vmatpush.bf16.msra.mxu0 %v415
        %475 = vmatpush.bf16.msra.mxu0 %v412
        %476 = vmatpush.bf16.msra.mxu0 %v409
        %477 = vmatpush.bf16.msra.mxu0 %v406
        %478 = vmatpush.bf16.msra.mxu0 %v403
        %479 = vmatpush.bf16.msra.mxu0 %v400
        %480 = vmatmul.bf16.gmra.mxu0 %v277
        %v481 = vpop.f32.mrf.mxu0
        %v482 = vadd.f32 %v314, %v481
        %v483 = vpop.f32.mrf.mxu0
        %484 = vdwg.mxu0
        %v485 = vpack.c.bf16 %v469, %v456
        %v486 = vpack.c.bf16 %v482, %v482
        %487 = vst [vmem:[%s238] sm:$0xff] %v485
        %488 = vst [vmem:[%s238 + $0x8] sm:$0xf] %v486
        %p489 = scmp.lt.s32.totalorder %s17, 1
        %s490 = scalar_select %p489, %s17, 1
        %s491 = smul.addr %s490, 3
        %s492 = smul.addr %s491, 4
        %s493 = scalar_lea.vmem %s5, %s492
        // Predicated region
        $region45: #{_lambda_.9} parent=39 // pred_check
          %p494 = pneg %p145
        $region46: #{_lambda_.9} parent=39 // pred_check_branch
          %496 = sbr.rel (%p494) target = $region48
        $region47: #{_lambda_.9} parent=39 // pred_region
          _
        $region48: #{_lambda_.9} parent=39 // pred_fallthru
          _
      $region40: #{_lambda_.9} parent=5 // pred_fallthru
        _
      %p497 = scmp.le.s32.totalorder 2, %s12
      // Predicated region
      $region49: #{_lambda_.9} parent=5 // pred_check
        %p498 = pneg %p497
      $region50: #{_lambda_.9} parent=5 // pred_check_branch
        %500 = sbr.rel (%p498) target = $region52
      $region51: #{_lambda_.9} parent=5 // pred_region
        %s501 = ssub.s32 %s12, 2
        // Predicated region
        $region53: #{_lambda_.9} parent=51 // pred_check
          %p502 = pneg %p151
        $region54: #{_lambda_.9} parent=51 // pred_check_branch
          %504 = sbr.rel (%p502) target = $region56
        $region55: #{_lambda_.9} parent=51 // pred_region
          %p505 = scmp.lt.s32.totalorder %s18, 1
          %s506 = scalar_select %p505, %s18, 1
          %s507 = smul.addr %s506, 3
          %s508 = smul.addr %s507, 4
          %s509 = scalar_lea.vmem %s5, %s508
        $region56: #{_lambda_.9} parent=51 // pred_fallthru
          _
      $region52: #{_lambda_.9} parent=5 // pred_fallthru
        _
    $region6: #{_lambda_.9} parent=1 // loop_footer
      %s16 = sadd.s32 1, %s12
    $region7: #{_lambda_.9} parent=1 // loop_footer_branch
      %11 = sbr.rel target = $region3
    $region8: #{_lambda_.9} parent=1 // loop_exit
      _
    %510 = vsyncpa [#allocation3], 1
    %s511 = scalar_lea.sflag [#allocation3], 1
    %512 = vsyncpa %s511, 1

// kernel: _lambda_.8
$region0: #{_lambda_.8}
  #allocation0 [shape = 'u32[]', space=smem, size = 0x4, offset = 0x4, fixed_abs, tag = 'smem constant byte address 0x4 - core index']
  #allocation1 [shape = 'u32[72,128]{1,0:T(1,128)}', space=vmem, size = 0x9000, scoped, tag = 'internal scratch']
  %s0 = inlined_call_operand.vmem [shape: bf16[8,768], index: 0, kind: input, shape index: {}]
  %s1 = inlined_call_operand.vmem [shape: bf16[768,128], index: 1, kind: input, shape index: {}]
  %s2 = inlined_call_operand.vmem [shape: f32[1,128], index: 2, kind: input, shape index: {}]
  %s3 = inlined_call_operand.vmem [shape: f32[8,128], index: 3, kind: output, shape index: {}]
  %s4 = sld [smem:[#allocation0]]
  $region22: #{_lambda_.8} parent=0
    _
  %s6 = ssub.s32 1, %s4
  %s7 = scalar_select 0, %s6, %s4
  // Predicated region
  $region2: #{_lambda_.8} parent=0 // pred_check
    _
  $region3: #{_lambda_.8} parent=0 // pred_check_branch
    %9 = sbr.rel (0) target = $region5
  $region4: #{_lambda_.8} parent=0 // pred_region
    _
  $region5: #{_lambda_.8} parent=0 // pred_fallthru
    _
  // Predicated region
  $region6: #{_lambda_.8} parent=0 // pred_check
    _
  $region7: #{_lambda_.8} parent=0 // pred_check_branch
    %11 = sbr.rel (0) target = $region9
  $region8: #{_lambda_.8} parent=0 // pred_region
    _
  $region9: #{_lambda_.8} parent=0 // pred_fallthru
    _
  // Predicated region
  $region10: #{_lambda_.8} parent=0 // pred_check
    _
  $region11: #{_lambda_.8} parent=0 // pred_check_branch
    %13 = sbr.rel (0) target = $region13
  $region12: #{_lambda_.8} parent=0 // pred_region
    _
  $region13: #{_lambda_.8} parent=0 // pred_fallthru
    _
  %v14 = vld [vmem:[%s0] sm:$0xff]
  %v15 = vld [vmem:[%s0 + $0x8] sm:$0xff]
  %v16 = vld [vmem:[%s0 + $0x10] sm:$0xff]
  %v17 = vld [vmem:[%s1] sm:$0xf]
  %v18 = vld [vmem:[%s1 + $0x4] sm:$0xf]
  %v19 = vld [vmem:[%s1 + $0x8] sm:$0xf]
  %v20 = vld [vmem:[%s1 + $0xc] sm:$0xf]
  %v21 = vld [vmem:[%s1 + $0x10] sm:$0xf]
  %v22 = vld [vmem:[%s1 + $0x14] sm:$0xf]
  %v23 = vld [vmem:[%s1 + $0x18] sm:$0xf]
  %v24 = vld [vmem:[%s1 + $0x1c] sm:$0xf]
  %v25 = vld [vmem:[%s1 + $0x20] sm:$0xf]
  %v26 = vld [vmem:[%s1 + $0x24] sm:$0xf]
  %v27 = vld [vmem:[%s1 + $0x28] sm:$0xf]
  %v28 = vld [vmem:[%s1 + $0x2c] sm:$0xf]
  %v29 = vld [vmem:[%s1 + $0x30] sm:$0xf]
  %v30 = vld [vmem:[%s1 + $0x34] sm:$0xf]
  %v31 = vld [vmem:[%s1 + $0x38] sm:$0xf]
  %v32 = vld [vmem:[%s1 + $0x3c] sm:$0xf]
  %v33 = vld [vmem:[%s1 + $0x40] sm:$0xf]
  %v34 = vld [vmem:[%s1 + $0x44] sm:$0xf]
  %v35 = vld [vmem:[%s1 + $0x48] sm:$0xf]
  %v36 = vld [vmem:[%s1 + $0x4c] sm:$0xf]
  %v37 = vld [vmem:[%s1 + $0x50] sm:$0xf]
  %v38 = vld [vmem:[%s1 + $0x54] sm:$0xf]
  %v39 = vld [vmem:[%s1 + $0x58] sm:$0xf]
  %v40 = vld [vmem:[%s1 + $0x5c] sm:$0xf]
  %v41 = vld [vmem:[%s1 + $0x60] sm:$0xf]
  %v42 = vld [vmem:[%s1 + $0x64] sm:$0xf]
  %v43 = vld [vmem:[%s1 + $0x68] sm:$0xf]
  %v44 = vld [vmem:[%s1 + $0x6c] sm:$0xf]
  %v45 = vld [vmem:[%s1 + $0x70] sm:$0xf]
  %v46 = vld [vmem:[%s1 + $0x74] sm:$0xf]
  %v47 = vld [vmem:[%s1 + $0x78] sm:$0xf]
  %v48 = vld [vmem:[%s1 + $0x7c] sm:$0xf]
  %v49 = vld [vmem:[%s1 + $0x80] sm:$0xf]
  %v50 = vld [vmem:[%s1 + $0x84] sm:$0xf]
  %v51 = vld [vmem:[%s1 + $0x88] sm:$0xf]
  %v52 = vld [vmem:[%s1 + $0x8c] sm:$0xf]
  %v53 = vld [vmem:[%s1 + $0x90] sm:$0xf]
  %v54 = vld [vmem:[%s1 + $0x94] sm:$0xf]
  %v55 = vld [vmem:[%s1 + $0x98] sm:$0xf]
  %v56 = vld [vmem:[%s1 + $0x9c] sm:$0xf]
  %v57 = vld [vmem:[%s1 + $0xa0] sm:$0xf]
  %v58 = vld [vmem:[%s1 + $0xa4] sm:$0xf]
  %v59 = vld [vmem:[%s1 + $0xa8] sm:$0xf]
  %v60 = vld [vmem:[%s1 + $0xac] sm:$0xf]
  %v61 = vld [vmem:[%s1 + $0xb0] sm:$0xf]
  %v62 = vld [vmem:[%s1 + $0xb4] sm:$0xf]
  %v63 = vld [vmem:[%s1 + $0xb8] sm:$0xf]
  %v64 = vld [vmem:[%s1 + $0xbc] sm:$0xf]
  %v65 = vld [vmem:[%s1 + $0xc0] sm:$0xf]
  %v66 = vld [vmem:[%s1 + $0xc4] sm:$0xf]
  %v67 = vld [vmem:[%s1 + $0xc8] sm:$0xf]
  %v68 = vld [vmem:[%s1 + $0xcc] sm:$0xf]
  %v69 = vld [vmem:[%s1 + $0xd0] sm:$0xf]
  %v70 = vld [vmem:[%s1 + $0xd4] sm:$0xf]
  %v71 = vld [vmem:[%s1 + $0xd8] sm:$0xf]
  %v72 = vld [vmem:[%s1 + $0xdc] sm:$0xf]
  %v73 = vld [vmem:[%s1 + $0xe0] sm:$0xf]
  %v74 = vld [vmem:[%s1 + $0xe4] sm:$0xf]
  %v75 = vld [vmem:[%s1 + $0xe8] sm:$0xf]
  %v76 = vld [vmem:[%s1 + $0xec] sm:$0xf]
  %v77 = vld [vmem:[%s1 + $0xf0] sm:$0xf]
  %v78 = vld [vmem:[%s1 + $0xf4] sm:$0xf]
  %v79 = vld [vmem:[%s1 + $0xf8] sm:$0xf]
  %v80 = vld [vmem:[%s1 + $0xfc] sm:$0xf]
  %v81 = vld [vmem:[%s1 + $0x100] sm:$0xf]
  %v82 = vld [vmem:[%s1 + $0x104] sm:$0xf]
  %v83 = vld [vmem:[%s1 + $0x108] sm:$0xf]
  %v84 = vld [vmem:[%s1 + $0x10c] sm:$0xf]
  %v85 = vld [vmem:[%s1 + $0x110] sm:$0xf]
  %v86 = vld [vmem:[%s1 + $0x114] sm:$0xf]
  %v87 = vld [vmem:[%s1 + $0x118] sm:$0xf]
  %v88 = vld [vmem:[%s1 + $0x11c] sm:$0xf]
  %v89 = vld [vmem:[%s1 + $0x120] sm:$0xf]
  %v90 = vld [vmem:[%s1 + $0x124] sm:$0xf]
  %v91 = vld [vmem:[%s1 + $0x128] sm:$0xf]
  %v92 = vld [vmem:[%s1 + $0x12c] sm:$0xf]
  %v93 = vld [vmem:[%s1 + $0x130] sm:$0xf]
  %v94 = vld [vmem:[%s1 + $0x134] sm:$0xf]
  %v95 = vld [vmem:[%s1 + $0x138] sm:$0xf]
  %v96 = vld [vmem:[%s1 + $0x13c] sm:$0xf]
  %v97 = vld [vmem:[%s1 + $0x140] sm:$0xf]
  %v98 = vld [vmem:[%s1 + $0x144] sm:$0xf]
  %v99 = vld [vmem:[%s1 + $0x148] sm:$0xf]
  %v100 = vld [vmem:[%s1 + $0x14c] sm:$0xf]
  %v101 = vld [vmem:[%s1 + $0x150] sm:$0xf]
  %v102 = vld [vmem:[%s1 + $0x154] sm:$0xf]
  %v103 = vld [vmem:[%s1 + $0x158] sm:$0xf]
  %v104 = vld [vmem:[%s1 + $0x15c] sm:$0xf]
  %v105 = vld [vmem:[%s1 + $0x160] sm:$0xf]
  %v106 = vld [vmem:[%s1 + $0x164] sm:$0xf]
  %v107 = vld [vmem:[%s1 + $0x168] sm:$0xf]
  %v108 = vld [vmem:[%s1 + $0x16c] sm:$0xf]
  %v109 = vld [vmem:[%s1 + $0x170] sm:$0xf]
  %v110 = vld [vmem:[%s1 + $0x174] sm:$0xf]
  %v111 = vld [vmem:[%s1 + $0x178] sm:$0xf]
  %v112 = vld [vmem:[%s1 + $0x17c] sm:$0xf]
  %v113 = vld [vmem:[%s2] sm:$0x1]
  %v115 = vperm.slane %v113, 0
  %v120 = vunpack.c.l.b16 %v14
  %v121 = vunpack.c.h.b16 %v14
  %v122 = vunpack.c.l.b16 %v15
  %v123 = vunpack.c.h.b16 %v15
  %v124 = vunpack.c.l.b16 %v16
  %v125 = vunpack.c.h.b16 %v16
  %v126 = vpack.c.b16 %v120, %v120
  %v127 = vpack.c.b16 %v121, %v121
  %v128 = vpack.c.b16 %v122, %v122
  %v129 = vpack.c.b16 %v123, %v123
  %v130 = vpack.c.b16 %v124, %v124
  %v131 = vpack.c.b16 %v125, %v125
  %v234 = vunpack.c.l.b16 %v17
  %v235 = vunpack.c.l.b16 %v18
  %v236 = vunpack.c.l.b16 %v19
  %v237 = vunpack.c.l.b16 %v20
  %v238 = vunpack.c.l.b16 %v21
  %v239 = vunpack.c.l.b16 %v22
  %v240 = vunpack.c.l.b16 %v23
  %v241 = vunpack.c.l.b16 %v24
  %v242 = vunpack.c.l.b16 %v25
  %v243 = vunpack.c.l.b16 %v26
  %v244 = vunpack.c.l.b16 %v27
  %v245 = vunpack.c.l.b16 %v28
  %v246 = vunpack.c.l.b16 %v29
  %v247 = vunpack.c.l.b16 %v30
  %v248 = vunpack.c.l.b16 %v31
  %v249 = vunpack.c.l.b16 %v32
  %v250 = vunpack.c.l.b16 %v33
  %v251 = vunpack.c.l.b16 %v34
  %v252 = vunpack.c.l.b16 %v35
  %v253 = vunpack.c.l.b16 %v36
  %v254 = vunpack.c.l.b16 %v37
  %v255 = vunpack.c.l.b16 %v38
  %v256 = vunpack.c.l.b16 %v39
  %v257 = vunpack.c.l.b16 %v40
  %v258 = vunpack.c.l.b16 %v41
  %v259 = vunpack.c.l.b16 %v42
  %v260 = vunpack.c.l.b16 %v43
  %v261 = vunpack.c.l.b16 %v44
  %v262 = vunpack.c.l.b16 %v45
  %v263 = vunpack.c.l.b16 %v46
  %v264 = vunpack.c.l.b16 %v47
  %v265 = vunpack.c.l.b16 %v48
  %v266 = vunpack.c.l.b16 %v49
  %v267 = vunpack.c.l.b16 %v50
  %v268 = vunpack.c.l.b16 %v51
  %v269 = vunpack.c.l.b16 %v52
  %v270 = vunpack.c.l.b16 %v53
  %v271 = vunpack.c.l.b16 %v54
  %v272 = vunpack.c.l.b16 %v55
  %v273 = vunpack.c.l.b16 %v56
  %v274 = vunpack.c.l.b16 %v57
  %v275 = vunpack.c.l.b16 %v58
  %v276 = vunpack.c.l.b16 %v59
  %v277 = vunpack.c.l.b16 %v60
  %v278 = vunpack.c.l.b16 %v61
  %v279 = vunpack.c.l.b16 %v62
  %v280 = vunpack.c.l.b16 %v63
  %v281 = vunpack.c.l.b16 %v64
  %v282 = vunpack.c.l.b16 %v65
  %v283 = vunpack.c.l.b16 %v66
  %v284 = vunpack.c.l.b16 %v67
  %v285 = vunpack.c.l.b16 %v68
  %v286 = vunpack.c.l.b16 %v69
  %v287 = vunpack.c.l.b16 %v70
  %v288 = vunpack.c.l.b16 %v71
  %v289 = vunpack.c.l.b16 %v72
  %v290 = vunpack.c.l.b16 %v73
  %v291 = vunpack.c.l.b16 %v74
  %v292 = vunpack.c.l.b16 %v75
  %v293 = vunpack.c.l.b16 %v76
  %v294 = vunpack.c.l.b16 %v77
  %v295 = vunpack.c.l.b16 %v78
  %v296 = vunpack.c.l.b16 %v79
  %v297 = vunpack.c.l.b16 %v80
  %v298 = vunpack.c.l.b16 %v81
  %v299 = vunpack.c.l.b16 %v82
  %v300 = vunpack.c.l.b16 %v83
  %v301 = vunpack.c.l.b16 %v84
  %v302 = vunpack.c.l.b16 %v85
  %v303 = vunpack.c.l.b16 %v86
  %v304 = vunpack.c.l.b16 %v87
  %v305 = vunpack.c.l.b16 %v88
  %v306 = vunpack.c.l.b16 %v89
  %v307 = vunpack.c.l.b16 %v90
  %v308 = vunpack.c.l.b16 %v91
  %v309 = vunpack.c.l.b16 %v92
  %v310 = vunpack.c.l.b16 %v93
  %v311 = vunpack.c.l.b16 %v94
  %v312 = vunpack.c.l.b16 %v95
  %v313 = vunpack.c.l.b16 %v96
  %v314 = vunpack.c.l.b16 %v97
  %v315 = vunpack.c.l.b16 %v98
  %v316 = vunpack.c.l.b16 %v99
  %v317 = vunpack.c.l.b16 %v100
  %v318 = vunpack.c.l.b16 %v101
  %v319 = vunpack.c.l.b16 %v102
  %v320 = vunpack.c.l.b16 %v103
  %v321 = vunpack.c.l.b16 %v104
  %v322 = vunpack.c.l.b16 %v105
  %v323 = vunpack.c.l.b16 %v106
  %v324 = vunpack.c.l.b16 %v107
  %v325 = vunpack.c.l.b16 %v108
  %v326 = vunpack.c.l.b16 %v109
  %v327 = vunpack.c.l.b16 %v110
  %v328 = vunpack.c.l.b16 %v111
  %v329 = vunpack.c.l.b16 %v112
  %v330 = vpack.c.b16 %v235, %v234
  %v331 = vpack.c.b16 %v237, %v236
  %v332 = vpack.c.b16 %v239, %v238
  %v333 = vpack.c.b16 %v241, %v240
  %v334 = vpack.c.b16 %v243, %v242
  %v335 = vpack.c.b16 %v245, %v244
  %v336 = vpack.c.b16 %v247, %v246
  %v337 = vpack.c.b16 %v249, %v248
  %v338 = vpack.c.b16 %v251, %v250
  %v339 = vpack.c.b16 %v253, %v252
  %v340 = vpack.c.b16 %v255, %v254
  %v341 = vpack.c.b16 %v257, %v256
  %v342 = vpack.c.b16 %v259, %v258
  %v343 = vpack.c.b16 %v261, %v260
  %v344 = vpack.c.b16 %v263, %v262
  %v345 = vpack.c.b16 %v265, %v264
  %v346 = vpack.c.b16 %v267, %v266
  %v347 = vpack.c.b16 %v269, %v268
  %v348 = vpack.c.b16 %v271, %v270
  %v349 = vpack.c.b16 %v273, %v272
  %v350 = vpack.c.b16 %v275, %v274
  %v351 = vpack.c.b16 %v277, %v276
  %v352 = vpack.c.b16 %v279, %v278
  %v353 = vpack.c.b16 %v281, %v280
  %v354 = vpack.c.b16 %v283, %v282
  %v355 = vpack.c.b16 %v285, %v284
  %v356 = vpack.c.b16 %v287, %v286
  %v357 = vpack.c.b16 %v289, %v288
  %v358 = vpack.c.b16 %v291, %v290
  %v359 = vpack.c.b16 %v293, %v292
  %v360 = vpack.c.b16 %v295, %v294
  %v361 = vpack.c.b16 %v297, %v296
  %v362 = vpack.c.b16 %v299, %v298
  %v363 = vpack.c.b16 %v301, %v300
  %v364 = vpack.c.b16 %v303, %v302
  %v365 = vpack.c.b16 %v305, %v304
  %v366 = vpack.c.b16 %v307, %v306
  %v367 = vpack.c.b16 %v309, %v308
  %v368 = vpack.c.b16 %v311, %v310
  %v369 = vpack.c.b16 %v313, %v312
  %v370 = vpack.c.b16 %v315, %v314
  %v371 = vpack.c.b16 %v317, %v316
  %v372 = vpack.c.b16 %v319, %v318
  %v373 = vpack.c.b16 %v321, %v320
  %v374 = vpack.c.b16 %v323, %v322
  %v375 = vpack.c.b16 %v325, %v324
  %v376 = vpack.c.b16 %v327, %v326
  %v377 = vpack.c.b16 %v329, %v328
  %426 = vmatpush.bf16.msra.mxu0 %v337
  %427 = vmatpush.bf16.msra.mxu0 %v336
  %428 = vmatpush.bf16.msra.mxu0 %v335
  %429 = vmatpush.bf16.msra.mxu0 %v334
  %430 = vmatpush.bf16.msra.mxu0 %v333
  %431 = vmatpush.bf16.msra.mxu0 %v332
  %432 = vmatpush.bf16.msra.mxu0 %v331
  %433 = vmatpush.bf16.msra.mxu0 %v330
  %434 = vmatmul.bf16.gmra.mxu0 %v126
  %v435 = vpop.f32.mrf.mxu0
  %v436 = vadd.f32 %v115, %v435
  %v437 = vpop.f32.mrf.mxu0
  %438 = vdwg.mxu0
  %439 = vmatpush.bf16.msra.mxu0 %v345
  %440 = vmatpush.bf16.msra.mxu0 %v344
  %441 = vmatpush.bf16.msra.mxu0 %v343
  %442 = vmatpush.bf16.msra.mxu0 %v342
  %443 = vmatpush.bf16.msra.mxu0 %v341
  %444 = vmatpush.bf16.msra.mxu0 %v340
  %445 = vmatpush.bf16.msra.mxu0 %v339
  %446 = vmatpush.bf16.msra.mxu0 %v338
  %447 = vmatmul.bf16.gmra.mxu0 %v127
  %v448 = vpop.f32.mrf.mxu0
  %v449 = vadd.f32 %v436, %v448
  %v450 = vpop.f32.mrf.mxu0
  %451 = vdwg.mxu0
  %452 = vmatpush.bf16.msra.mxu0 %v353
  %453 = vmatpush.bf16.msra.mxu0 %v352
  %454 = vmatpush.bf16.msra.mxu0 %v351
  %455 = vmatpush.bf16.msra.mxu0 %v350
  %456 = vmatpush.bf16.msra.mxu0 %v349
  %457 = vmatpush.bf16.msra.mxu0 %v348
  %458 = vmatpush.bf16.msra.mxu0 %v347
  %459 = vmatpush.bf16.msra.mxu0 %v346
  %460 = vmatmul.bf16.gmra.mxu0 %v128
  %v461 = vpop.f32.mrf.mxu0
  %v462 = vadd.f32 %v449, %v461
  %v463 = vpop.f32.mrf.mxu0
  %464 = vdwg.mxu0
  %465 = vmatpush.bf16.msra.mxu0 %v361
  %466 = vmatpush.bf16.msra.mxu0 %v360
  %467 = vmatpush.bf16.msra.mxu0 %v359
  %468 = vmatpush.bf16.msra.mxu0 %v358
  %469 = vmatpush.bf16.msra.mxu0 %v357
  %470 = vmatpush.bf16.msra.mxu0 %v356
  %471 = vmatpush.bf16.msra.mxu0 %v355
  %472 = vmatpush.bf16.msra.mxu0 %v354
  %473 = vmatmul.bf16.gmra.mxu0 %v129
  %v474 = vpop.f32.mrf.mxu0
  %v475 = vadd.f32 %v462, %v474
  %v476 = vpop.f32.mrf.mxu0
  %477 = vdwg.mxu0
  %478 = vmatpush.bf16.msra.mxu0 %v369
  %479 = vmatpush.bf16.msra.mxu0 %v368
  %480 = vmatpush.bf16.msra.mxu0 %v367
  %481 = vmatpush.bf16.msra.mxu0 %v366
  %482 = vmatpush.bf16.msra.mxu0 %v365
  %483 = vmatpush.bf16.msra.mxu0 %v364
  %484 = vmatpush.bf16.msra.mxu0 %v363
  %485 = vmatpush.bf16.msra.mxu0 %v362
  %486 = vmatmul.bf16.gmra.mxu0 %v130
  %v487 = vpop.f32.mrf.mxu0
  %v488 = vadd.f32 %v475, %v487
  %v489 = vpop.f32.mrf.mxu0
  %490 = vdwg.mxu0
  %491 = vmatpush.bf16.msra.mxu0 %v377
  %492 = vmatpush.bf16.msra.mxu0 %v376
  %493 = vmatpush.bf16.msra.mxu0 %v375
  %494 = vmatpush.bf16.msra.mxu0 %v374
  %495 = vmatpush.bf16.msra.mxu0 %v373
  %496 = vmatpush.bf16.msra.mxu0 %v372
  %497 = vmatpush.bf16.msra.mxu0 %v371
  %498 = vmatpush.bf16.msra.mxu0 %v370
  %499 = vmatmul.bf16.gmra.mxu0 %v131
  %v500 = vpop.f32.mrf.mxu0
  %v501 = vadd.f32 %v488, %v500
  %v502 = vpop.f32.mrf.mxu0
  %503 = vdwg.mxu0
  %504 = vst [vmem:[%s3] sm:$0xff] %v501
  // Predicated region
  $region14: #{_lambda_.8} parent=0 // pred_check
    _
  $region15: #{_lambda_.8} parent=0 // pred_check_branch
    %506 = sbr.rel (0) target = $region17
  $region16: #{_lambda_.8} parent=0 // pred_region
    _
  $region17: #{_lambda_.8} parent=0 // pred_fallthru
    _
  // Predicated region
  $region18: #{_lambda_.8} parent=0 // pred_check
    _
  $region19: #{_lambda_.8} parent=0 // pred_check_branch
    %508 = sbr.rel (0) target = $region21
  $region20: #{_lambda_.8} parent=0 // pred_region
    _
  $region21: #{_lambda_.8} parent=0 // pred_fallthru
    _

// kernel: _lambda_.11
$region0: #{_lambda_.11}
  #allocation0 [shape = 'u32[]', space=smem, size = 0x4, offset = 0x4, fixed_abs, tag = 'smem constant byte address 0x4 - core index']
  #allocation1 [shape = 'u32[72,128]{1,0:T(1,128)}', space=vmem, size = 0x9000, scoped, tag = 'internal scratch']
  #allocation2 [shape = 'f32[8,128]{1,0:T(8,128)}', space=vmem, size = 0x1000, scoped, tag = 'scratch operand']
  #allocation3 [shape = 'bf16[8,128]{1,0:T(8,128)(2,1)}', space=vmem, size = 0x800, scoped, tag = 'scratch operand']
  #allocation4 [shape = 'f32[8,128]{1,0:T(8,128)}', space=vmem, size = 0x1000, scoped, tag = 'scratch operand']
  %s0 = inlined_call_operand.vmem [shape: f32[16,128], index: 0, kind: input, shape index: {}]
  %s1 = inlined_call_operand.vmem [shape: bf16[16,128], index: 1, kind: input, shape index: {}]
  %s2 = inlined_call_operand.hbm [shape: bf16[128,128], index: 2, kind: input, shape index: {}]
  %s3 = inlined_call_operand.vmem [shape: f32[1,128], index: 3, kind: input, shape index: {}, may-alias: {3,5,9}]
  %s4 = inlined_call_operand.vmem [shape: f32[1,128], index: 4, kind: input, shape index: {}]
  %s5 = inlined_call_operand.vmem [shape: f32[1,128], index: 5, kind: input, shape index: {}, may-alias: {3,5,9}]
  %s6 = inlined_call_operand.hbm [shape: bf16[128,512], index: 6, kind: input, shape index: {}]
  %s7 = inlined_call_operand.vmem [shape: f32[1,512], index: 7, kind: input, shape index: {}]
  %s8 = inlined_call_operand.hbm [shape: bf16[512,128], index: 8, kind: input, shape index: {}]
  %s9 = inlined_call_operand.vmem [shape: f32[1,128], index: 9, kind: input, shape index: {}, may-alias: {3,5,9}]
  %s10 = inlined_call_operand.vmem [shape: f32[16,128], index: 10, kind: output, shape index: {}]
  %s11 = sld [smem:[#allocation0]]
  $region93: #{_lambda_.11} parent=0
    _
  %s13 = ssub.s32 1, %s11
  %s14 = scalar_select 0, %s13, %s11
  $region1: #{_lambda_.11} parent=0
    #allocation5 [shape = 'u8[32768]{0}', space=vmem, size = 0x8000, scoped, tag = 'input window, operand 2, single buffered']
    #allocation6 [shape = 's32[2]{0}', space=sflag, size = 0x8, scoped, tag = 'scoped memory for _lambda_.11']
    #allocation7 [shape = 'u8[131072]{0}', space=vmem, size = 0x20000, scoped, tag = 'input window, operand 6']
    #allocation8 [shape = 's32[2]{0}', space=sflag, size = 0x8, scoped, tag = 'scoped memory for _lambda_.11']
    #allocation9 [shape = 'u8[131072]{0}', space=vmem, size = 0x20000, scoped, tag = 'input window, operand 8']
    %15 = vsyncpa [#allocation6], 0
    %16 = vsyncpa [#allocation8], 0
    %s17 = scalar_lea.sflag [#allocation8], 1
    %18 = vsyncpa %s17, 0
    loop: start=0, step=1, limit=6
    $region2: #{_lambda_.11} parent=1 // loop_pre_header
      _
    $region3: #{_lambda_.11} parent=1 // loop_header
      %s20 = sphi 0, %s24
      %p21 = scmp.ge.s32.totalorder %s20, 6
      %s27 = sphi 0, %s39
      %s28 = sphi 0, %s35
      %s29 = sphi 0, %s27
      %s30 = sphi 0, %s28
      %s31 = sphi 0, %s29
      %s32 = sphi 0, %s30
      %s42 = sphi 0, %s44
      %s45 = sphi 0, %s42
      %s46 = sphi 0, %s45
      %s62 = sphi 0, %s46
      %s68 = sphi 0, %s70
      %s71 = sphi 0, %s68
      %s72 = sphi 0, %s71
      %s88 = sphi 0, %s72
      %s92 = sphi 0, %s92
      %s94 = sphi 0, %s92
      %s95 = sphi 0, %s94
      %s109 = sphi 0, %s95
      %s113 = sphi 0, %s113
      %s115 = sphi 0, %s113
      %s116 = sphi 0, %s115
      %s130 = sphi 0, %s116
      %s134 = sphi 0, %s134
      %s136 = sphi 0, %s134
      %s137 = sphi 0, %s136
      %s151 = sphi 0, %s137
      %s155 = sphi 0, %s155
      %s157 = sphi 0, %s155
      %s158 = sphi 0, %s157
      %s172 = sphi 0, %s158
      %s178 = sphi 0, %s180
      %s181 = sphi 0, %s178
      %s182 = sphi 0, %s181
      %s198 = sphi 0, %s182
      %s204 = sphi 0, %s206
      %s207 = sphi 0, %s204
      %s208 = sphi 0, %s207
      %s224 = sphi 0, %s208
      %s230 = sphi 0, %s232
      %s233 = sphi 0, %s230
      %s234 = sphi 0, %s233
      %s250 = sphi 0, %s234
      %s254 = sphi 0, %s254
      %s256 = sphi 0, %s254
      %s257 = sphi 0, %s256
      %s271 = sphi 0, %s257
      %s277 = sphi 0, %s279
      %s280 = sphi 0, %s277
      %s281 = sphi 0, %s280
      %s297 = sphi 0, %s281
    $region4: #{_lambda_.11} parent=1 // loop_header_branch
      %23 = sbr.rel (%p21) target = $region8
    $region5: #{_lambda_.11} parent=1 // loop_body
      %s25 = ssub.s32 %s20, 1
      %s26 = ssub.s32 %s20, 2
      %s33 = sadd.s32 1, %s28
      %p34 = scmp.ge.s32.totalorder %s33, 2
      %s35 = scalar_select %p34, 0, %s33
      %s36 = sadd.s32 1, %s27
      %s37 = scalar_select %p34, %s36, %s27
      %p38 = scmp.ge.s32.totalorder %s37, 2
      %s39 = scalar_select %p38, 0, %s37
      %s40 = ssub.s32 %s27, %s39
      %p41 = scmp.eq.s32.totalorder %s40, 0
      %s43 = sadd.s32 %s42, 1
      %s44 = scalar_select %p41, %s42, %s43
      %p47 = pneg %p41
      %p48 = scmp.eq.s32.totalorder %s20, 3
      %p49 = por %p47, %p48
      %p50 = scmp.ne.s32.totalorder %s42, %s45
      %p51 = scmp.eq.s32.totalorder %s20, 0
      %p52 = por %p50, %p51
      %p53 = scmp.ne.s32.totalorder %s42, %s45
      %p54 = scmp.eq.s32.totalorder %s25, 3
      %p55 = por %p53, %p54
      %p56 = scmp.ne.s32.totalorder %s45, %s46
      %p57 = scmp.eq.s32.totalorder %s25, 0
      %p58 = por %p56, %p57
      %p59 = scmp.ne.s32.totalorder %s45, %s46
      %p60 = scmp.eq.s32.totalorder %s26, 3
      %p61 = por %p59, %p60
      %p63 = scmp.ne.s32.totalorder %s46, %s62
      %p64 = scmp.eq.s32.totalorder %s26, 0
      %p65 = por %p63, %p64
      %s66 = ssub.s32 %s27, %s39
      %p67 = scmp.eq.s32.totalorder %s66, 0
      %s69 = sadd.s32 %s68, 1
      %s70 = scalar_select %p67, %s68, %s69
      %p73 = pneg %p67
      %p74 = scmp.eq.s32.totalorder %s20, 3
      %p75 = por %p73, %p74
      %p76 = scmp.ne.s32.totalorder %s68, %s71
      %p77 = scmp.eq.s32.totalorder %s20, 0
      %p78 = por %p76, %p77
      %p79 = scmp.ne.s32.totalorder %s68, %s71
      %p80 = scmp.eq.s32.totalorder %s25, 3
      %p81 = por %p79, %p80
      %p82 = scmp.ne.s32.totalorder %s71, %s72
      %p83 = scmp.eq.s32.totalorder %s25, 0
      %p84 = por %p82, %p83
      %p85 = scmp.ne.s32.totalorder %s71, %s72
      %p86 = scmp.eq.s32.totalorder %s26, 3
      %p87 = por %p85, %p86
      %p89 = scmp.ne.s32.totalorder %s72, %s88
      %p90 = scmp.eq.s32.totalorder %s26, 0
      %p91 = por %p89, %p90
      %s93 = sadd.s32 %s92, 1
      %p96 = scmp.eq.s32.totalorder %s20, 3
      %p97 = scmp.ne.s32.totalorder %s92, %s94
      %p98 = scmp.eq.s32.totalorder %s20, 0
      %p99 = por %p97, %p98
      %p100 = scmp.ne.s32.totalorder %s92, %s94
      %p101 = scmp.eq.s32.totalorder %s25, 3
      %p102 = por %p100, %p101
      %p103 = scmp.ne.s32.totalorder %s94, %s95
      %p104 = scmp.eq.s32.totalorder %s25, 0
      %p105 = por %p103, %p104
      %p106 = scmp.ne.s32.totalorder %s94, %s95
      %p107 = scmp.eq.s32.totalorder %s26, 3
      %p108 = por %p106, %p107
      %p110 = scmp.ne.s32.totalorder %s95, %s109
      %p111 = scmp.eq.s32.totalorder %s26, 0
      %p112 = por %p110, %p111
      %s114 = sadd.s32 %s113, 1
      %p117 = scmp.eq.s32.totalorder %s20, 3
      %p118 = scmp.ne.s32.totalorder %s113, %s115
      %p119 = scmp.eq.s32.totalorder %s20, 0
      %p120 = por %p118, %p119
      %p121 = scmp.ne.s32.totalorder %s113, %s115
      %p122 = scmp.eq.s32.totalorder %s25, 3
      %p123 = por %p121, %p122
      %p124 = scmp.ne.s32.totalorder %s115, %s116
      %p125 = scmp.eq.s32.totalorder %s25, 0
      %p126 = por %p124, %p125
      %p127 = scmp.ne.s32.totalorder %s115, %s116
      %p128 = scmp.eq.s32.totalorder %s26, 3
      %p129 = por %p127, %p128
      %p131 = scmp.ne.s32.totalorder %s116, %s130
      %p132 = scmp.eq.s32.totalorder %s26, 0
      %p133 = por %p131, %p132
      %s135 = sadd.s32 %s134, 1
      %p138 = scmp.eq.s32.totalorder %s20, 3
      %p139 = scmp.ne.s32.totalorder %s134, %s136
      %p140 = scmp.eq.s32.totalorder %s20, 0
      %p141 = por %p139, %p140
      %p142 = scmp.ne.s32.totalorder %s134, %s136
      %p143 = scmp.eq.s32.totalorder %s25, 3
      %p144 = por %p142, %p143
      %p145 = scmp.ne.s32.totalorder %s136, %s137
      %p146 = scmp.eq.s32.totalorder %s25, 0
      %p147 = por %p145, %p146
      %p148 = scmp.ne.s32.totalorder %s136, %s137
      %p149 = scmp.eq.s32.totalorder %s26, 3
      %p150 = por %p148, %p149
      %p152 = scmp.ne.s32.totalorder %s137, %s151
      %p153 = scmp.eq.s32.totalorder %s26, 0
      %p154 = por %p152, %p153
      %s156 = sadd.s32 %s155, 1
      %p159 = scmp.eq.s32.totalorder %s20, 3
      %p160 = scmp.ne.s32.totalorder %s155, %s157
      %p161 = scmp.eq.s32.totalorder %s20, 0
      %p162 = por %p160, %p161
      %p163 = scmp.ne.s32.totalorder %s155, %s157
      %p164 = scmp.eq.s32.totalorder %s25, 3
      %p165 = por %p163, %p164
      %p166 = scmp.ne.s32.totalorder %s157, %s158
      %p167 = scmp.eq.s32.totalorder %s25, 0
      %p168 = por %p166, %p167
      %p169 = scmp.ne.s32.totalorder %s157, %s158
      %p170 = scmp.eq.s32.totalorder %s26, 3
      %p171 = por %p169, %p170
      %p173 = scmp.ne.s32.totalorder %s158, %s172
      %p174 = scmp.eq.s32.totalorder %s26, 0
      %p175 = por %p173, %p174
      %s176 = ssub.s32 %s28, %s35
      %p177 = scmp.eq.s32.totalorder %s176, 0
      %s179 = sadd.s32 %s178, 1
      %s180 = scalar_select %p177, %s178, %s179
      %p183 = pneg %p177
      %p184 = scmp.eq.s32.totalorder %s20, 3
      %p185 = por %p183, %p184
      %p186 = scmp.ne.s32.totalorder %s178, %s181
      %p187 = scmp.eq.s32.totalorder %s20, 0
      %p188 = por %p186, %p187
      %p189 = scmp.ne.s32.totalorder %s178, %s181
      %p190 = scmp.eq.s32.totalorder %s25, 3
      %p191 = por %p189, %p190
      %p192 = scmp.ne.s32.totalorder %s181, %s182
      %p193 = scmp.eq.s32.totalorder %s25, 0
      %p194 = por %p192, %p193
      %p195 = scmp.ne.s32.totalorder %s181, %s182
      %p196 = scmp.eq.s32.totalorder %s26, 3
      %p197 = por %p195, %p196
      %p199 = scmp.ne.s32.totalorder %s182, %s198
      %p200 = scmp.eq.s32.totalorder %s26, 0
      %p201 = por %p199, %p200
      %s202 = ssub.s32 %s28, %s35
      %p203 = scmp.eq.s32.totalorder %s202, 0
      %s205 = sadd.s32 %s204, 1
      %s206 = scalar_select %p203, %s204, %s205
      %p209 = pneg %p203
      %p210 = scmp.eq.s32.totalorder %s20, 3
      %p211 = por %p209, %p210
      %p212 = scmp.ne.s32.totalorder %s204, %s207
      %p213 = scmp.eq.s32.totalorder %s20, 0
      %p214 = por %p212, %p213
      %p215 = scmp.ne.s32.totalorder %s204, %s207
      %p216 = scmp.eq.s32.totalorder %s25, 3
      %p217 = por %p215, %p216
      %p218 = scmp.ne.s32.totalorder %s207, %s208
      %p219 = scmp.eq.s32.totalorder %s25, 0
      %p220 = por %p218, %p219
      %p221 = scmp.ne.s32.totalorder %s207, %s208
      %p222 = scmp.eq.s32.totalorder %s26, 3
      %p223 = por %p221, %p222
      %p225 = scmp.ne.s32.totalorder %s208, %s224
      %p226 = scmp.eq.s32.totalorder %s26, 0
      %p227 = por %p225, %p226
      %s228 = ssub.s32 %s28, %s35
      %p229 = scmp.eq.s32.totalorder %s228, 0
      %s231 = sadd.s32 %s230, 1
      %s232 = scalar_select %p229, %s230, %s231
      %p235 = pneg %p229
      %p236 = scmp.eq.s32.totalorder %s20, 3
      %p237 = por %p235, %p236
      %p238 = scmp.ne.s32.totalorder %s230, %s233
      %p239 = scmp.eq.s32.totalorder %s20, 0
      %p240 = por %p238, %p239
      %p241 = scmp.ne.s32.totalorder %s230, %s233
      %p242 = scmp.eq.s32.totalorder %s25, 3
      %p243 = por %p241, %p242
      %p244 = scmp.ne.s32.totalorder %s233, %s234
      %p245 = scmp.eq.s32.totalorder %s25, 0
      %p246 = por %p244, %p245
      %p247 = scmp.ne.s32.totalorder %s233, %s234
      %p248 = scmp.eq.s32.totalorder %s26, 3
      %p249 = por %p247, %p248
      %p251 = scmp.ne.s32.totalorder %s234, %s250
      %p252 = scmp.eq.s32.totalorder %s26, 0
      %p253 = por %p251, %p252
      %s255 = sadd.s32 %s254, 1
      %p258 = scmp.eq.s32.totalorder %s20, 3
      %p259 = scmp.ne.s32.totalorder %s254, %s256
      %p260 = scmp.eq.s32.totalorder %s20, 0
      %p261 = por %p259, %p260
      %p262 = scmp.ne.s32.totalorder %s254, %s256
      %p263 = scmp.eq.s32.totalorder %s25, 3
      %p264 = por %p262, %p263
      %p265 = scmp.ne.s32.totalorder %s256, %s257
      %p266 = scmp.eq.s32.totalorder %s25, 0
      %p267 = por %p265, %p266
      %p268 = scmp.ne.s32.totalorder %s256, %s257
      %p269 = scmp.eq.s32.totalorder %s26, 3
      %p270 = por %p268, %p269
      %p272 = scmp.ne.s32.totalorder %s257, %s271
      %p273 = scmp.eq.s32.totalorder %s26, 0
      %p274 = por %p272, %p273
      %s275 = ssub.s32 %s27, %s39
      %p276 = scmp.eq.s32.totalorder %s275, 0
      %s278 = sadd.s32 %s277, 1
      %s279 = scalar_select %p276, %s277, %s278
      %p282 = pneg %p276
      %p283 = scmp.eq.s32.totalorder %s20, 3
      %p284 = por %p282, %p283
      %p285 = scmp.ne.s32.totalorder %s277, %s280
      %p286 = scmp.eq.s32.totalorder %s20, 0
      %p287 = por %p285, %p286
      %p288 = scmp.ne.s32.totalorder %s277, %s280
      %p289 = scmp.eq.s32.totalorder %s25, 3
      %p290 = por %p288, %p289
      %p291 = scmp.ne.s32.totalorder %s280, %s281
      %p292 = scmp.eq.s32.totalorder %s25, 0
      %p293 = por %p291, %p292
      %p294 = scmp.ne.s32.totalorder %s280, %s281
      %p295 = scmp.eq.s32.totalorder %s26, 3
      %p296 = por %p294, %p295
      %p298 = scmp.ne.s32.totalorder %s281, %s297
      %p299 = scmp.eq.s32.totalorder %s26, 0
      %p300 = por %p298, %p299
      %p301 = scmp.le.s32.totalorder 1, %s20
      %p302 = scmp.lt.s32.totalorder %s20, 5
      %p303 = pnand %p301, %p302
      %p304 = pneg %p303
      // Predicated region
      $region9: #{_lambda_.11} parent=5 // pred_check
        _
      $region10: #{_lambda_.11} parent=5 // pred_check_branch
        %306 = sbr.rel (%p303) target = $region12
      $region11: #{_lambda_.11} parent=5 // pred_region
        %s307 = ssub.s32 %s20, 1
        // Predicated region
        $region13: #{_lambda_.11} parent=11 // pred_check
          %p308 = pneg %p105
        $region14: #{_lambda_.11} parent=11 // pred_check_branch
          %310 = sbr.rel (%p308) target = $region16
        $region15: #{_lambda_.11} parent=11 // pred_region
          %312 = vsyncadd [#allocation6], 0
          %s313 = sshll.u32 %s2, 4
          %s314 = int_to_ptr.hbm [resolvable:$true] %s313
          %s315 = sshll.u32 [#allocation5], 4
          %s316 = int_to_ptr.vmem [resolvable:$true] %s315
          %321 = dma.hbm_to_vmem [thread:$0]  %s314, 1024, %s316, [#allocation6], 64, 64, 4
        $region16: #{_lambda_.11} parent=11 // pred_fallthru
          _
        // Predicated region
        $region17: #{_lambda_.11} parent=11 // pred_check
          %p322 = pneg %p126
        $region18: #{_lambda_.11} parent=11 // pred_check_branch
          %324 = sbr.rel (%p322) target = $region20
        $region19: #{_lambda_.11} parent=11 // pred_region
          _
        $region20: #{_lambda_.11} parent=11 // pred_fallthru
          _
        // Predicated region
        $region21: #{_lambda_.11} parent=11 // pred_check
          %p325 = pneg %p147
        $region22: #{_lambda_.11} parent=11 // pred_check_branch
          %327 = sbr.rel (%p325) target = $region24
        $region23: #{_lambda_.11} parent=11 // pred_region
          _
        $region24: #{_lambda_.11} parent=11 // pred_fallthru
          _
        // Predicated region
        $region25: #{_lambda_.11} parent=11 // pred_check
          %p328 = pneg %p168
        $region26: #{_lambda_.11} parent=11 // pred_check_branch
          %330 = sbr.rel (%p328) target = $region28
        $region27: #{_lambda_.11} parent=11 // pred_region
          _
        $region28: #{_lambda_.11} parent=11 // pred_fallthru
          _
        // Predicated region
        $region29: #{_lambda_.11} parent=11 // pred_check
          %p331 = pneg %p267
        $region30: #{_lambda_.11} parent=11 // pred_check_branch
          %333 = sbr.rel (%p331) target = $region32
        $region31: #{_lambda_.11} parent=11 // pred_region
          _
        $region32: #{_lambda_.11} parent=11 // pred_fallthru
          _
      $region12: #{_lambda_.11} parent=5 // pred_fallthru
        _
      %p334 = scmp.lt.s32.totalorder %s20, 4
      // Predicated region
      $region33: #{_lambda_.11} parent=5 // pred_check
        %p335 = pneg %p334
      $region34: #{_lambda_.11} parent=5 // pred_check_branch
        %337 = sbr.rel (%p335) target = $region36
      $region35: #{_lambda_.11} parent=5 // pred_region
        // Predicated region
        $region37: #{_lambda_.11} parent=35 // pred_check
          %p338 = pneg %p52
        $region38: #{_lambda_.11} parent=35 // pred_check_branch
          %340 = sbr.rel (%p338) target = $region40
        $region39: #{_lambda_.11} parent=35 // pred_region
          %p341 = scmp.lt.s32.totalorder %s27, 1
          %s342 = scalar_select %p341, %s27, 1
          %s343 = smul.addr %s342, 8
          %s344 = scalar_lea.vmem %s0, %s343
        $region40: #{_lambda_.11} parent=35 // pred_fallthru
          _
        // Predicated region
        $region41: #{_lambda_.11} parent=35 // pred_check
          %p345 = pneg %p78
        $region42: #{_lambda_.11} parent=35 // pred_check_branch
          %347 = sbr.rel (%p345) target = $region44
        $region43: #{_lambda_.11} parent=35 // pred_region
          %p348 = scmp.lt.s32.totalorder %s27, 1
          %s349 = scalar_select %p348, %s27, 1
          %s350 = smul.addr %s349, 4
          %s351 = scalar_lea.vmem %s1, %s350
        $region44: #{_lambda_.11} parent=35 // pred_fallthru
          _
        // Predicated region
        $region45: #{_lambda_.11} parent=35 // pred_check
          %p352 = pneg %p188
        $region46: #{_lambda_.11} parent=35 // pred_check_branch
          %354 = sbr.rel (%p352) target = $region48
        $region47: #{_lambda_.11} parent=35 // pred_region
          %s355 = sand.u32 %s20, 1
          %s356 = scalar_lea.sflag [#allocation8], %s355
          %s357 = sand.u32 %s178, 1
          %s358 = smul.addr %s357, 128
          %s359 = scalar_lea.vmem [#allocation7], %s358
          %s360 = smul.u32 2, %s28
          %362 = vsyncadd %s356, 0
          %s363 = smul.addr %s360, 4
          %s364 = scalar_lea.hbm %s6, %s363
          %s365 = sshll.u32 %s364, 4
          %s366 = int_to_ptr.hbm [resolvable:$true] %s365
          %s367 = sshll.u32 %s359, 4
          %s368 = int_to_ptr.vmem [resolvable:$true] %s367
          %373 = dma.hbm_to_vmem [thread:$0]  %s366, 2048, %s368, %s356, 256, 128, 8
        $region48: #{_lambda_.11} parent=35 // pred_fallthru
          _
        // Predicated region
        $region49: #{_lambda_.11} parent=35 // pred_check
          %p374 = pneg %p214
        $region50: #{_lambda_.11} parent=35 // pred_check_branch
          %376 = sbr.rel (%p374) target = $region52
        $region51: #{_lambda_.11} parent=35 // pred_region
          %s377 = smul.u32 2, %s28
          %p378 = scmp.lt.s32.totalorder %s377, 3
          %s379 = scalar_select %p378, %s377, 3
          %s380 = scalar_lea.vmem %s7, %s379
          %s381 = smul.u32 2, %s28
        $region52: #{_lambda_.11} parent=35 // pred_fallthru
          _
        // Predicated region
        $region53: #{_lambda_.11} parent=35 // pred_check
          %p382 = pneg %p240
        $region54: #{_lambda_.11} parent=35 // pred_check_branch
          %384 = sbr.rel (%p382) target = $region56
        $region55: #{_lambda_.11} parent=35 // pred_region
          %s385 = sand.u32 %s20, 1
          %s386 = scalar_lea.sflag [#allocation8], %s385
          %s387 = sand.u32 %s230, 1
          %s388 = smul.addr %s387, 128
          %s389 = scalar_lea.vmem [#allocation9], %s388
          %s390 = smul.u32 32, %s28
          %392 = vsyncadd %s386, 0
          %s393 = smul.addr %s390, 4
          %s394 = scalar_lea.hbm %s8, %s393
          %s395 = sshll.u32 %s394, 4
          %s396 = int_to_ptr.hbm [resolvable:$true] %s395
          %s397 = sshll.u32 %s389, 4
          %s398 = int_to_ptr.vmem [resolvable:$true] %s397
          %403 = dma.hbm_to_vmem [thread:$0]  %s396, 2048, %s398, %s386, 64, 64, 4
        $region56: #{_lambda_.11} parent=35 // pred_fallthru
          _
      $region36: #{_lambda_.11} parent=5 // pred_fallthru
        _
      %p404 = scmp.le.s32.totalorder 1, %s20
      %p405 = scmp.lt.s32.totalorder %s20, 5
      %p406 = pnand %p404, %p405
      %p407 = pneg %p406
      // Predicated region
      $region57: #{_lambda_.11} parent=5 // pred_check
        _
      $region58: #{_lambda_.11} parent=5 // pred_check_branch
        %409 = sbr.rel (%p406) target = $region60
      $region59: #{_lambda_.11} parent=5 // pred_region
        %s410 = ssub.s32 %s20, 1
        // Predicated region
        $region61: #{_lambda_.11} parent=59 // pred_check
          %p411 = pneg %p105
        $region62: #{_lambda_.11} parent=59 // pred_check_branch
          %413 = sbr.rel (%p411) target = $region64
        $region63: #{_lambda_.11} parent=59 // pred_region
          %415 = dma.done [#allocation6], 1024
        $region64: #{_lambda_.11} parent=59 // pred_fallthru
          _
        %s416 = sand.u32 %s25, 1
        %s417 = scalar_lea.sflag [#allocation8], %s416
        %s418 = sand.u32 %s181, 1
        %s419 = smul.addr %s418, 128
        %s420 = scalar_lea.vmem [#allocation7], %s419
        // Predicated region
        $region65: #{_lambda_.11} parent=59 // pred_check
          %p421 = pneg %p194
        $region66: #{_lambda_.11} parent=59 // pred_check_branch
          %423 = sbr.rel (%p421) target = $region68
        $region67: #{_lambda_.11} parent=59 // pred_region
          %425 = dma.done %s417, 2048
        $region68: #{_lambda_.11} parent=59 // pred_fallthru
          _
        %s426 = sand.u32 %s25, 1
        %s427 = scalar_lea.sflag [#allocation8], %s426
        %s428 = sand.u32 %s233, 1
        %s429 = smul.addr %s428, 128
        %s430 = scalar_lea.vmem [#allocation9], %s429
        // Predicated region
        $region69: #{_lambda_.11} parent=59 // pred_check
          %p431 = pneg %p246
        $region70: #{_lambda_.11} parent=59 // pred_check_branch
          %433 = sbr.rel (%p431) target = $region72
        $region71: #{_lambda_.11} parent=59 // pred_region
          %435 = dma.done %s427, 2048
        $region72: #{_lambda_.11} parent=59 // pred_fallthru
          _
        %p436 = scmp.lt.s32.totalorder %s29, 1
        %s437 = scalar_select %p436, %s29, 1
        %s438 = smul.addr %s437, 8
        %s439 = scalar_lea.vmem %s0, %s438
        %p440 = pneg %p58
        %p441 = pneg %p55
        %p442 = scmp.lt.s32.totalorder %s29, 1
        %s443 = scalar_select %p442, %s29, 1
        %s444 = smul.addr %s443, 4
        %s445 = scalar_lea.vmem %s1, %s444
        %p446 = pneg %p84
        %p447 = pneg %p81
        %p448 = pneg %p105
        %p449 = pneg %p102
        %p450 = pneg %p126
        %p451 = pneg %p123
        %p452 = pneg %p147
        %p453 = pneg %p144
        %p454 = pneg %p168
        %p455 = pneg %p165
        %s456 = sand.u32 %s25, 1
        %s457 = scalar_lea.sflag [#allocation8], %s456
        %s458 = sand.u32 %s181, 1
        %s459 = smul.addr %s458, 128
        %s460 = scalar_lea.vmem [#allocation7], %s459
        %p461 = pneg %p194
        %p462 = pneg %p191
        %s463 = smul.u32 2, %s30
        %p464 = scmp.lt.s32.totalorder %s463, 3
        %s465 = scalar_select %p464, %s463, 3
        %s466 = scalar_lea.vmem %s7, %s465
        %p467 = pneg %p220
        %p468 = pneg %p217
        %s469 = sand.u32 %s25, 1
        %s470 = scalar_lea.sflag [#allocation8], %s469
        %s471 = sand.u32 %s233, 1
        %s472 = smul.addr %s471, 128
        %s473 = scalar_lea.vmem [#allocation9], %s472
        %p474 = pneg %p246
        %p475 = pneg %p243
        %p476 = pneg %p267
        %p477 = pneg %p264
        %p478 = pneg %p293
        %p479 = pneg %p290
        %p480 = scmp.lt.s32.totalorder %s29, 1
        %s481 = scalar_select %p480, %s29, 1
        %s482 = smul.addr %s481, 8
        %s483 = scalar_lea.vmem %s10, %s482
        %p484 = scmp.lt.s32.totalorder %s29, 1
        %s485 = scalar_select %p484, %s29, 1
        %s486 = smul.addr %s485, 8
        %s487 = scalar_lea.vmem %s0, %s486
        %p488 = scmp.lt.s32.totalorder %s29, 1
        %s489 = scalar_select %p488, %s29, 1
        %s490 = smul.addr %s489, 4
        %s491 = scalar_lea.vmem %s1, %s490
        %s492 = smul.u32 2, %s30
        %s493 = smul.u32 2, %s30
        %p494 = scmp.lt.s32.totalorder %s493, 3
        %s495 = scalar_select %p494, %s493, 3
        %s496 = scalar_lea.vmem %s7, %s495
        %s497 = smul.u32 2, %s30
        %s498 = smul.u32 32, %s30
        %p499 = scmp.lt.s32.totalorder %s29, 1
        %s500 = scalar_select %p499, %s29, 1
        %s501 = smul.addr %s500, 8
        %s502 = scalar_lea.vmem %s10, %s501
        %p503 = scmp.eq.s32.totalorder %s30, 0
        // Predicated region
        $region73: #{_lambda_.11} parent=59 // pred_check
          %p504 = pneg %p503
        $region74: #{_lambda_.11} parent=59 // pred_check_branch
          %506 = sbr.rel (%p504) target = $region76
        $region75: #{_lambda_.11} parent=59 // pred_region
          %v507 = vld [vmem:[%s491] sm:$0xf]
          %v508 = vld [vmem:[#allocation5] sm:$0xf]
          %v509 = vld [vmem:[#allocation5 + $0x4] sm:$0xf]
          %v510 = vld [vmem:[#allocation5 + $0x8] sm:$0xf]
          %v511 = vld [vmem:[#allocation5 + $0xc] sm:$0xf]
          %v512 = vld [vmem:[#allocation5 + $0x10] sm:$0xf]
          %v513 = vld [vmem:[#allocation5 + $0x14] sm:$0xf]
          %v514 = vld [vmem:[#allocation5 + $0x18] sm:$0xf]
          %v515 = vld [vmem:[#allocation5 + $0x1c] sm:$0xf]
          %v516 = vld [vmem:[#allocation5 + $0x20] sm:$0xf]
          %v517 = vld [vmem:[#allocation5 + $0x24] sm:$0xf]
          %v518 = vld [vmem:[#allocation5 + $0x28] sm:$0xf]
          %v519 = vld [vmem:[#allocation5 + $0x2c] sm:$0xf]
          %v520 = vld [vmem:[#allocation5 + $0x30] sm:$0xf]
          %v521 = vld [vmem:[#allocation5 + $0x34] sm:$0xf]
          %v522 = vld [vmem:[#allocation5 + $0x38] sm:$0xf]
          %v523 = vld [vmem:[#allocation5 + $0x3c] sm:$0xf]
          %v524 = vld [vmem:[%s3] sm:$0x1]
          %v526 = vperm.slane %v524, 0
          %v544 = vunpack.c.l.b16 %v508
          %v545 = vunpack.c.l.b16 %v509
          %v546 = vunpack.c.l.b16 %v510
          %v547 = vunpack.c.l.b16 %v511
          %v548 = vunpack.c.l.b16 %v512
          %v549 = vunpack.c.l.b16 %v513
          %v550 = vunpack.c.l.b16 %v514
          %v551 = vunpack.c.l.b16 %v515
          %v552 = vunpack.c.l.b16 %v516
          %v553 = vunpack.c.l.b16 %v517
          %v554 = vunpack.c.l.b16 %v518
          %v555 = vunpack.c.l.b16 %v519
          %v556 = vunpack.c.l.b16 %v520
          %v557 = vunpack.c.l.b16 %v521
          %v558 = vunpack.c.l.b16 %v522
          %v559 = vunpack.c.l.b16 %v523
          %v560 = vpack.c.b16 %v545, %v544
          %v561 = vpack.c.b16 %v547, %v546
          %v562 = vpack.c.b16 %v549, %v548
          %v563 = vpack.c.b16 %v551, %v550
          %v564 = vpack.c.b16 %v553, %v552
          %v565 = vpack.c.b16 %v555, %v554
          %v566 = vpack.c.b16 %v557, %v556
          %v567 = vpack.c.b16 %v559, %v558
          %576 = vmatpush.bf16.msra.mxu0 %v567
          %577 = vmatpush.bf16.msra.mxu0 %v566
          %578 = vmatpush.bf16.msra.mxu0 %v565
          %579 = vmatpush.bf16.msra.mxu0 %v564
          %580 = vmatpush.bf16.msra.mxu0 %v563
          %581 = vmatpush.bf16.msra.mxu0 %v562
          %582 = vmatpush.bf16.msra.mxu0 %v561
          %583 = vmatpush.bf16.msra.mxu0 %v560
          %584 = vmatmul.bf16.gmra.mxu0 %v507
          %v585 = vpop.f32.mrf.mxu0
          %v586 = vadd.f32 %v526, %v585
          %v587 = vpop.f32.mrf.mxu0
          %588 = vdwg.mxu0
          %v589 = vld [vmem:[%s487] sm:$0xff]
          %v590 = vadd.f32 %v589, %v586
          %591 = vst [vmem:[#allocation2] sm:$0xff] %v590
          %v592 = vld [vmem:[%s4] sm:$0x1]
          %v593 = vld [vmem:[%s5] sm:$0x1]
          %594 = vadd.xlane.f32.xlu0 %v590
          %v595 = vpop.xlane.xlu0 %594
          %v596 = vrcp.pop 128.0
          %v597 = vmul.f32 128.0, %v596
          %v598 = vsub.f32 1.0, %v597
          %v599 = vmul.f32 %v596, %v598
          %v600 = vadd.f32 %v596, %v599
          %vm601 = vweird.f32 %v596
          %v602 = vsel %vm601, %v596, %v600
          %v603 = vmul.f32 %v595, %v602
          %v604 = vsub.f32 %v590, %v603
          %v605 = vmul.f32 %v604, %v604
          %606 = vadd.xlane.f32.xlu0 %v605
          %v607 = vpop.xlane.xlu0 %606
          %v608 = vmul.f32 %v607, %v602
          %v609 = vadd.f32 %v608, 1e-06
          %v610 = vrsqrt.pop %v609
          %v611 = vmul.f32 %v610, %v609
          %v612 = vmul.f32 %v611, %v610
          %v613 = vmul.f32 0.5, %v612
          %v614 = vsub.f32 1.5, %v613
          %v615 = vmul.f32 %v610, %v614
          %vm616 = vweird.f32 %v609
          %vm617 = vweird.f32 %v610
          %vm618 = vmor %vm616, %vm617
          %v619 = vsel %vm618, %v610, %v615
          %v620 = vmul.f32 %v604, %v619
          %v622 = vperm.slane %v592, 0
          %v624 = vmul.f32 %v620, %v622
          %v626 = vperm.slane %v593, 0
          %v628 = vadd.f32 %v624, %v626
          %v629 = vpack.c.bf16 %v628, %v628
          %630 = vst [vmem:[#allocation3] sm:$0xf] %v629
          %631 = vst [vmem:[#allocation4] sm:$0xff] 0.0
        $region76: #{_lambda_.11} parent=59 // pred_fallthru
          _
        %v632 = vld [vmem:[#allocation3] sm:$0xf]
        %v633 = vld [vmem:[%s420] sm:$0xff]
        %v634 = vld [vmem:[%s420 + $0x8] sm:$0xff]
        %v635 = vld [vmem:[%s420 + $0x10] sm:$0xff]
        %v636 = vld [vmem:[%s420 + $0x18] sm:$0xff]
        %v637 = vld [vmem:[%s420 + $0x20] sm:$0xff]
        %v638 = vld [vmem:[%s420 + $0x28] sm:$0xff]
        %v639 = vld [vmem:[%s420 + $0x30] sm:$0xff]
        %v640 = vld [vmem:[%s420 + $0x38] sm:$0xff]
        %v641 = vld [vmem:[%s420 + $0x40] sm:$0xff]
        %v642 = vld [vmem:[%s420 + $0x48] sm:$0xff]
        %v643 = vld [vmem:[%s420 + $0x50] sm:$0xff]
        %v644 = vld [vmem:[%s420 + $0x58] sm:$0xff]
        %v645 = vld [vmem:[%s420 + $0x60] sm:$0xff]
        %v646 = vld [vmem:[%s420 + $0x68] sm:$0xff]
        %v647 = vld [vmem:[%s420 + $0x70] sm:$0xff]
        %v648 = vld [vmem:[%s420 + $0x78] sm:$0xff]
        %v649 = vld [vmem:[%s496] sm:$0x3]
        %v651 = vperm.slane %v649, 0
        %v652 = vperm.slane %v649, 1
        %v671 = vunpack.c.l.b16 %v633
        %v672 = vunpack.c.h.b16 %v633
        %v673 = vunpack.c.l.b16 %v634
        %v674 = vunpack.c.h.b16 %v634
        %v675 = vunpack.c.l.b16 %v635
        %v676 = vunpack.c.h.b16 %v635
        %v677 = vunpack.c.l.b16 %v636
        %v678 = vunpack.c.h.b16 %v636
        %v679 = vunpack.c.l.b16 %v637
        %v680 = vunpack.c.h.b16 %v637
        %v681 = vunpack.c.l.b16 %v638
        %v682 = vunpack.c.h.b16 %v638
        %v683 = vunpack.c.l.b16 %v639
        %v684 = vunpack.c.h.b16 %v639
        %v685 = vunpack.c.l.b16 %v640
        %v686 = vunpack.c.h.b16 %v640
        %v687 = vunpack.c.l.b16 %v641
        %v688 = vunpack.c.h.b16 %v641
        %v689 = vunpack.c.l.b16 %v642
        %v690 = vunpack.c.h.b16 %v642
        %v691 = vunpack.c.l.b16 %v643
        %v692 = vunpack.c.h.b16 %v643
        %v693 = vunpack.c.l.b16 %v644
        %v694 = vunpack.c.h.b16 %v644
        %v695 = vunpack.c.l.b16 %v645
        %v696 = vunpack.c.h.b16 %v645
        %v697 = vunpack.c.l.b16 %v646
        %v698 = vunpack.c.h.b16 %v646
        %v699 = vunpack.c.l.b16 %v647
        %v700 = vunpack.c.h.b16 %v647
        %v701 = vunpack.c.l.b16 %v648
        %v702 = vunpack.c.h.b16 %v648
        %v703 = vpack.c.b16 %v673, %v671
        %v704 = vpack.c.b16 %v674, %v672
        %v705 = vpack.c.b16 %v677, %v675
        %v706 = vpack.c.b16 %v678, %v676
        %v707 = vpack.c.b16 %v681, %v679
        %v708 = vpack.c.b16 %v682, %v680
        %v709 = vpack.c.b16 %v685, %v683
        %v710 = vpack.c.b16 %v686, %v684
        %v711 = vpack.c.b16 %v689, %v687
        %v712 = vpack.c.b16 %v690, %v688
        %v713 = vpack.c.b16 %v693, %v691
        %v714 = vpack.c.b16 %v694, %v692
        %v715 = vpack.c.b16 %v697, %v695
        %v716 = vpack.c.b16 %v698, %v696
        %v717 = vpack.c.b16 %v701, %v699
        %v718 = vpack.c.b16 %v702, %v700
        %735 = vmatpush.bf16.msra.mxu0 %v717
        %736 = vmatpush.bf16.msra.mxu0 %v715
        %737 = vmatpush.bf16.msra.mxu0 %v713
        %738 = vmatpush.bf16.msra.mxu0 %v711
        %739 = vmatpush.bf16.msra.mxu0 %v709
        %740 = vmatpush.bf16.msra.mxu0 %v707
        %741 = vmatpush.bf16.msra.mxu0 %v705
        %742 = vmatpush.bf16.msra.mxu0 %v703
        %743 = vmatmul.bf16.gmra.mxu0 %v632
        %v744 = vpop.f32.mrf.mxu0
        %v745 = vadd.f32 %v651, %v744
        %v746 = vpop.f32.mrf.mxu0
        %747 = vdwg.mxu0
        %748 = vmatpush.bf16.msra.mxu0 %v718
        %749 = vmatpush.bf16.msra.mxu0 %v716
        %750 = vmatpush.bf16.msra.mxu0 %v714
        %751 = vmatpush.bf16.msra.mxu0 %v712
        %752 = vmatpush.bf16.msra.mxu0 %v710
        %753 = vmatpush.bf16.msra.mxu0 %v708
        %754 = vmatpush.bf16.msra.mxu0 %v706
        %755 = vmatpush.bf16.msra.mxu0 %v704
        %756 = vmatmul.bf16.gmra.mxu0 %v632
        %v757 = vpop.f32.mrf.mxu0
        %v758 = vadd.f32 %v652, %v757
        %v759 = vpop.f32.mrf.mxu0
        %760 = vdwg.mxu0
        %v761 = vmul.f32 %v745, 0.5
        %v762 = vmul.f32 %v758, 0.5
        %v763 = vmul.f32 %v745, 0.70710677
        %v764 = vmul.f32 %v758, 0.70710677
        %v765 = vmul.f32 %v763, %v763
        %v766 = vmin.f32 16.0, %v765
        %v767 = vmul.f32 %v766, 2.1237322e-06
        %v768 = vadd.f32 %v767, 0.00028619796
        %v769 = vmul.f32 %v766, %v768
        %v770 = vadd.f32 %v769, 0.0036580483
        %v771 = vmul.f32 %v766, %v770
        %v772 = vadd.f32 %v771, 0.05243302
        %v773 = vmul.f32 %v766, %v772
        %v774 = vadd.f32 %v773, 0.18741608
        %v775 = vmul.f32 %v766, %v774
        %v776 = vadd.f32 %v775, 1.1283791
        %v777 = vmul.f32 %v763, %v776
        %v778 = vmul.f32 %v766, 3.8918573e-05
        %v779 = vadd.f32 %v778, 0.001143296
        %v780 = vmul.f32 %v766, %v779
        %v781 = vadd.f32 %v780, 0.014752088
        %v782 = vmul.f32 %v766, %v781
        %v783 = vadd.f32 %v782, 0.112945676
        %v784 = vmul.f32 %v766, %v783
        %v785 = vadd.f32 %v784, 0.4994258
        %v786 = vmul.f32 %v766, %v785
        %v787 = vadd.f32 %v786, 1.0
        %v788 = vrcp.pop %v787
        %v789 = vmul.f32 %v787, %v788
        %v790 = vsub.f32 1.0, %v789
        %v791 = vmul.f32 %v788, %v790
        %v792 = vadd.f32 %v788, %v791
        %vm793 = vweird.f32 %v787
        %vm794 = vweird.f32 %v788
        %vm795 = vmor %vm793, %vm794
        %v796 = vsel %vm795, %v788, %v792
        %v797 = vand.u32 2147483647, %v787
        %vm798 = vcmp.eq.f32.partialorder %v797, 8.507059e+37
        %v799 = vand.u32 %v787, 2147483648
        %v800 = vor.u32 1.1754944e-38, %v799
        %v801 = vsel %vm798, %v800, %v796
        %v802 = vmul.f32 %v777, %v801
        %v803 = vmin.f32 %v802, 1.0
        %v804 = vmax.f32 %v803, -1.0
        %v805 = vmul.f32 %v764, %v764
        %v806 = vmin.f32 16.0, %v805
        %v807 = vmul.f32 %v806, 2.1237322e-06
        %v808 = vadd.f32 %v807, 0.00028619796
        %v809 = vmul.f32 %v806, %v808
        %v810 = vadd.f32 %v809, 0.0036580483
        %v811 = vmul.f32 %v806, %v810
        %v812 = vadd.f32 %v811, 0.05243302
        %v813 = vmul.f32 %v806, %v812
        %v814 = vadd.f32 %v813, 0.18741608
        %v815 = vmul.f32 %v806, %v814
        %v816 = vadd.f32 %v815, 1.1283791
        %v817 = vmul.f32 %v764, %v816
        %v818 = vmul.f32 %v806, 3.8918573e-05
        %v819 = vadd.f32 %v818, 0.001143296
        %v820 = vmul.f32 %v806, %v819
        %v821 = vadd.f32 %v820, 0.014752088
        %v822 = vmul.f32 %v806, %v821
        %v823 = vadd.f32 %v822, 0.112945676
        %v824 = vmul.f32 %v806, %v823
        %v825 = vadd.f32 %v824, 0.4994258
        %v826 = vmul.f32 %v806, %v825
        %v827 = vadd.f32 %v826, 1.0
        %v828 = vrcp.pop %v827
        %v829 = vmul.f32 %v827, %v828
        %v830 = vsub.f32 1.0, %v829
        %v831 = vmul.f32 %v828, %v830
        %v832 = vadd.f32 %v828, %v831
        %vm833 = vweird.f32 %v827
        %vm834 = vweird.f32 %v828
        %vm835 = vmor %vm833, %vm834
        %v836 = vsel %vm835, %v828, %v832
        %v837 = vand.u32 2147483647, %v827
        %vm838 = vcmp.eq.f32.partialorder %v837, 8.507059e+37
        %v839 = vand.u32 %v827, 2147483648
        %v840 = vor.u32 1.1754944e-38, %v839
        %v841 = vsel %vm838, %v840, %v836
        %v842 = vmul.f32 %v817, %v841
        %v843 = vmin.f32 %v842, 1.0
        %v844 = vmax.f32 %v843, -1.0
        %v845 = vadd.f32 %v804, 1.0
        %v846 = vadd.f32 %v844, 1.0
        %v847 = vmul.f32 %v761, %v845
        %v848 = vmul.f32 %v762, %v846
        %v849 = vld [vmem:[#allocation4] sm:$0xff]
        %v850 = vpack.c.bf16 %v847, %v847
        %v851 = vpack.c.bf16 %v848, %v848
        %v852 = vld [vmem:[%s430] sm:$0xf]
        %v853 = vld [vmem:[%s430 + $0x4] sm:$0xf]
        %v854 = vld [vmem:[%s430 + $0x8] sm:$0xf]
        %v855 = vld [vmem:[%s430 + $0xc] sm:$0xf]
        %v856 = vld [vmem:[%s430 + $0x10] sm:$0xf]
        %v857 = vld [vmem:[%s430 + $0x14] sm:$0xf]
        %v858 = vld [vmem:[%s430 + $0x18] sm:$0xf]
        %v859 = vld [vmem:[%s430 + $0x1c] sm:$0xf]
        %v860 = vld [vmem:[%s430 + $0x20] sm:$0xf]
        %v861 = vld [vmem:[%s430 + $0x24] sm:$0xf]
        %v862 = vld [vmem:[%s430 + $0x28] sm:$0xf]
        %v863 = vld [vmem:[%s430 + $0x2c] sm:$0xf]
        %v864 = vld [vmem:[%s430 + $0x30] sm:$0xf]
        %v865 = vld [vmem:[%s430 + $0x34] sm:$0xf]
        %v866 = vld [vmem:[%s430 + $0x38] sm:$0xf]
        %v867 = vld [vmem:[%s430 + $0x3c] sm:$0xf]
        %v868 = vld [vmem:[%s430 + $0x40] sm:$0xf]
        %v869 = vld [vmem:[%s430 + $0x44] sm:$0xf]
        %v870 = vld [vmem:[%s430 + $0x48] sm:$0xf]
        %v871 = vld [vmem:[%s430 + $0x4c] sm:$0xf]
        %v872 = vld [vmem:[%s430 + $0x50] sm:$0xf]
        %v873 = vld [vmem:[%s430 + $0x54] sm:$0xf]
        %v874 = vld [vmem:[%s430 + $0x58] sm:$0xf]
        %v875 = vld [vmem:[%s430 + $0x5c] sm:$0xf]
        %v876 = vld [vmem:[%s430 + $0x60] sm:$0xf]
        %v877 = vld [vmem:[%s430 + $0x64] sm:$0xf]
        %v878 = vld [vmem:[%s430 + $0x68] sm:$0xf]
        %v879 = vld [vmem:[%s430 + $0x6c] sm:$0xf]
        %v880 = vld [vmem:[%s430 + $0x70] sm:$0xf]
        %v881 = vld [vmem:[%s430 + $0x74] sm:$0xf]
        %v882 = vld [vmem:[%s430 + $0x78] sm:$0xf]
        %v883 = vld [vmem:[%s430 + $0x7c] sm:$0xf]
        %v916 = vunpack.c.l.b16 %v852
        %v917 = vunpack.c.l.b16 %v853
        %v918 = vunpack.c.l.b16 %v854
        %v919 = vunpack.c.l.b16 %v855
        %v920 = vunpack.c.l.b16 %v856
        %v921 = vunpack.c.l.b16 %v857
        %v922 = vunpack.c.l.b16 %v858
        %v923 = vunpack.c.l.b16 %v859
        %v924 = vunpack.c.l.b16 %v860
        %v925 = vunpack.c.l.b16 %v861
        %v926 = vunpack.c.l.b16 %v862
        %v927 = vunpack.c.l.b16 %v863
        %v928 = vunpack.c.l.b16 %v864
        %v929 = vunpack.c.l.b16 %v865
        %v930 = vunpack.c.l.b16 %v866
        %v931 = vunpack.c.l.b16 %v867
        %v932 = vunpack.c.l.b16 %v868
        %v933 = vunpack.c.l.b16 %v869
        %v934 = vunpack.c.l.b16 %v870
        %v935 = vunpack.c.l.b16 %v871
        %v936 = vunpack.c.l.b16 %v872
        %v937 = vunpack.c.l.b16 %v873
        %v938 = vunpack.c.l.b16 %v874
        %v939 = vunpack.c.l.b16 %v875
        %v940 = vunpack.c.l.b16 %v876
        %v941 = vunpack.c.l.b16 %v877
        %v942 = vunpack.c.l.b16 %v878
        %v943 = vunpack.c.l.b16 %v879
        %v944 = vunpack.c.l.b16 %v880
        %v945 = vunpack.c.l.b16 %v881
        %v946 = vunpack.c.l.b16 %v882
        %v947 = vunpack.c.l.b16 %v883
        %v948 = vpack.c.b16 %v917, %v916
        %v949 = vpack.c.b16 %v919, %v918
        %v950 = vpack.c.b16 %v921, %v920
        %v951 = vpack.c.b16 %v923, %v922
        %v952 = vpack.c.b16 %v925, %v924
        %v953 = vpack.c.b16 %v927, %v926
        %v954 = vpack.c.b16 %v929, %v928
        %v955 = vpack.c.b16 %v931, %v930
        %v956 = vpack.c.b16 %v933, %v932
        %v957 = vpack.c.b16 %v935, %v934
        %v958 = vpack.c.b16 %v937, %v936
        %v959 = vpack.c.b16 %v939, %v938
        %v960 = vpack.c.b16 %v941, %v940
        %v961 = vpack.c.b16 %v943, %v942
        %v962 = vpack.c.b16 %v945, %v944
        %v963 = vpack.c.b16 %v947, %v946
        %980 = vmatpush.bf16.msra.mxu0 %v955
        %981 = vmatpush.bf16.msra.mxu0 %v954
        %982 = vmatpush.bf16.msra.mxu0 %v953
        %983 = vmatpush.bf16.msra.mxu0 %v952
        %984 = vmatpush.bf16.msra.mxu0 %v951
        %985 = vmatpush.bf16.msra.mxu0 %v950
        %986 = vmatpush.bf16.msra.mxu0 %v949
        %987 = vmatpush.bf16.msra.mxu0 %v948
        %988 = vmatmul.bf16.gmra.mxu0 %v850
        %v989 = vpop.f32.mrf.mxu0
        %v990 = vadd.f32 0.0, %v989
        %v991 = vpop.f32.mrf.mxu0
        %992 = vdwg.mxu0
        %993 = vmatpush.bf16.msra.mxu0 %v963
        %994 = vmatpush.bf16.msra.mxu0 %v962
        %995 = vmatpush.bf16.msra.mxu0 %v961
        %996 = vmatpush.bf16.msra.mxu0 %v960
        %997 = vmatpush.bf16.msra.mxu0 %v959
        %998 = vmatpush.bf16.msra.mxu0 %v958
        %999 = vmatpush.bf16.msra.mxu0 %v957
        %1000 = vmatpush.bf16.msra.mxu0 %v956
        %1001 = vmatmul.bf16.gmra.mxu0 %v851
        %v1002 = vpop.f32.mrf.mxu0
        %v1003 = vadd.f32 %v990, %v1002
        %v1004 = vpop.f32.mrf.mxu0
        %1005 = vdwg.mxu0
        %v1006 = vadd.f32 %v849, %v1003
        %1007 = vst [vmem:[#allocation4] sm:$0xff] %v1006
        %p1008 = scmp.eq.s32.totalorder %s30, 1
        // Predicated region
        $region77: #{_lambda_.11} parent=59 // pred_check
          %p1009 = pneg %p1008
        $region78: #{_lambda_.11} parent=59 // pred_check_branch
          %1011 = sbr.rel (%p1009) target = $region80
        $region79: #{_lambda_.11} parent=59 // pred_region
          %v1012 = vld [vmem:[#allocation2] sm:$0xff]
          %v1013 = vld [vmem:[#allocation4] sm:$0xff]
          %v1014 = vadd.f32 %v1012, %v1013
          %v1015 = vld [vmem:[%s9] sm:$0x1]
          %v1017 = vperm.slane %v1015, 0
          %v1019 = vadd.f32 %v1014, %v1017
          %1020 = vst [vmem:[%s502] sm:$0xff] %v1019
        $region80: #{_lambda_.11} parent=59 // pred_fallthru
          _
        %p1021 = scmp.lt.s32.totalorder %s29, 1
        %s1022 = scalar_select %p1021, %s29, 1
        %s1023 = smul.addr %s1022, 8
        %s1024 = scalar_lea.vmem %s10, %s1023
        // Predicated region
        $region81: #{_lambda_.11} parent=59 // pred_check
          %p1025 = pneg %p290
        $region82: #{_lambda_.11} parent=59 // pred_check_branch
          %1027 = sbr.rel (%p1025) target = $region84
        $region83: #{_lambda_.11} parent=59 // pred_region
          _
        $region84: #{_lambda_.11} parent=59 // pred_fallthru
          _
      $region60: #{_lambda_.11} parent=5 // pred_fallthru
        _
      %p1028 = scmp.le.s32.totalorder 2, %s20
      // Predicated region
      $region85: #{_lambda_.11} parent=5 // pred_check
        %p1029 = pneg %p1028
      $region86: #{_lambda_.11} parent=5 // pred_check_branch
        %1031 = sbr.rel (%p1029) target = $region88
      $region87: #{_lambda_.11} parent=5 // pred_region
        %s1032 = ssub.s32 %s20, 2
        // Predicated region
        $region89: #{_lambda_.11} parent=87 // pred_check
          %p1033 = pneg %p296
        $region90: #{_lambda_.11} parent=87 // pred_check_branch
          %1035 = sbr.rel (%p1033) target = $region92
        $region91: #{_lambda_.11} parent=87 // pred_region
          %p1036 = scmp.lt.s32.totalorder %s31, 1
          %s1037 = scalar_select %p1036, %s31, 1
          %s1038 = smul.addr %s1037, 8
          %s1039 = scalar_lea.vmem %s10, %s1038
        $region92: #{_lambda_.11} parent=87 // pred_fallthru
          _
      $region88: #{_lambda_.11} parent=5 // pred_fallthru
        _
    $region6: #{_lambda_.11} parent=1 // loop_footer
      %s24 = sadd.s32 1, %s20
    $region7: #{_lambda_.11} parent=1 // loop_footer_branch
      %19 = sbr.rel target = $region3
    $region8: #{_lambda_.11} parent=1 // loop_exit
      _
    %1040 = vsyncpa [#allocation6], 1
    %s1041 = scalar_lea.sflag [#allocation6], 1
    %1042 = vsyncpa %s1041, 1
    %1043 = vsyncpa [#allocation8], 1
    %s1044 = scalar_lea.sflag [#allocation8], 1
    %1045 = vsyncpa %s1044, 1

// kernel: _lambda_.14
$region0: #{_lambda_.14}
  #allocation0 [shape = 'u32[]', space=smem, size = 0x4, offset = 0x4, fixed_abs, tag = 'smem constant byte address 0x4 - core index']
  #allocation1 [shape = 'u32[72,128]{1,0:T(1,128)}', space=vmem, size = 0x9000, scoped, tag = 'internal scratch']
  #allocation2 [shape = 'f32[8,128]{1,0:T(8,128)}', space=vmem, size = 0x1000, scoped, tag = 'scratch operand']
  #allocation3 [shape = 'bf16[8,128]{1,0:T(8,128)(2,1)}', space=vmem, size = 0x800, scoped, tag = 'scratch operand']
  #allocation4 [shape = 'f32[8,128]{1,0:T(8,128)}', space=vmem, size = 0x1000, scoped, tag = 'scratch operand']
  %s0 = inlined_call_operand.vmem [shape: f32[16,128], index: 0, kind: input, shape index: {}]
  %s1 = inlined_call_operand.vmem [shape: bf16[16,128], index: 1, kind: input, shape index: {}]
  %s2 = inlined_call_operand.vmem [shape: bf16[128,128], index: 2, kind: input, shape index: {}]
  %s3 = inlined_call_operand.vmem [shape: f32[1,128], index: 3, kind: input, shape index: {}, may-alias: {3,5,9}]
  %s4 = inlined_call_operand.vmem [shape: f32[1,128], index: 4, kind: input, shape index: {}]
  %s5 = inlined_call_operand.vmem [shape: f32[1,128], index: 5, kind: input, shape index: {}, may-alias: {3,5,9}]
  %s6 = inlined_call_operand.hbm [shape: bf16[128,512], index: 6, kind: input, shape index: {}]
  %s7 = inlined_call_operand.vmem [shape: f32[1,512], index: 7, kind: input, shape index: {}]
  %s8 = inlined_call_operand.hbm [shape: bf16[512,128], index: 8, kind: input, shape index: {}]
  %s9 = inlined_call_operand.vmem [shape: f32[1,128], index: 9, kind: input, shape index: {}, may-alias: {3,5,9}]
  %s10 = inlined_call_operand.vmem [shape: f32[16,128], index: 10, kind: output, shape index: {}]
  %s11 = sld [smem:[#allocation0]]
  $region89: #{_lambda_.14} parent=0
    _
  %s13 = ssub.s32 1, %s11
  %s14 = scalar_select 0, %s13, %s11
  $region1: #{_lambda_.14} parent=0
    #allocation5 [shape = 'u8[131072]{0}', space=vmem, size = 0x20000, scoped, tag = 'input window, operand 6']
    #allocation6 [shape = 's32[2]{0}', space=sflag, size = 0x8, scoped, tag = 'scoped memory for _lambda_.14']
    #allocation7 [shape = 'u8[131072]{0}', space=vmem, size = 0x20000, scoped, tag = 'input window, operand 8']
    #allocation8 [shape = 's32[2]{0}', space=sflag, size = 0x8, scoped, tag = 'scoped memory for _lambda_.14']
    %15 = vsyncpa [#allocation6], 0
    %s16 = scalar_lea.sflag [#allocation6], 1
    %17 = vsyncpa %s16, 0
    %18 = vsyncpa [#allocation8], 0
    %s19 = scalar_lea.sflag [#allocation8], 1
    %20 = vsyncpa %s19, 0
    loop: start=0, step=1, limit=6
    $region2: #{_lambda_.14} parent=1 // loop_pre_header
      _
    $region3: #{_lambda_.14} parent=1 // loop_header
      %s22 = sphi 0, %s26
      %p23 = scmp.ge.s32.totalorder %s22, 6
      %s29 = sphi 0, %s41
      %s30 = sphi 0, %s37
      %s31 = sphi 0, %s29
      %s32 = sphi 0, %s30
      %s33 = sphi 0, %s31
      %s34 = sphi 0, %s32
      %s44 = sphi 0, %s46
      %s47 = sphi 0, %s44
      %s48 = sphi 0, %s47
      %s64 = sphi 0, %s48
      %s70 = sphi 0, %s72
      %s73 = sphi 0, %s70
      %s74 = sphi 0, %s73
      %s90 = sphi 0, %s74
      %s94 = sphi 0, %s94
      %s96 = sphi 0, %s94
      %s97 = sphi 0, %s96
      %s111 = sphi 0, %s97
      %s115 = sphi 0, %s115
      %s117 = sphi 0, %s115
      %s118 = sphi 0, %s117
      %s132 = sphi 0, %s118
      %s136 = sphi 0, %s136
      %s138 = sphi 0, %s136
      %s139 = sphi 0, %s138
      %s153 = sphi 0, %s139
      %s157 = sphi 0, %s157
      %s159 = sphi 0, %s157
      %s160 = sphi 0, %s159
      %s174 = sphi 0, %s160
      %s180 = sphi 0, %s182
      %s183 = sphi 0, %s180
      %s184 = sphi 0, %s183
      %s200 = sphi 0, %s184
      %s206 = sphi 0, %s208
      %s209 = sphi 0, %s206
      %s210 = sphi 0, %s209
      %s226 = sphi 0, %s210
      %s232 = sphi 0, %s234
      %s235 = sphi 0, %s232
      %s236 = sphi 0, %s235
      %s252 = sphi 0, %s236
      %s256 = sphi 0, %s256
      %s258 = sphi 0, %s256
      %s259 = sphi 0, %s258
      %s273 = sphi 0, %s259
      %s279 = sphi 0, %s281
      %s282 = sphi 0, %s279
      %s283 = sphi 0, %s282
      %s299 = sphi 0, %s283
    $region4: #{_lambda_.14} parent=1 // loop_header_branch
      %25 = sbr.rel (%p23) target = $region8
    $region5: #{_lambda_.14} parent=1 // loop_body
      %s27 = ssub.s32 %s22, 1
      %s28 = ssub.s32 %s22, 2
      %s35 = sadd.s32 1, %s30
      %p36 = scmp.ge.s32.totalorder %s35, 2
      %s37 = scalar_select %p36, 0, %s35
      %s38 = sadd.s32 1, %s29
      %s39 = scalar_select %p36, %s38, %s29
      %p40 = scmp.ge.s32.totalorder %s39, 2
      %s41 = scalar_select %p40, 0, %s39
      %s42 = ssub.s32 %s29, %s41
      %p43 = scmp.eq.s32.totalorder %s42, 0
      %s45 = sadd.s32 %s44, 1
      %s46 = scalar_select %p43, %s44, %s45
      %p49 = pneg %p43
      %p50 = scmp.eq.s32.totalorder %s22, 3
      %p51 = por %p49, %p50
      %p52 = scmp.ne.s32.totalorder %s44, %s47
      %p53 = scmp.eq.s32.totalorder %s22, 0
      %p54 = por %p52, %p53
      %p55 = scmp.ne.s32.totalorder %s44, %s47
      %p56 = scmp.eq.s32.totalorder %s27, 3
      %p57 = por %p55, %p56
      %p58 = scmp.ne.s32.totalorder %s47, %s48
      %p59 = scmp.eq.s32.totalorder %s27, 0
      %p60 = por %p58, %p59
      %p61 = scmp.ne.s32.totalorder %s47, %s48
      %p62 = scmp.eq.s32.totalorder %s28, 3
      %p63 = por %p61, %p62
      %p65 = scmp.ne.s32.totalorder %s48, %s64
      %p66 = scmp.eq.s32.totalorder %s28, 0
      %p67 = por %p65, %p66
      %s68 = ssub.s32 %s29, %s41
      %p69 = scmp.eq.s32.totalorder %s68, 0
      %s71 = sadd.s32 %s70, 1
      %s72 = scalar_select %p69, %s70, %s71
      %p75 = pneg %p69
      %p76 = scmp.eq.s32.totalorder %s22, 3
      %p77 = por %p75, %p76
      %p78 = scmp.ne.s32.totalorder %s70, %s73
      %p79 = scmp.eq.s32.totalorder %s22, 0
      %p80 = por %p78, %p79
      %p81 = scmp.ne.s32.totalorder %s70, %s73
      %p82 = scmp.eq.s32.totalorder %s27, 3
      %p83 = por %p81, %p82
      %p84 = scmp.ne.s32.totalorder %s73, %s74
      %p85 = scmp.eq.s32.totalorder %s27, 0
      %p86 = por %p84, %p85
      %p87 = scmp.ne.s32.totalorder %s73, %s74
      %p88 = scmp.eq.s32.totalorder %s28, 3
      %p89 = por %p87, %p88
      %p91 = scmp.ne.s32.totalorder %s74, %s90
      %p92 = scmp.eq.s32.totalorder %s28, 0
      %p93 = por %p91, %p92
      %s95 = sadd.s32 %s94, 1
      %p98 = scmp.eq.s32.totalorder %s22, 3
      %p99 = scmp.ne.s32.totalorder %s94, %s96
      %p100 = scmp.eq.s32.totalorder %s22, 0
      %p101 = por %p99, %p100
      %p102 = scmp.ne.s32.totalorder %s94, %s96
      %p103 = scmp.eq.s32.totalorder %s27, 3
      %p104 = por %p102, %p103
      %p105 = scmp.ne.s32.totalorder %s96, %s97
      %p106 = scmp.eq.s32.totalorder %s27, 0
      %p107 = por %p105, %p106
      %p108 = scmp.ne.s32.totalorder %s96, %s97
      %p109 = scmp.eq.s32.totalorder %s28, 3
      %p110 = por %p108, %p109
      %p112 = scmp.ne.s32.totalorder %s97, %s111
      %p113 = scmp.eq.s32.totalorder %s28, 0
      %p114 = por %p112, %p113
      %s116 = sadd.s32 %s115, 1
      %p119 = scmp.eq.s32.totalorder %s22, 3
      %p120 = scmp.ne.s32.totalorder %s115, %s117
      %p121 = scmp.eq.s32.totalorder %s22, 0
      %p122 = por %p120, %p121
      %p123 = scmp.ne.s32.totalorder %s115, %s117
      %p124 = scmp.eq.s32.totalorder %s27, 3
      %p125 = por %p123, %p124
      %p126 = scmp.ne.s32.totalorder %s117, %s118
      %p127 = scmp.eq.s32.totalorder %s27, 0
      %p128 = por %p126, %p127
      %p129 = scmp.ne.s32.totalorder %s117, %s118
      %p130 = scmp.eq.s32.totalorder %s28, 3
      %p131 = por %p129, %p130
      %p133 = scmp.ne.s32.totalorder %s118, %s132
      %p134 = scmp.eq.s32.totalorder %s28, 0
      %p135 = por %p133, %p134
      %s137 = sadd.s32 %s136, 1
      %p140 = scmp.eq.s32.totalorder %s22, 3
      %p141 = scmp.ne.s32.totalorder %s136, %s138
      %p142 = scmp.eq.s32.totalorder %s22, 0
      %p143 = por %p141, %p142
      %p144 = scmp.ne.s32.totalorder %s136, %s138
      %p145 = scmp.eq.s32.totalorder %s27, 3
      %p146 = por %p144, %p145
      %p147 = scmp.ne.s32.totalorder %s138, %s139
      %p148 = scmp.eq.s32.totalorder %s27, 0
      %p149 = por %p147, %p148
      %p150 = scmp.ne.s32.totalorder %s138, %s139
      %p151 = scmp.eq.s32.totalorder %s28, 3
      %p152 = por %p150, %p151
      %p154 = scmp.ne.s32.totalorder %s139, %s153
      %p155 = scmp.eq.s32.totalorder %s28, 0
      %p156 = por %p154, %p155
      %s158 = sadd.s32 %s157, 1
      %p161 = scmp.eq.s32.totalorder %s22, 3
      %p162 = scmp.ne.s32.totalorder %s157, %s159
      %p163 = scmp.eq.s32.totalorder %s22, 0
      %p164 = por %p162, %p163
      %p165 = scmp.ne.s32.totalorder %s157, %s159
      %p166 = scmp.eq.s32.totalorder %s27, 3
      %p167 = por %p165, %p166
      %p168 = scmp.ne.s32.totalorder %s159, %s160
      %p169 = scmp.eq.s32.totalorder %s27, 0
      %p170 = por %p168, %p169
      %p171 = scmp.ne.s32.totalorder %s159, %s160
      %p172 = scmp.eq.s32.totalorder %s28, 3
      %p173 = por %p171, %p172
      %p175 = scmp.ne.s32.totalorder %s160, %s174
      %p176 = scmp.eq.s32.totalorder %s28, 0
      %p177 = por %p175, %p176
      %s178 = ssub.s32 %s30, %s37
      %p179 = scmp.eq.s32.totalorder %s178, 0
      %s181 = sadd.s32 %s180, 1
      %s182 = scalar_select %p179, %s180, %s181
      %p185 = pneg %p179
      %p186 = scmp.eq.s32.totalorder %s22, 3
      %p187 = por %p185, %p186
      %p188 = scmp.ne.s32.totalorder %s180, %s183
      %p189 = scmp.eq.s32.totalorder %s22, 0
      %p190 = por %p188, %p189
      %p191 = scmp.ne.s32.totalorder %s180, %s183
      %p192 = scmp.eq.s32.totalorder %s27, 3
      %p193 = por %p191, %p192
      %p194 = scmp.ne.s32.totalorder %s183, %s184
      %p195 = scmp.eq.s32.totalorder %s27, 0
      %p196 = por %p194, %p195
      %p197 = scmp.ne.s32.totalorder %s183, %s184
      %p198 = scmp.eq.s32.totalorder %s28, 3
      %p199 = por %p197, %p198
      %p201 = scmp.ne.s32.totalorder %s184, %s200
      %p202 = scmp.eq.s32.totalorder %s28, 0
      %p203 = por %p201, %p202
      %s204 = ssub.s32 %s30, %s37
      %p205 = scmp.eq.s32.totalorder %s204, 0
      %s207 = sadd.s32 %s206, 1
      %s208 = scalar_select %p205, %s206, %s207
      %p211 = pneg %p205
      %p212 = scmp.eq.s32.totalorder %s22, 3
      %p213 = por %p211, %p212
      %p214 = scmp.ne.s32.totalorder %s206, %s209
      %p215 = scmp.eq.s32.totalorder %s22, 0
      %p216 = por %p214, %p215
      %p217 = scmp.ne.s32.totalorder %s206, %s209
      %p218 = scmp.eq.s32.totalorder %s27, 3
      %p219 = por %p217, %p218
      %p220 = scmp.ne.s32.totalorder %s209, %s210
      %p221 = scmp.eq.s32.totalorder %s27, 0
      %p222 = por %p220, %p221
      %p223 = scmp.ne.s32.totalorder %s209, %s210
      %p224 = scmp.eq.s32.totalorder %s28, 3
      %p225 = por %p223, %p224
      %p227 = scmp.ne.s32.totalorder %s210, %s226
      %p228 = scmp.eq.s32.totalorder %s28, 0
      %p229 = por %p227, %p228
      %s230 = ssub.s32 %s30, %s37
      %p231 = scmp.eq.s32.totalorder %s230, 0
      %s233 = sadd.s32 %s232, 1
      %s234 = scalar_select %p231, %s232, %s233
      %p237 = pneg %p231
      %p238 = scmp.eq.s32.totalorder %s22, 3
      %p239 = por %p237, %p238
      %p240 = scmp.ne.s32.totalorder %s232, %s235
      %p241 = scmp.eq.s32.totalorder %s22, 0
      %p242 = por %p240, %p241
      %p243 = scmp.ne.s32.totalorder %s232, %s235
      %p244 = scmp.eq.s32.totalorder %s27, 3
      %p245 = por %p243, %p244
      %p246 = scmp.ne.s32.totalorder %s235, %s236
      %p247 = scmp.eq.s32.totalorder %s27, 0
      %p248 = por %p246, %p247
      %p249 = scmp.ne.s32.totalorder %s235, %s236
      %p250 = scmp.eq.s32.totalorder %s28, 3
      %p251 = por %p249, %p250
      %p253 = scmp.ne.s32.totalorder %s236, %s252
      %p254 = scmp.eq.s32.totalorder %s28, 0
      %p255 = por %p253, %p254
      %s257 = sadd.s32 %s256, 1
      %p260 = scmp.eq.s32.totalorder %s22, 3
      %p261 = scmp.ne.s32.totalorder %s256, %s258
      %p262 = scmp.eq.s32.totalorder %s22, 0
      %p263 = por %p261, %p262
      %p264 = scmp.ne.s32.totalorder %s256, %s258
      %p265 = scmp.eq.s32.totalorder %s27, 3
      %p266 = por %p264, %p265
      %p267 = scmp.ne.s32.totalorder %s258, %s259
      %p268 = scmp.eq.s32.totalorder %s27, 0
      %p269 = por %p267, %p268
      %p270 = scmp.ne.s32.totalorder %s258, %s259
      %p271 = scmp.eq.s32.totalorder %s28, 3
      %p272 = por %p270, %p271
      %p274 = scmp.ne.s32.totalorder %s259, %s273
      %p275 = scmp.eq.s32.totalorder %s28, 0
      %p276 = por %p274, %p275
      %s277 = ssub.s32 %s29, %s41
      %p278 = scmp.eq.s32.totalorder %s277, 0
      %s280 = sadd.s32 %s279, 1
      %s281 = scalar_select %p278, %s279, %s280
      %p284 = pneg %p278
      %p285 = scmp.eq.s32.totalorder %s22, 3
      %p286 = por %p284, %p285
      %p287 = scmp.ne.s32.totalorder %s279, %s282
      %p288 = scmp.eq.s32.totalorder %s22, 0
      %p289 = por %p287, %p288
      %p290 = scmp.ne.s32.totalorder %s279, %s282
      %p291 = scmp.eq.s32.totalorder %s27, 3
      %p292 = por %p290, %p291
      %p293 = scmp.ne.s32.totalorder %s282, %s283
      %p294 = scmp.eq.s32.totalorder %s27, 0
      %p295 = por %p293, %p294
      %p296 = scmp.ne.s32.totalorder %s282, %s283
      %p297 = scmp.eq.s32.totalorder %s28, 3
      %p298 = por %p296, %p297
      %p300 = scmp.ne.s32.totalorder %s283, %s299
      %p301 = scmp.eq.s32.totalorder %s28, 0
      %p302 = por %p300, %p301
      %p303 = scmp.le.s32.totalorder 1, %s22
      %p304 = scmp.lt.s32.totalorder %s22, 5
      %p305 = pnand %p303, %p304
      %p306 = pneg %p305
      // Predicated region
      $region9: #{_lambda_.14} parent=5 // pred_check
        _
      $region10: #{_lambda_.14} parent=5 // pred_check_branch
        %308 = sbr.rel (%p305) target = $region12
      $region11: #{_lambda_.14} parent=5 // pred_region
        %s309 = ssub.s32 %s22, 1
        // Predicated region
        $region13: #{_lambda_.14} parent=11 // pred_check
          %p310 = pneg %p107
        $region14: #{_lambda_.14} parent=11 // pred_check_branch
          %312 = sbr.rel (%p310) target = $region16
        $region15: #{_lambda_.14} parent=11 // pred_region
          _
        $region16: #{_lambda_.14} parent=11 // pred_fallthru
          _
        // Predicated region
        $region17: #{_lambda_.14} parent=11 // pred_check
          %p313 = pneg %p128
        $region18: #{_lambda_.14} parent=11 // pred_check_branch
          %315 = sbr.rel (%p313) target = $region20
        $region19: #{_lambda_.14} parent=11 // pred_region
          _
        $region20: #{_lambda_.14} parent=11 // pred_fallthru
          _
        // Predicated region
        $region21: #{_lambda_.14} parent=11 // pred_check
          %p316 = pneg %p149
        $region22: #{_lambda_.14} parent=11 // pred_check_branch
          %318 = sbr.rel (%p316) target = $region24
        $region23: #{_lambda_.14} parent=11 // pred_region
          _
        $region24: #{_lambda_.14} parent=11 // pred_fallthru
          _
        // Predicated region
        $region25: #{_lambda_.14} parent=11 // pred_check
          %p319 = pneg %p170
        $region26: #{_lambda_.14} parent=11 // pred_check_branch
          %321 = sbr.rel (%p319) target = $region28
        $region27: #{_lambda_.14} parent=11 // pred_region
          _
        $region28: #{_lambda_.14} parent=11 // pred_fallthru
          _
        // Predicated region
        $region29: #{_lambda_.14} parent=11 // pred_check
          %p322 = pneg %p269
        $region30: #{_lambda_.14} parent=11 // pred_check_branch
          %324 = sbr.rel (%p322) target = $region32
        $region31: #{_lambda_.14} parent=11 // pred_region
          _
        $region32: #{_lambda_.14} parent=11 // pred_fallthru
          _
      $region12: #{_lambda_.14} parent=5 // pred_fallthru
        _
      %p325 = scmp.lt.s32.totalorder %s22, 4
      // Predicated region
      $region33: #{_lambda_.14} parent=5 // pred_check
        %p326 = pneg %p325
      $region34: #{_lambda_.14} parent=5 // pred_check_branch
        %328 = sbr.rel (%p326) target = $region36
      $region35: #{_lambda_.14} parent=5 // pred_region
        // Predicated region
        $region37: #{_lambda_.14} parent=35 // pred_check
          %p329 = pneg %p54
        $region38: #{_lambda_.14} parent=35 // pred_check_branch
          %331 = sbr.rel (%p329) target = $region40
        $region39: #{_lambda_.14} parent=35 // pred_region
          %p332 = scmp.lt.s32.totalorder %s29, 1
          %s333 = scalar_select %p332, %s29, 1
          %s334 = smul.addr %s333, 8
          %s335 = scalar_lea.vmem %s0, %s334
        $region40: #{_lambda_.14} parent=35 // pred_fallthru
          _
        // Predicated region
        $region41: #{_lambda_.14} parent=35 // pred_check
          %p336 = pneg %p80
        $region42: #{_lambda_.14} parent=35 // pred_check_branch
          %338 = sbr.rel (%p336) target = $region44
        $region43: #{_lambda_.14} parent=35 // pred_region
          %p339 = scmp.lt.s32.totalorder %s29, 1
          %s340 = scalar_select %p339, %s29, 1
          %s341 = smul.addr %s340, 4
          %s342 = scalar_lea.vmem %s1, %s341
        $region44: #{_lambda_.14} parent=35 // pred_fallthru
          _
        // Predicated region
        $region45: #{_lambda_.14} parent=35 // pred_check
          %p343 = pneg %p190
        $region46: #{_lambda_.14} parent=35 // pred_check_branch
          %345 = sbr.rel (%p343) target = $region48
        $region47: #{_lambda_.14} parent=35 // pred_region
          %s346 = sand.u32 %s180, 1
          %s347 = scalar_lea.sflag [#allocation6], %s346
          %s348 = sand.u32 %s180, 1
          %s349 = smul.addr %s348, 128
          %s350 = scalar_lea.vmem [#allocation5], %s349
          %s351 = smul.u32 2, %s30
          %353 = vsyncadd %s347, 0
          %s354 = smul.addr %s351, 4
          %s355 = scalar_lea.hbm %s6, %s354
          %s356 = sshll.u32 %s355, 4
          %s357 = int_to_ptr.hbm [resolvable:$true] %s356
          %s358 = sshll.u32 %s350, 4
          %s359 = int_to_ptr.vmem [resolvable:$true] %s358
          %364 = dma.hbm_to_vmem [thread:$0]  %s357, 2048, %s359, %s347, 256, 128, 8
        $region48: #{_lambda_.14} parent=35 // pred_fallthru
          _
        // Predicated region
        $region49: #{_lambda_.14} parent=35 // pred_check
          %p365 = pneg %p216
        $region50: #{_lambda_.14} parent=35 // pred_check_branch
          %367 = sbr.rel (%p365) target = $region52
        $region51: #{_lambda_.14} parent=35 // pred_region
          %s368 = smul.u32 2, %s30
          %p369 = scmp.lt.s32.totalorder %s368, 3
          %s370 = scalar_select %p369, %s368, 3
          %s371 = scalar_lea.vmem %s7, %s370
          %s372 = smul.u32 2, %s30
        $region52: #{_lambda_.14} parent=35 // pred_fallthru
          _
        // Predicated region
        $region53: #{_lambda_.14} parent=35 // pred_check
          %p373 = pneg %p242
        $region54: #{_lambda_.14} parent=35 // pred_check_branch
          %375 = sbr.rel (%p373) target = $region56
        $region55: #{_lambda_.14} parent=35 // pred_region
          %s376 = sand.u32 %s232, 1
          %s377 = scalar_lea.sflag [#allocation8], %s376
          %s378 = sand.u32 %s232, 1
          %s379 = smul.addr %s378, 128
          %s380 = scalar_lea.vmem [#allocation7], %s379
          %s381 = smul.u32 32, %s30
          %383 = vsyncadd %s377, 0
          %s384 = smul.addr %s381, 4
          %s385 = scalar_lea.hbm %s8, %s384
          %s386 = sshll.u32 %s385, 4
          %s387 = int_to_ptr.hbm [resolvable:$true] %s386
          %s388 = sshll.u32 %s380, 4
          %s389 = int_to_ptr.vmem [resolvable:$true] %s388
          %394 = dma.hbm_to_vmem [thread:$0]  %s387, 2048, %s389, %s377, 64, 64, 4
        $region56: #{_lambda_.14} parent=35 // pred_fallthru
          _
      $region36: #{_lambda_.14} parent=5 // pred_fallthru
        _
      %p395 = scmp.le.s32.totalorder 1, %s22
      %p396 = scmp.lt.s32.totalorder %s22, 5
      %p397 = pnand %p395, %p396
      %p398 = pneg %p397
      // Predicated region
      $region57: #{_lambda_.14} parent=5 // pred_check
        _
      $region58: #{_lambda_.14} parent=5 // pred_check_branch
        %400 = sbr.rel (%p397) target = $region60
      $region59: #{_lambda_.14} parent=5 // pred_region
        %s401 = ssub.s32 %s22, 1
        %s402 = sand.u32 %s183, 1
        %s403 = scalar_lea.sflag [#allocation6], %s402
        %s404 = sand.u32 %s183, 1
        %s405 = smul.addr %s404, 128
        %s406 = scalar_lea.vmem [#allocation5], %s405
        // Predicated region
        $region61: #{_lambda_.14} parent=59 // pred_check
          %p407 = pneg %p196
        $region62: #{_lambda_.14} parent=59 // pred_check_branch
          %409 = sbr.rel (%p407) target = $region64
        $region63: #{_lambda_.14} parent=59 // pred_region
          %411 = dma.done %s403, 2048
        $region64: #{_lambda_.14} parent=59 // pred_fallthru
          _
        %s412 = sand.u32 %s235, 1
        %s413 = scalar_lea.sflag [#allocation8], %s412
        %s414 = sand.u32 %s235, 1
        %s415 = smul.addr %s414, 128
        %s416 = scalar_lea.vmem [#allocation7], %s415
        // Predicated region
        $region65: #{_lambda_.14} parent=59 // pred_check
          %p417 = pneg %p248
        $region66: #{_lambda_.14} parent=59 // pred_check_branch
          %419 = sbr.rel (%p417) target = $region68
        $region67: #{_lambda_.14} parent=59 // pred_region
          %421 = dma.done %s413, 2048
        $region68: #{_lambda_.14} parent=59 // pred_fallthru
          _
        %p422 = scmp.lt.s32.totalorder %s31, 1
        %s423 = scalar_select %p422, %s31, 1
        %s424 = smul.addr %s423, 8
        %s425 = scalar_lea.vmem %s0, %s424
        %p426 = pneg %p60
        %p427 = pneg %p57
        %p428 = scmp.lt.s32.totalorder %s31, 1
        %s429 = scalar_select %p428, %s31, 1
        %s430 = smul.addr %s429, 4
        %s431 = scalar_lea.vmem %s1, %s430
        %p432 = pneg %p86
        %p433 = pneg %p83
        %p434 = pneg %p107
        %p435 = pneg %p104
        %p436 = pneg %p128
        %p437 = pneg %p125
        %p438 = pneg %p149
        %p439 = pneg %p146
        %p440 = pneg %p170
        %p441 = pneg %p167
        %s442 = sand.u32 %s183, 1
        %s443 = scalar_lea.sflag [#allocation6], %s442
        %s444 = sand.u32 %s183, 1
        %s445 = smul.addr %s444, 128
        %s446 = scalar_lea.vmem [#allocation5], %s445
        %p447 = pneg %p196
        %p448 = pneg %p193
        %s449 = smul.u32 2, %s32
        %p450 = scmp.lt.s32.totalorder %s449, 3
        %s451 = scalar_select %p450, %s449, 3
        %s452 = scalar_lea.vmem %s7, %s451
        %p453 = pneg %p222
        %p454 = pneg %p219
        %s455 = sand.u32 %s235, 1
        %s456 = scalar_lea.sflag [#allocation8], %s455
        %s457 = sand.u32 %s235, 1
        %s458 = smul.addr %s457, 128
        %s459 = scalar_lea.vmem [#allocation7], %s458
        %p460 = pneg %p248
        %p461 = pneg %p245
        %p462 = pneg %p269
        %p463 = pneg %p266
        %p464 = pneg %p295
        %p465 = pneg %p292
        %p466 = scmp.lt.s32.totalorder %s31, 1
        %s467 = scalar_select %p466, %s31, 1
        %s468 = smul.addr %s467, 8
        %s469 = scalar_lea.vmem %s10, %s468
        %p470 = scmp.lt.s32.totalorder %s31, 1
        %s471 = scalar_select %p470, %s31, 1
        %s472 = smul.addr %s471, 8
        %s473 = scalar_lea.vmem %s0, %s472
        %p474 = scmp.lt.s32.totalorder %s31, 1
        %s475 = scalar_select %p474, %s31, 1
        %s476 = smul.addr %s475, 4
        %s477 = scalar_lea.vmem %s1, %s476
        %s478 = smul.u32 2, %s32
        %s479 = smul.u32 2, %s32
        %p480 = scmp.lt.s32.totalorder %s479, 3
        %s481 = scalar_select %p480, %s479, 3
        %s482 = scalar_lea.vmem %s7, %s481
        %s483 = smul.u32 2, %s32
        %s484 = smul.u32 32, %s32
        %p485 = scmp.lt.s32.totalorder %s31, 1
        %s486 = scalar_select %p485, %s31, 1
        %s487 = smul.addr %s486, 8
        %s488 = scalar_lea.vmem %s10, %s487
        %p489 = scmp.eq.s32.totalorder %s32, 0
        // Predicated region
        $region69: #{_lambda_.14} parent=59 // pred_check
          %p490 = pneg %p489
        $region70: #{_lambda_.14} parent=59 // pred_check_branch
          %492 = sbr.rel (%p490) target = $region72
        $region71: #{_lambda_.14} parent=59 // pred_region
          %v493 = vld [vmem:[%s477] sm:$0xf]
          %v494 = vld [vmem:[%s2] sm:$0xf]
          %v495 = vld [vmem:[%s2 + $0x4] sm:$0xf]
          %v496 = vld [vmem:[%s2 + $0x8] sm:$0xf]
          %v497 = vld [vmem:[%s2 + $0xc] sm:$0xf]
          %v498 = vld [vmem:[%s2 + $0x10] sm:$0xf]
          %v499 = vld [vmem:[%s2 + $0x14] sm:$0xf]
          %v500 = vld [vmem:[%s2 + $0x18] sm:$0xf]
          %v501 = vld [vmem:[%s2 + $0x1c] sm:$0xf]
          %v502 = vld [vmem:[%s2 + $0x20] sm:$0xf]
          %v503 = vld [vmem:[%s2 + $0x24] sm:$0xf]
          %v504 = vld [vmem:[%s2 + $0x28] sm:$0xf]
          %v505 = vld [vmem:[%s2 + $0x2c] sm:$0xf]
          %v506 = vld [vmem:[%s2 + $0x30] sm:$0xf]
          %v507 = vld [vmem:[%s2 + $0x34] sm:$0xf]
          %v508 = vld [vmem:[%s2 + $0x38] sm:$0xf]
          %v509 = vld [vmem:[%s2 + $0x3c] sm:$0xf]
          %v510 = vld [vmem:[%s3] sm:$0x1]
          %v512 = vperm.slane %v510, 0
          %v530 = vunpack.c.l.b16 %v494
          %v531 = vunpack.c.l.b16 %v495
          %v532 = vunpack.c.l.b16 %v496
          %v533 = vunpack.c.l.b16 %v497
          %v534 = vunpack.c.l.b16 %v498
          %v535 = vunpack.c.l.b16 %v499
          %v536 = vunpack.c.l.b16 %v500
          %v537 = vunpack.c.l.b16 %v501
          %v538 = vunpack.c.l.b16 %v502
          %v539 = vunpack.c.l.b16 %v503
          %v540 = vunpack.c.l.b16 %v504
          %v541 = vunpack.c.l.b16 %v505
          %v542 = vunpack.c.l.b16 %v506
          %v543 = vunpack.c.l.b16 %v507
          %v544 = vunpack.c.l.b16 %v508
          %v545 = vunpack.c.l.b16 %v509
          %v546 = vpack.c.b16 %v531, %v530
          %v547 = vpack.c.b16 %v533, %v532
          %v548 = vpack.c.b16 %v535, %v534
          %v549 = vpack.c.b16 %v537, %v536
          %v550 = vpack.c.b16 %v539, %v538
          %v551 = vpack.c.b16 %v541, %v540
          %v552 = vpack.c.b16 %v543, %v542
          %v553 = vpack.c.b16 %v545, %v544
          %562 = vmatpush.bf16.msra.mxu0 %v553
          %563 = vmatpush.bf16.msra.mxu0 %v552
          %564 = vmatpush.bf16.msra.mxu0 %v551
          %565 = vmatpush.bf16.msra.mxu0 %v550
          %566 = vmatpush.bf16.msra.mxu0 %v549
          %567 = vmatpush.bf16.msra.mxu0 %v548
          %568 = vmatpush.bf16.msra.mxu0 %v547
          %569 = vmatpush.bf16.msra.mxu0 %v546
          %570 = vmatmul.bf16.gmra.mxu0 %v493
          %v571 = vpop.f32.mrf.mxu0
          %v572 = vadd.f32 %v512, %v571
          %v573 = vpop.f32.mrf.mxu0
          %574 = vdwg.mxu0
          %v575 = vld [vmem:[%s473] sm:$0xff]
          %v576 = vadd.f32 %v575, %v572
          %577 = vst [vmem:[#allocation2] sm:$0xff] %v576
          %v578 = vld [vmem:[%s4] sm:$0x1]
          %v579 = vld [vmem:[%s5] sm:$0x1]
          %580 = vadd.xlane.f32.xlu0 %v576
          %v581 = vpop.xlane.xlu0 %580
          %v582 = vrcp.pop 128.0
          %v583 = vmul.f32 128.0, %v582
          %v584 = vsub.f32 1.0, %v583
          %v585 = vmul.f32 %v582, %v584
          %v586 = vadd.f32 %v582, %v585
          %vm587 = vweird.f32 %v582
          %v588 = vsel %vm587, %v582, %v586
          %v589 = vmul.f32 %v581, %v588
          %v590 = vsub.f32 %v576, %v589
          %v591 = vmul.f32 %v590, %v590
          %592 = vadd.xlane.f32.xlu0 %v591
          %v593 = vpop.xlane.xlu0 %592
          %v594 = vmul.f32 %v593, %v588
          %v595 = vadd.f32 %v594, 1e-06
          %v596 = vrsqrt.pop %v595
          %v597 = vmul.f32 %v596, %v595
          %v598 = vmul.f32 %v597, %v596
          %v599 = vmul.f32 0.5, %v598
          %v600 = vsub.f32 1.5, %v599
          %v601 = vmul.f32 %v596, %v600
          %vm602 = vweird.f32 %v595
          %vm603 = vweird.f32 %v596
          %vm604 = vmor %vm602, %vm603
          %v605 = vsel %vm604, %v596, %v601
          %v606 = vmul.f32 %v590, %v605
          %v608 = vperm.slane %v578, 0
          %v610 = vmul.f32 %v606, %v608
          %v612 = vperm.slane %v579, 0
          %v614 = vadd.f32 %v610, %v612
          %v615 = vpack.c.bf16 %v614, %v614
          %616 = vst [vmem:[#allocation3] sm:$0xf] %v615
          %617 = vst [vmem:[#allocation4] sm:$0xff] 0.0
        $region72: #{_lambda_.14} parent=59 // pred_fallthru
          _
        %v618 = vld [vmem:[#allocation3] sm:$0xf]
        %v619 = vld [vmem:[%s406] sm:$0xff]
        %v620 = vld [vmem:[%s406 + $0x8] sm:$0xff]
        %v621 = vld [vmem:[%s406 + $0x10] sm:$0xff]
        %v622 = vld [vmem:[%s406 + $0x18] sm:$0xff]
        %v623 = vld [vmem:[%s406 + $0x20] sm:$0xff]
        %v624 = vld [vmem:[%s406 + $0x28] sm:$0xff]
        %v625 = vld [vmem:[%s406 + $0x30] sm:$0xff]
        %v626 = vld [vmem:[%s406 + $0x38] sm:$0xff]
        %v627 = vld [vmem:[%s406 + $0x40] sm:$0xff]
        %v628 = vld [vmem:[%s406 + $0x48] sm:$0xff]
        %v629 = vld [vmem:[%s406 + $0x50] sm:$0xff]
        %v630 = vld [vmem:[%s406 + $0x58] sm:$0xff]
        %v631 = vld [vmem:[%s406 + $0x60] sm:$0xff]
        %v632 = vld [vmem:[%s406 + $0x68] sm:$0xff]
        %v633 = vld [vmem:[%s406 + $0x70] sm:$0xff]
        %v634 = vld [vmem:[%s406 + $0x78] sm:$0xff]
        %v635 = vld [vmem:[%s482] sm:$0x3]
        %v637 = vperm.slane %v635, 0
        %v638 = vperm.slane %v635, 1
        %v657 = vunpack.c.l.b16 %v619
        %v658 = vunpack.c.h.b16 %v619
        %v659 = vunpack.c.l.b16 %v620
        %v660 = vunpack.c.h.b16 %v620
        %v661 = vunpack.c.l.b16 %v621
        %v662 = vunpack.c.h.b16 %v621
        %v663 = vunpack.c.l.b16 %v622
        %v664 = vunpack.c.h.b16 %v622
        %v665 = vunpack.c.l.b16 %v623
        %v666 = vunpack.c.h.b16 %v623
        %v667 = vunpack.c.l.b16 %v624
        %v668 = vunpack.c.h.b16 %v624
        %v669 = vunpack.c.l.b16 %v625
        %v670 = vunpack.c.h.b16 %v625
        %v671 = vunpack.c.l.b16 %v626
        %v672 = vunpack.c.h.b16 %v626
        %v673 = vunpack.c.l.b16 %v627
        %v674 = vunpack.c.h.b16 %v627
        %v675 = vunpack.c.l.b16 %v628
        %v676 = vunpack.c.h.b16 %v628
        %v677 = vunpack.c.l.b16 %v629
        %v678 = vunpack.c.h.b16 %v629
        %v679 = vunpack.c.l.b16 %v630
        %v680 = vunpack.c.h.b16 %v630
        %v681 = vunpack.c.l.b16 %v631
        %v682 = vunpack.c.h.b16 %v631
        %v683 = vunpack.c.l.b16 %v632
        %v684 = vunpack.c.h.b16 %v632
        %v685 = vunpack.c.l.b16 %v633
        %v686 = vunpack.c.h.b16 %v633
        %v687 = vunpack.c.l.b16 %v634
        %v688 = vunpack.c.h.b16 %v634
        %v689 = vpack.c.b16 %v659, %v657
        %v690 = vpack.c.b16 %v660, %v658
        %v691 = vpack.c.b16 %v663, %v661
        %v692 = vpack.c.b16 %v664, %v662
        %v693 = vpack.c.b16 %v667, %v665
        %v694 = vpack.c.b16 %v668, %v666
        %v695 = vpack.c.b16 %v671, %v669
        %v696 = vpack.c.b16 %v672, %v670
        %v697 = vpack.c.b16 %v675, %v673
        %v698 = vpack.c.b16 %v676, %v674
        %v699 = vpack.c.b16 %v679, %v677
        %v700 = vpack.c.b16 %v680, %v678
        %v701 = vpack.c.b16 %v683, %v681
        %v702 = vpack.c.b16 %v684, %v682
        %v703 = vpack.c.b16 %v687, %v685
        %v704 = vpack.c.b16 %v688, %v686
        %721 = vmatpush.bf16.msra.mxu0 %v703
        %722 = vmatpush.bf16.msra.mxu0 %v701
        %723 = vmatpush.bf16.msra.mxu0 %v699
        %724 = vmatpush.bf16.msra.mxu0 %v697
        %725 = vmatpush.bf16.msra.mxu0 %v695
        %726 = vmatpush.bf16.msra.mxu0 %v693
        %727 = vmatpush.bf16.msra.mxu0 %v691
        %728 = vmatpush.bf16.msra.mxu0 %v689
        %729 = vmatmul.bf16.gmra.mxu0 %v618
        %v730 = vpop.f32.mrf.mxu0
        %v731 = vadd.f32 %v637, %v730
        %v732 = vpop.f32.mrf.mxu0
        %733 = vdwg.mxu0
        %734 = vmatpush.bf16.msra.mxu0 %v704
        %735 = vmatpush.bf16.msra.mxu0 %v702
        %736 = vmatpush.bf16.msra.mxu0 %v700
        %737 = vmatpush.bf16.msra.mxu0 %v698
        %738 = vmatpush.bf16.msra.mxu0 %v696
        %739 = vmatpush.bf16.msra.mxu0 %v694
        %740 = vmatpush.bf16.msra.mxu0 %v692
        %741 = vmatpush.bf16.msra.mxu0 %v690
        %742 = vmatmul.bf16.gmra.mxu0 %v618
        %v743 = vpop.f32.mrf.mxu0
        %v744 = vadd.f32 %v638, %v743
        %v745 = vpop.f32.mrf.mxu0
        %746 = vdwg.mxu0
        %v747 = vmul.f32 %v731, 0.5
        %v748 = vmul.f32 %v744, 0.5
        %v749 = vmul.f32 %v731, 0.70710677
        %v750 = vmul.f32 %v744, 0.70710677
        %v751 = vmul.f32 %v749, %v749
        %v752 = vmin.f32 16.0, %v751
        %v753 = vmul.f32 %v752, 2.1237322e-06
        %v754 = vadd.f32 %v753, 0.00028619796
        %v755 = vmul.f32 %v752, %v754
        %v756 = vadd.f32 %v755, 0.0036580483
        %v757 = vmul.f32 %v752, %v756
        %v758 = vadd.f32 %v757, 0.05243302
        %v759 = vmul.f32 %v752, %v758
        %v760 = vadd.f32 %v759, 0.18741608
        %v761 = vmul.f32 %v752, %v760
        %v762 = vadd.f32 %v761, 1.1283791
        %v763 = vmul.f32 %v749, %v762
        %v764 = vmul.f32 %v752, 3.8918573e-05
        %v765 = vadd.f32 %v764, 0.001143296
        %v766 = vmul.f32 %v752, %v765
        %v767 = vadd.f32 %v766, 0.014752088
        %v768 = vmul.f32 %v752, %v767
        %v769 = vadd.f32 %v768, 0.112945676
        %v770 = vmul.f32 %v752, %v769
        %v771 = vadd.f32 %v770, 0.4994258
        %v772 = vmul.f32 %v752, %v771
        %v773 = vadd.f32 %v772, 1.0
        %v774 = vrcp.pop %v773
        %v775 = vmul.f32 %v773, %v774
        %v776 = vsub.f32 1.0, %v775
        %v777 = vmul.f32 %v774, %v776
        %v778 = vadd.f32 %v774, %v777
        %vm779 = vweird.f32 %v773
        %vm780 = vweird.f32 %v774
        %vm781 = vmor %vm779, %vm780
        %v782 = vsel %vm781, %v774, %v778
        %v783 = vand.u32 2147483647, %v773
        %vm784 = vcmp.eq.f32.partialorder %v783, 8.507059e+37
        %v785 = vand.u32 %v773, 2147483648
        %v786 = vor.u32 1.1754944e-38, %v785
        %v787 = vsel %vm784, %v786, %v782
        %v788 = vmul.f32 %v763, %v787
        %v789 = vmin.f32 %v788, 1.0
        %v790 = vmax.f32 %v789, -1.0
        %v791 = vmul.f32 %v750, %v750
        %v792 = vmin.f32 16.0, %v791
        %v793 = vmul.f32 %v792, 2.1237322e-06
        %v794 = vadd.f32 %v793, 0.00028619796
        %v795 = vmul.f32 %v792, %v794
        %v796 = vadd.f32 %v795, 0.0036580483
        %v797 = vmul.f32 %v792, %v796
        %v798 = vadd.f32 %v797, 0.05243302
        %v799 = vmul.f32 %v792, %v798
        %v800 = vadd.f32 %v799, 0.18741608
        %v801 = vmul.f32 %v792, %v800
        %v802 = vadd.f32 %v801, 1.1283791
        %v803 = vmul.f32 %v750, %v802
        %v804 = vmul.f32 %v792, 3.8918573e-05
        %v805 = vadd.f32 %v804, 0.001143296
        %v806 = vmul.f32 %v792, %v805
        %v807 = vadd.f32 %v806, 0.014752088
        %v808 = vmul.f32 %v792, %v807
        %v809 = vadd.f32 %v808, 0.112945676
        %v810 = vmul.f32 %v792, %v809
        %v811 = vadd.f32 %v810, 0.4994258
        %v812 = vmul.f32 %v792, %v811
        %v813 = vadd.f32 %v812, 1.0
        %v814 = vrcp.pop %v813
        %v815 = vmul.f32 %v813, %v814
        %v816 = vsub.f32 1.0, %v815
        %v817 = vmul.f32 %v814, %v816
        %v818 = vadd.f32 %v814, %v817
        %vm819 = vweird.f32 %v813
        %vm820 = vweird.f32 %v814
        %vm821 = vmor %vm819, %vm820
        %v822 = vsel %vm821, %v814, %v818
        %v823 = vand.u32 2147483647, %v813
        %vm824 = vcmp.eq.f32.partialorder %v823, 8.507059e+37
        %v825 = vand.u32 %v813, 2147483648
        %v826 = vor.u32 1.1754944e-38, %v825
        %v827 = vsel %vm824, %v826, %v822
        %v828 = vmul.f32 %v803, %v827
        %v829 = vmin.f32 %v828, 1.0
        %v830 = vmax.f32 %v829, -1.0
        %v831 = vadd.f32 %v790, 1.0
        %v832 = vadd.f32 %v830, 1.0
        %v833 = vmul.f32 %v747, %v831
        %v834 = vmul.f32 %v748, %v832
        %v835 = vld [vmem:[#allocation4] sm:$0xff]
        %v836 = vpack.c.bf16 %v833, %v833
        %v837 = vpack.c.bf16 %v834, %v834
        %v838 = vld [vmem:[%s416] sm:$0xf]
        %v839 = vld [vmem:[%s416 + $0x4] sm:$0xf]
        %v840 = vld [vmem:[%s416 + $0x8] sm:$0xf]
        %v841 = vld [vmem:[%s416 + $0xc] sm:$0xf]
        %v842 = vld [vmem:[%s416 + $0x10] sm:$0xf]
        %v843 = vld [vmem:[%s416 + $0x14] sm:$0xf]
        %v844 = vld [vmem:[%s416 + $0x18] sm:$0xf]
        %v845 = vld [vmem:[%s416 + $0x1c] sm:$0xf]
        %v846 = vld [vmem:[%s416 + $0x20] sm:$0xf]
        %v847 = vld [vmem:[%s416 + $0x24] sm:$0xf]
        %v848 = vld [vmem:[%s416 + $0x28] sm:$0xf]
        %v849 = vld [vmem:[%s416 + $0x2c] sm:$0xf]
        %v850 = vld [vmem:[%s416 + $0x30] sm:$0xf]
        %v851 = vld [vmem:[%s416 + $0x34] sm:$0xf]
        %v852 = vld [vmem:[%s416 + $0x38] sm:$0xf]
        %v853 = vld [vmem:[%s416 + $0x3c] sm:$0xf]
        %v854 = vld [vmem:[%s416 + $0x40] sm:$0xf]
        %v855 = vld [vmem:[%s416 + $0x44] sm:$0xf]
        %v856 = vld [vmem:[%s416 + $0x48] sm:$0xf]
        %v857 = vld [vmem:[%s416 + $0x4c] sm:$0xf]
        %v858 = vld [vmem:[%s416 + $0x50] sm:$0xf]
        %v859 = vld [vmem:[%s416 + $0x54] sm:$0xf]
        %v860 = vld [vmem:[%s416 + $0x58] sm:$0xf]
        %v861 = vld [vmem:[%s416 + $0x5c] sm:$0xf]
        %v862 = vld [vmem:[%s416 + $0x60] sm:$0xf]
        %v863 = vld [vmem:[%s416 + $0x64] sm:$0xf]
        %v864 = vld [vmem:[%s416 + $0x68] sm:$0xf]
        %v865 = vld [vmem:[%s416 + $0x6c] sm:$0xf]
        %v866 = vld [vmem:[%s416 + $0x70] sm:$0xf]
        %v867 = vld [vmem:[%s416 + $0x74] sm:$0xf]
        %v868 = vld [vmem:[%s416 + $0x78] sm:$0xf]
        %v869 = vld [vmem:[%s416 + $0x7c] sm:$0xf]
        %v902 = vunpack.c.l.b16 %v838
        %v903 = vunpack.c.l.b16 %v839
        %v904 = vunpack.c.l.b16 %v840
        %v905 = vunpack.c.l.b16 %v841
        %v906 = vunpack.c.l.b16 %v842
        %v907 = vunpack.c.l.b16 %v843
        %v908 = vunpack.c.l.b16 %v844
        %v909 = vunpack.c.l.b16 %v845
        %v910 = vunpack.c.l.b16 %v846
        %v911 = vunpack.c.l.b16 %v847
        %v912 = vunpack.c.l.b16 %v848
        %v913 = vunpack.c.l.b16 %v849
        %v914 = vunpack.c.l.b16 %v850
        %v915 = vunpack.c.l.b16 %v851
        %v916 = vunpack.c.l.b16 %v852
        %v917 = vunpack.c.l.b16 %v853
        %v918 = vunpack.c.l.b16 %v854
        %v919 = vunpack.c.l.b16 %v855
        %v920 = vunpack.c.l.b16 %v856
        %v921 = vunpack.c.l.b16 %v857
        %v922 = vunpack.c.l.b16 %v858
        %v923 = vunpack.c.l.b16 %v859
        %v924 = vunpack.c.l.b16 %v860
        %v925 = vunpack.c.l.b16 %v861
        %v926 = vunpack.c.l.b16 %v862
        %v927 = vunpack.c.l.b16 %v863
        %v928 = vunpack.c.l.b16 %v864
        %v929 = vunpack.c.l.b16 %v865
        %v930 = vunpack.c.l.b16 %v866
        %v931 = vunpack.c.l.b16 %v867
        %v932 = vunpack.c.l.b16 %v868
        %v933 = vunpack.c.l.b16 %v869
        %v934 = vpack.c.b16 %v903, %v902
        %v935 = vpack.c.b16 %v905, %v904
        %v936 = vpack.c.b16 %v907, %v906
        %v937 = vpack.c.b16 %v909, %v908
        %v938 = vpack.c.b16 %v911, %v910
        %v939 = vpack.c.b16 %v913, %v912
        %v940 = vpack.c.b16 %v915, %v914
        %v941 = vpack.c.b16 %v917, %v916
        %v942 = vpack.c.b16 %v919, %v918
        %v943 = vpack.c.b16 %v921, %v920
        %v944 = vpack.c.b16 %v923, %v922
        %v945 = vpack.c.b16 %v925, %v924
        %v946 = vpack.c.b16 %v927, %v926
        %v947 = vpack.c.b16 %v929, %v928
        %v948 = vpack.c.b16 %v931, %v930
        %v949 = vpack.c.b16 %v933, %v932
        %966 = vmatpush.bf16.msra.mxu0 %v941
        %967 = vmatpush.bf16.msra.mxu0 %v940
        %968 = vmatpush.bf16.msra.mxu0 %v939
        %969 = vmatpush.bf16.msra.mxu0 %v938
        %970 = vmatpush.bf16.msra.mxu0 %v937
        %971 = vmatpush.bf16.msra.mxu0 %v936
        %972 = vmatpush.bf16.msra.mxu0 %v935
        %973 = vmatpush.bf16.msra.mxu0 %v934
        %974 = vmatmul.bf16.gmra.mxu0 %v836
        %v975 = vpop.f32.mrf.mxu0
        %v976 = vadd.f32 0.0, %v975
        %v977 = vpop.f32.mrf.mxu0
        %978 = vdwg.mxu0
        %979 = vmatpush.bf16.msra.mxu0 %v949
        %980 = vmatpush.bf16.msra.mxu0 %v948
        %981 = vmatpush.bf16.msra.mxu0 %v947
        %982 = vmatpush.bf16.msra.mxu0 %v946
        %983 = vmatpush.bf16.msra.mxu0 %v945
        %984 = vmatpush.bf16.msra.mxu0 %v944
        %985 = vmatpush.bf16.msra.mxu0 %v943
        %986 = vmatpush.bf16.msra.mxu0 %v942
        %987 = vmatmul.bf16.gmra.mxu0 %v837
        %v988 = vpop.f32.mrf.mxu0
        %v989 = vadd.f32 %v976, %v988
        %v990 = vpop.f32.mrf.mxu0
        %991 = vdwg.mxu0
        %v992 = vadd.f32 %v835, %v989
        %993 = vst [vmem:[#allocation4] sm:$0xff] %v992
        %p994 = scmp.eq.s32.totalorder %s32, 1
        // Predicated region
        $region73: #{_lambda_.14} parent=59 // pred_check
          %p995 = pneg %p994
        $region74: #{_lambda_.14} parent=59 // pred_check_branch
          %997 = sbr.rel (%p995) target = $region76
        $region75: #{_lambda_.14} parent=59 // pred_region
          %v998 = vld [vmem:[#allocation2] sm:$0xff]
          %v999 = vld [vmem:[#allocation4] sm:$0xff]
          %v1000 = vadd.f32 %v998, %v999
          %v1001 = vld [vmem:[%s9] sm:$0x1]
          %v1003 = vperm.slane %v1001, 0
          %v1005 = vadd.f32 %v1000, %v1003
          %1006 = vst [vmem:[%s488] sm:$0xff] %v1005
        $region76: #{_lambda_.14} parent=59 // pred_fallthru
          _
        %p1007 = scmp.lt.s32.totalorder %s31, 1
        %s1008 = scalar_select %p1007, %s31, 1
        %s1009 = smul.addr %s1008, 8
        %s1010 = scalar_lea.vmem %s10, %s1009
        // Predicated region
        $region77: #{_lambda_.14} parent=59 // pred_check
          %p1011 = pneg %p292
        $region78: #{_lambda_.14} parent=59 // pred_check_branch
          %1013 = sbr.rel (%p1011) target = $region80
        $region79: #{_lambda_.14} parent=59 // pred_region
          _
        $region80: #{_lambda_.14} parent=59 // pred_fallthru
          _
      $region60: #{_lambda_.14} parent=5 // pred_fallthru
        _
      %p1014 = scmp.le.s32.totalorder 2, %s22
      // Predicated region
      $region81: #{_lambda_.14} parent=5 // pred_check
        %p1015 = pneg %p1014
      $region82: #{_lambda_.14} parent=5 // pred_check_branch
        %1017 = sbr.rel (%p1015) target = $region84
      $region83: #{_lambda_.14} parent=5 // pred_region
        %s1018 = ssub.s32 %s22, 2
        // Predicated region
        $region85: #{_lambda_.14} parent=83 // pred_check
          %p1019 = pneg %p298
        $region86: #{_lambda_.14} parent=83 // pred_check_branch
          %1021 = sbr.rel (%p1019) target = $region88
        $region87: #{_lambda_.14} parent=83 // pred_region
          %p1022 = scmp.lt.s32.totalorder %s33, 1
          %s1023 = scalar_select %p1022, %s33, 1
          %s1024 = smul.addr %s1023, 8
          %s1025 = scalar_lea.vmem %s10, %s1024
        $region88: #{_lambda_.14} parent=83 // pred_fallthru
          _
      $region84: #{_lambda_.14} parent=5 // pred_fallthru
        _
    $region6: #{_lambda_.14} parent=1 // loop_footer
      %s26 = sadd.s32 1, %s22
    $region7: #{_lambda_.14} parent=1 // loop_footer_branch
      %21 = sbr.rel target = $region3
    $region8: #{_lambda_.14} parent=1 // loop_exit
      _
    %1026 = vsyncpa [#allocation6], 1
    %s1027 = scalar_lea.sflag [#allocation6], 1
    %1028 = vsyncpa %s1027, 1
    %1029 = vsyncpa [#allocation8], 1
    %s1030 = scalar_lea.sflag [#allocation8], 1
    %1031 = vsyncpa %s1030, 1

// kernel: _lambda_.15
$region0: #{_lambda_.15}
  #allocation0 [shape = 'u32[]', space=smem, size = 0x4, offset = 0x4, fixed_abs, tag = 'smem constant byte address 0x4 - core index']
  #allocation1 [shape = 'u32[72,128]{1,0:T(1,128)}', space=vmem, size = 0x9000, scoped, tag = 'internal scratch']
  #allocation2 [shape = 'f32[1,1]{1,0:T(1,128)S(1)}', space=vmem, size = 0x200, scoped, tag = 'scoped memory for _lambda_.15']
  %s0 = inlined_call_operand.vmem [shape: f32[2,128], index: 0, kind: input, shape index: {}]
  %s1 = inlined_call_operand.vmem [shape: f32[1,128], index: 1, kind: input, shape index: {}, may-alias: {1,3}]
  %s2 = inlined_call_operand.vmem [shape: f32[1,128], index: 2, kind: input, shape index: {}, may-alias: {2,4}]
  %s3 = inlined_call_operand.vmem [shape: f32[1,128], index: 3, kind: input, shape index: {}, may-alias: {1,3}]
  %s4 = inlined_call_operand.vmem [shape: f32[1,128], index: 4, kind: input, shape index: {}, may-alias: {2,4}]
  %s5 = inlined_call_operand.vmem [shape: bf16[128,512], index: 5, kind: input, shape index: {}]
  %s6 = inlined_call_operand.vmem [shape: f32[1,512], index: 6, kind: input, shape index: {}]
  %s7 = inlined_call_operand.vmem [shape: bf16[512,256], index: 7, kind: input, shape index: {}]
  %s8 = inlined_call_operand.vmem [shape: f32[1,256], index: 8, kind: input, shape index: {}]
  %s9 = inlined_call_operand.hbm [shape: bf16[256,1], index: 9, kind: input, shape index: {}]
  %s10 = inlined_call_operand.<no memory space> [shape: f32[1,1], index: 10, kind: input, shape index: {}]
  %s11 = inlined_call_operand.vmem [shape: f32[2,1], index: 11, kind: output, shape index: {}]
  %s12 = sld [smem:[#allocation0]]
  $region58: #{_lambda_.15} parent=0
    _
  %s14 = ssub.s32 1, %s12
  %s15 = scalar_select 0, %s14, %s12
  %v16 = vstv %s10
  %17 = vst [vmem:[#allocation2] sm:$0x1] %v16
  $region1: #{_lambda_.15} parent=0
    #allocation3 [shape = 'u8[65536]{0}', space=vmem, size = 0x10000, scoped, tag = 'input window, operand 9, single buffered']
    #allocation4 [shape = 's32[1]{0}', space=sflag, size = 0x4, scoped, tag = 'scoped memory for _lambda_.15']
    %18 = vsyncpa [#allocation4], 0
    // Predicated region
    $region2: #{_lambda_.15} parent=1 // pred_check
      _
    $region3: #{_lambda_.15} parent=1 // pred_check_branch
      %20 = sbr.rel (0) target = $region5
    $region4: #{_lambda_.15} parent=1 // pred_region
      _
    $region5: #{_lambda_.15} parent=1 // pred_fallthru
      _
    // Predicated region
    $region6: #{_lambda_.15} parent=1 // pred_check
      _
    $region7: #{_lambda_.15} parent=1 // pred_check_branch
      %22 = sbr.rel (0) target = $region9
    $region8: #{_lambda_.15} parent=1 // pred_region
      _
    $region9: #{_lambda_.15} parent=1 // pred_fallthru
      _
    // Predicated region
    $region10: #{_lambda_.15} parent=1 // pred_check
      _
    $region11: #{_lambda_.15} parent=1 // pred_check_branch
      %24 = sbr.rel (0) target = $region13
    $region12: #{_lambda_.15} parent=1 // pred_region
      _
    $region13: #{_lambda_.15} parent=1 // pred_fallthru
      _
    // Predicated region
    $region14: #{_lambda_.15} parent=1 // pred_check
      _
    $region15: #{_lambda_.15} parent=1 // pred_check_branch
      %26 = sbr.rel (0) target = $region17
    $region16: #{_lambda_.15} parent=1 // pred_region
      _
    $region17: #{_lambda_.15} parent=1 // pred_fallthru
      _
    // Predicated region
    $region18: #{_lambda_.15} parent=1 // pred_check
      _
    $region19: #{_lambda_.15} parent=1 // pred_check_branch
      %28 = sbr.rel (0) target = $region21
    $region20: #{_lambda_.15} parent=1 // pred_region
      _
    $region21: #{_lambda_.15} parent=1 // pred_fallthru
      _
    // Predicated region
    $region22: #{_lambda_.15} parent=1 // pred_check
      _
    $region23: #{_lambda_.15} parent=1 // pred_check_branch
      %30 = sbr.rel (0) target = $region25
    $region24: #{_lambda_.15} parent=1 // pred_region
      _
    $region25: #{_lambda_.15} parent=1 // pred_fallthru
      _
    // Predicated region
    $region26: #{_lambda_.15} parent=1 // pred_check
      _
    $region27: #{_lambda_.15} parent=1 // pred_check_branch
      %32 = sbr.rel (0) target = $region29
    $region28: #{_lambda_.15} parent=1 // pred_region
      _
    $region29: #{_lambda_.15} parent=1 // pred_fallthru
      _
    // Predicated region
    $region30: #{_lambda_.15} parent=1 // pred_check
      _
    $region31: #{_lambda_.15} parent=1 // pred_check_branch
      %34 = sbr.rel (0) target = $region33
    $region32: #{_lambda_.15} parent=1 // pred_region
      _
    $region33: #{_lambda_.15} parent=1 // pred_fallthru
      _
    // Predicated region
    $region34: #{_lambda_.15} parent=1 // pred_check
      _
    $region35: #{_lambda_.15} parent=1 // pred_check_branch
      %36 = sbr.rel (0) target = $region37
    $region36: #{_lambda_.15} parent=1 // pred_region
      _
    $region37: #{_lambda_.15} parent=1 // pred_fallthru
      _
    // Predicated region
    $region38: #{_lambda_.15} parent=1 // pred_check
      _
    $region39: #{_lambda_.15} parent=1 // pred_check_branch
      %38 = sbr.rel (0) target = $region41
    $region40: #{_lambda_.15} parent=1 // pred_region
      %40 = vsyncadd [#allocation4], 0
      %s41 = sshll.u32 %s9, 4
      %s42 = int_to_ptr.hbm [resolvable:$true] %s41
      %s43 = sshll.u32 [#allocation3], 4
      %s44 = int_to_ptr.vmem [resolvable:$true] %s43
      %49 = dma.hbm_to_vmem [thread:$0]  %s42, 2048, %s44, [#allocation4], 64, 64, 4
    $region41: #{_lambda_.15} parent=1 // pred_fallthru
      _
    // Predicated region
    $region42: #{_lambda_.15} parent=1 // pred_check
      _
    $region43: #{_lambda_.15} parent=1 // pred_check_branch
      %51 = sbr.rel (0) target = $region45
    $region44: #{_lambda_.15} parent=1 // pred_region
      _
    $region45: #{_lambda_.15} parent=1 // pred_fallthru
      _
    // Predicated region
    $region46: #{_lambda_.15} parent=1 // pred_check
      _
    $region47: #{_lambda_.15} parent=1 // pred_check_branch
      %53 = sbr.rel (0) target = $region49
    $region48: #{_lambda_.15} parent=1 // pred_region
      %55 = dma.done [#allocation4], 2048
    $region49: #{_lambda_.15} parent=1 // pred_fallthru
      _
    %v56 = vld [vmem:[%s0] sm:$0x3]
    %v57 = vld [vmem:[%s1] sm:$0x1]
    %v58 = vld [vmem:[%s2] sm:$0x1]
    %vm59 = vcmask 1041408
    %v60 = vsel %vm59, %v56, 0.0
    %61 = vadd.xlane.f32.xlu0 %v60
    %v62 = vpop.xlane.xlu0 %61
    %v63 = vrcp.pop 128.0
    %v64 = vmul.f32 128.0, %v63
    %v65 = vsub.f32 1.0, %v64
    %v66 = vmul.f32 %v63, %v65
    %v67 = vadd.f32 %v63, %v66
    %vm68 = vweird.f32 %v63
    %v69 = vsel %vm68, %v63, %v67
    %v70 = vmul.f32 %v62, %v69
    %v71 = vsub.f32 %v56, %v70
    %v72 = vmul.f32 %v71, %v71
    %v73 = vsel %vm59, %v72, 0.0
    %74 = vadd.xlane.f32.xlu0 %v73
    %v75 = vpop.xlane.xlu0 %74
    %v76 = vmul.f32 %v75, %v69
    %v77 = vadd.f32 %v76, 1e-06
    %v78 = vrsqrt.pop %v77
    %v79 = vmul.f32 %v78, %v77
    %v80 = vmul.f32 %v79, %v78
    %v81 = vmul.f32 0.5, %v80
    %v82 = vsub.f32 1.5, %v81
    %v83 = vmul.f32 %v78, %v82
    %vm84 = vweird.f32 %v77
    %vm85 = vweird.f32 %v78
    %vm86 = vmor %vm84, %vm85
    %v87 = vsel %vm86, %v78, %v83
    %v88 = vmul.f32 %v71, %v87
    %v90 = vperm.slane %v57, 0
    %v92 = vmul.f32 %v88, %v90
    %v94 = vperm.slane %v58, 0
    %v96 = vadd.f32 %v92, %v94
    %v97 = vld [vmem:[%s3] sm:$0x1]
    %v98 = vld [vmem:[%s4] sm:$0x1]
    %v99 = vsel %vm59, %v96, 0.0
    %100 = vadd.xlane.f32.xlu0 %v99
    %v101 = vpop.xlane.xlu0 %100
    %v102 = vmul.f32 %v101, %v69
    %v103 = vsub.f32 %v96, %v102
    %v104 = vmul.f32 %v103, %v103
    %v105 = vsel %vm59, %v104, 0.0
    %106 = vadd.xlane.f32.xlu0 %v105
    %v107 = vpop.xlane.xlu0 %106
    %v108 = vmul.f32 %v107, %v69
    %v109 = vadd.f32 %v108, 1e-05
    %v110 = vrsqrt.pop %v109
    %v111 = vmul.f32 %v110, %v109
    %v112 = vmul.f32 %v111, %v110
    %v113 = vmul.f32 0.5, %v112
    %v114 = vsub.f32 1.5, %v113
    %v115 = vmul.f32 %v110, %v114
    %vm116 = vweird.f32 %v109
    %vm117 = vweird.f32 %v110
    %vm118 = vmor %vm116, %vm117
    %v119 = vsel %vm118, %v110, %v115
    %v120 = vmul.f32 %v103, %v119
    %v122 = vperm.slane %v97, 0
    %v124 = vmul.f32 %v120, %v122
    %v126 = vperm.slane %v98, 0
    %v128 = vadd.f32 %v124, %v126
    %v129 = vpack.c.bf16 %v128, %v128
    %v130 = vld [vmem:[%s5] sm:$0xff]
    %v131 = vld [vmem:[%s5 + $0x8] sm:$0xff]
    %v132 = vld [vmem:[%s5 + $0x10] sm:$0xff]
    %v133 = vld [vmem:[%s5 + $0x18] sm:$0xff]
    %v134 = vld [vmem:[%s5 + $0x20] sm:$0xff]
    %v135 = vld [vmem:[%s5 + $0x28] sm:$0xff]
    %v136 = vld [vmem:[%s5 + $0x30] sm:$0xff]
    %v137 = vld [vmem:[%s5 + $0x38] sm:$0xff]
    %v138 = vld [vmem:[%s5 + $0x40] sm:$0xff]
    %v139 = vld [vmem:[%s5 + $0x48] sm:$0xff]
    %v140 = vld [vmem:[%s5 + $0x50] sm:$0xff]
    %v141 = vld [vmem:[%s5 + $0x58] sm:$0xff]
    %v142 = vld [vmem:[%s5 + $0x60] sm:$0xff]
    %v143 = vld [vmem:[%s5 + $0x68] sm:$0xff]
    %v144 = vld [vmem:[%s5 + $0x70] sm:$0xff]
    %v145 = vld [vmem:[%s5 + $0x78] sm:$0xff]
    %v146 = vld [vmem:[%s5 + $0x80] sm:$0xff]
    %v147 = vld [vmem:[%s5 + $0x88] sm:$0xff]
    %v148 = vld [vmem:[%s5 + $0x90] sm:$0xff]
    %v149 = vld [vmem:[%s5 + $0x98] sm:$0xff]
    %v150 = vld [vmem:[%s5 + $0xa0] sm:$0xff]
    %v151 = vld [vmem:[%s5 + $0xa8] sm:$0xff]
    %v152 = vld [vmem:[%s5 + $0xb0] sm:$0xff]
    %v153 = vld [vmem:[%s5 + $0xb8] sm:$0xff]
    %v154 = vld [vmem:[%s5 + $0xc0] sm:$0xff]
    %v155 = vld [vmem:[%s5 + $0xc8] sm:$0xff]
    %v156 = vld [vmem:[%s5 + $0xd0] sm:$0xff]
    %v157 = vld [vmem:[%s5 + $0xd8] sm:$0xff]
    %v158 = vld [vmem:[%s5 + $0xe0] sm:$0xff]
    %v159 = vld [vmem:[%s5 + $0xe8] sm:$0xff]
    %v160 = vld [vmem:[%s5 + $0xf0] sm:$0xff]
    %v161 = vld [vmem:[%s5 + $0xf8] sm:$0xff]
    %v162 = vld [vmem:[%s6] sm:$0xf]
    %v164 = vperm.slane %v162, 0
    %v165 = vperm.slane %v162, 1
    %v166 = vperm.slane %v162, 2
    %v167 = vperm.slane %v162, 3
    %v204 = vunpack.c.l.b16 %v130
    %v205 = vunpack.c.h.b16 %v130
    %v206 = vunpack.c.l.b16 %v131
    %v207 = vunpack.c.h.b16 %v131
    %v208 = vunpack.c.l.b16 %v132
    %v209 = vunpack.c.h.b16 %v132
    %v210 = vunpack.c.l.b16 %v133
    %v211 = vunpack.c.h.b16 %v133
    %v212 = vunpack.c.l.b16 %v134
    %v213 = vunpack.c.h.b16 %v134
    %v214 = vunpack.c.l.b16 %v135
    %v215 = vunpack.c.h.b16 %v135
    %v216 = vunpack.c.l.b16 %v136
    %v217 = vunpack.c.h.b16 %v136
    %v218 = vunpack.c.l.b16 %v137
    %v219 = vunpack.c.h.b16 %v137
    %v220 = vunpack.c.l.b16 %v138
    %v221 = vunpack.c.h.b16 %v138
    %v222 = vunpack.c.l.b16 %v139
    %v223 = vunpack.c.h.b16 %v139
    %v224 = vunpack.c.l.b16 %v140
    %v225 = vunpack.c.h.b16 %v140
    %v226 = vunpack.c.l.b16 %v141
    %v227 = vunpack.c.h.b16 %v141
    %v228 = vunpack.c.l.b16 %v142
    %v229 = vunpack.c.h.b16 %v142
    %v230 = vunpack.c.l.b16 %v143
    %v231 = vunpack.c.h.b16 %v143
    %v232 = vunpack.c.l.b16 %v144
    %v233 = vunpack.c.h.b16 %v144
    %v234 = vunpack.c.l.b16 %v145
    %v235 = vunpack.c.h.b16 %v145
    %v236 = vunpack.c.l.b16 %v146
    %v237 = vunpack.c.h.b16 %v146
    %v238 = vunpack.c.l.b16 %v147
    %v239 = vunpack.c.h.b16 %v147
    %v240 = vunpack.c.l.b16 %v148
    %v241 = vunpack.c.h.b16 %v148
    %v242 = vunpack.c.l.b16 %v149
    %v243 = vunpack.c.h.b16 %v149
    %v244 = vunpack.c.l.b16 %v150
    %v245 = vunpack.c.h.b16 %v150
    %v246 = vunpack.c.l.b16 %v151
    %v247 = vunpack.c.h.b16 %v151
    %v248 = vunpack.c.l.b16 %v152
    %v249 = vunpack.c.h.b16 %v152
    %v250 = vunpack.c.l.b16 %v153
    %v251 = vunpack.c.h.b16 %v153
    %v252 = vunpack.c.l.b16 %v154
    %v253 = vunpack.c.h.b16 %v154
    %v254 = vunpack.c.l.b16 %v155
    %v255 = vunpack.c.h.b16 %v155
    %v256 = vunpack.c.l.b16 %v156
    %v257 = vunpack.c.h.b16 %v156
    %v258 = vunpack.c.l.b16 %v157
    %v259 = vunpack.c.h.b16 %v157
    %v260 = vunpack.c.l.b16 %v158
    %v261 = vunpack.c.h.b16 %v158
    %v262 = vunpack.c.l.b16 %v159
    %v263 = vunpack.c.h.b16 %v159
    %v264 = vunpack.c.l.b16 %v160
    %v265 = vunpack.c.h.b16 %v160
    %v266 = vunpack.c.l.b16 %v161
    %v267 = vunpack.c.h.b16 %v161
    %v268 = vpack.c.b16 %v208, %v204
    %v269 = vpack.c.b16 %v209, %v205
    %v270 = vpack.c.b16 %v210, %v206
    %v271 = vpack.c.b16 %v211, %v207
    %v272 = vpack.c.b16 %v216, %v212
    %v273 = vpack.c.b16 %v217, %v213
    %v274 = vpack.c.b16 %v218, %v214
    %v275 = vpack.c.b16 %v219, %v215
    %v276 = vpack.c.b16 %v224, %v220
    %v277 = vpack.c.b16 %v225, %v221
    %v278 = vpack.c.b16 %v226, %v222
    %v279 = vpack.c.b16 %v227, %v223
    %v280 = vpack.c.b16 %v232, %v228
    %v281 = vpack.c.b16 %v233, %v229
    %v282 = vpack.c.b16 %v234, %v230
    %v283 = vpack.c.b16 %v235, %v231
    %v284 = vpack.c.b16 %v240, %v236
    %v285 = vpack.c.b16 %v241, %v237
    %v286 = vpack.c.b16 %v242, %v238
    %v287 = vpack.c.b16 %v243, %v239
    %v288 = vpack.c.b16 %v248, %v244
    %v289 = vpack.c.b16 %v249, %v245
    %v290 = vpack.c.b16 %v250, %v246
    %v291 = vpack.c.b16 %v251, %v247
    %v292 = vpack.c.b16 %v256, %v252
    %v293 = vpack.c.b16 %v257, %v253
    %v294 = vpack.c.b16 %v258, %v254
    %v295 = vpack.c.b16 %v259, %v255
    %v296 = vpack.c.b16 %v264, %v260
    %v297 = vpack.c.b16 %v265, %v261
    %v298 = vpack.c.b16 %v266, %v262
    %v299 = vpack.c.b16 %v267, %v263
    %332 = vmatpush.bf16.msra.mxu0 %v296
    %333 = vmatpush.bf16.msra.mxu0 %v292
    %334 = vmatpush.bf16.msra.mxu0 %v288
    %335 = vmatpush.bf16.msra.mxu0 %v284
    %336 = vmatpush.bf16.msra.mxu0 %v280
    %337 = vmatpush.bf16.msra.mxu0 %v276
    %338 = vmatpush.bf16.msra.mxu0 %v272
    %339 = vmatpush.bf16.msra.mxu0 %v268
    %340 = vmatmul.bf16.gmra.mxu0 %v129
    %v341 = vpop.f32.mrf.mxu0
    %v342 = vadd.f32 %v164, %v341
    %v343 = vpop.f32.mrf.mxu0
    %344 = vdwg.mxu0
    %345 = vmatpush.bf16.msra.mxu0 %v297
    %346 = vmatpush.bf16.msra.mxu0 %v293
    %347 = vmatpush.bf16.msra.mxu0 %v289
    %348 = vmatpush.bf16.msra.mxu0 %v285
    %349 = vmatpush.bf16.msra.mxu0 %v281
    %350 = vmatpush.bf16.msra.mxu0 %v277
    %351 = vmatpush.bf16.msra.mxu0 %v273
    %352 = vmatpush.bf16.msra.mxu0 %v269
    %353 = vmatmul.bf16.gmra.mxu0 %v129
    %v354 = vpop.f32.mrf.mxu0
    %v355 = vadd.f32 %v165, %v354
    %v356 = vpop.f32.mrf.mxu0
    %357 = vdwg.mxu0
    %358 = vmatpush.bf16.msra.mxu0 %v298
    %359 = vmatpush.bf16.msra.mxu0 %v294
    %360 = vmatpush.bf16.msra.mxu0 %v290
    %361 = vmatpush.bf16.msra.mxu0 %v286
    %362 = vmatpush.bf16.msra.mxu0 %v282
    %363 = vmatpush.bf16.msra.mxu0 %v278
    %364 = vmatpush.bf16.msra.mxu0 %v274
    %365 = vmatpush.bf16.msra.mxu0 %v270
    %366 = vmatmul.bf16.gmra.mxu0 %v129
    %v367 = vpop.f32.mrf.mxu0
    %v368 = vadd.f32 %v166, %v367
    %v369 = vpop.f32.mrf.mxu0
    %370 = vdwg.mxu0
    %371 = vmatpush.bf16.msra.mxu0 %v299
    %372 = vmatpush.bf16.msra.mxu0 %v295
    %373 = vmatpush.bf16.msra.mxu0 %v291
    %374 = vmatpush.bf16.msra.mxu0 %v287
    %375 = vmatpush.bf16.msra.mxu0 %v283
    %376 = vmatpush.bf16.msra.mxu0 %v279
    %377 = vmatpush.bf16.msra.mxu0 %v275
    %378 = vmatpush.bf16.msra.mxu0 %v271
    %379 = vmatmul.bf16.gmra.mxu0 %v129
    %v380 = vpop.f32.mrf.mxu0
    %v381 = vadd.f32 %v167, %v380
    %v382 = vpop.f32.mrf.mxu0
    %383 = vdwg.mxu0
    %v384 = vmul.f32 %v342, 0.5
    %v385 = vmul.f32 %v355, 0.5
    %v386 = vmul.f32 %v368, 0.5
    %v387 = vmul.f32 %v381, 0.5
    %v388 = vmul.f32 %v342, 0.70710677
    %v389 = vmul.f32 %v355, 0.70710677
    %v390 = vmul.f32 %v368, 0.70710677
    %v391 = vmul.f32 %v381, 0.70710677
    %v392 = vmul.f32 %v388, %v388
    %v393 = vmin.f32 16.0, %v392
    %v394 = vmul.f32 %v393, 2.1237322e-06
    %v395 = vadd.f32 %v394, 0.00028619796
    %v396 = vmul.f32 %v393, %v395
    %v397 = vadd.f32 %v396, 0.0036580483
    %v398 = vmul.f32 %v393, %v397
    %v399 = vadd.f32 %v398, 0.05243302
    %v400 = vmul.f32 %v393, %v399
    %v401 = vadd.f32 %v400, 0.18741608
    %v402 = vmul.f32 %v393, %v401
    %v403 = vadd.f32 %v402, 1.1283791
    %v404 = vmul.f32 %v388, %v403
    %v405 = vmul.f32 %v393, 3.8918573e-05
    %v406 = vadd.f32 %v405, 0.001143296
    %v407 = vmul.f32 %v393, %v406
    %v408 = vadd.f32 %v407, 0.014752088
    %v409 = vmul.f32 %v393, %v408
    %v410 = vadd.f32 %v409, 0.112945676
    %v411 = vmul.f32 %v393, %v410
    %v412 = vadd.f32 %v411, 0.4994258
    %v413 = vmul.f32 %v393, %v412
    %v414 = vadd.f32 %v413, 1.0
    %v415 = vrcp.pop %v414
    %v416 = vmul.f32 %v414, %v415
    %v417 = vsub.f32 1.0, %v416
    %v418 = vmul.f32 %v415, %v417
    %v419 = vadd.f32 %v415, %v418
    %vm420 = vweird.f32 %v414
    %vm421 = vweird.f32 %v415
    %vm422 = vmor %vm420, %vm421
    %v423 = vsel %vm422, %v415, %v419
    %v424 = vand.u32 2147483647, %v414
    %vm425 = vcmp.eq.f32.partialorder %v424, 8.507059e+37
    %v426 = vand.u32 %v414, 2147483648
    %v427 = vor.u32 1.1754944e-38, %v426
    %v428 = vsel %vm425, %v427, %v423
    %v429 = vmul.f32 %v404, %v428
    %v430 = vmin.f32 %v429, 1.0
    %v431 = vmax.f32 %v430, -1.0
    %v432 = vmul.f32 %v389, %v389
    %v433 = vmin.f32 16.0, %v432
    %v434 = vmul.f32 %v433, 2.1237322e-06
    %v435 = vadd.f32 %v434, 0.00028619796
    %v436 = vmul.f32 %v433, %v435
    %v437 = vadd.f32 %v436, 0.0036580483
    %v438 = vmul.f32 %v433, %v437
    %v439 = vadd.f32 %v438, 0.05243302
    %v440 = vmul.f32 %v433, %v439
    %v441 = vadd.f32 %v440, 0.18741608
    %v442 = vmul.f32 %v433, %v441
    %v443 = vadd.f32 %v442, 1.1283791
    %v444 = vmul.f32 %v389, %v443
    %v445 = vmul.f32 %v433, 3.8918573e-05
    %v446 = vadd.f32 %v445, 0.001143296
    %v447 = vmul.f32 %v433, %v446
    %v448 = vadd.f32 %v447, 0.014752088
    %v449 = vmul.f32 %v433, %v448
    %v450 = vadd.f32 %v449, 0.112945676
    %v451 = vmul.f32 %v433, %v450
    %v452 = vadd.f32 %v451, 0.4994258
    %v453 = vmul.f32 %v433, %v452
    %v454 = vadd.f32 %v453, 1.0
    %v455 = vrcp.pop %v454
    %v456 = vmul.f32 %v454, %v455
    %v457 = vsub.f32 1.0, %v456
    %v458 = vmul.f32 %v455, %v457
    %v459 = vadd.f32 %v455, %v458
    %vm460 = vweird.f32 %v454
    %vm461 = vweird.f32 %v455
    %vm462 = vmor %vm460, %vm461
    %v463 = vsel %vm462, %v455, %v459
    %v464 = vand.u32 2147483647, %v454
    %vm465 = vcmp.eq.f32.partialorder %v464, 8.507059e+37
    %v466 = vand.u32 %v454, 2147483648
    %v467 = vor.u32 1.1754944e-38, %v466
    %v468 = vsel %vm465, %v467, %v463
    %v469 = vmul.f32 %v444, %v468
    %v470 = vmin.f32 %v469, 1.0
    %v471 = vmax.f32 %v470, -1.0
    %v472 = vmul.f32 %v390, %v390
    %v473 = vmin.f32 16.0, %v472
    %v474 = vmul.f32 %v473, 2.1237322e-06
    %v475 = vadd.f32 %v474, 0.00028619796
    %v476 = vmul.f32 %v473, %v475
    %v477 = vadd.f32 %v476, 0.0036580483
    %v478 = vmul.f32 %v473, %v477
    %v479 = vadd.f32 %v478, 0.05243302
    %v480 = vmul.f32 %v473, %v479
    %v481 = vadd.f32 %v480, 0.18741608
    %v482 = vmul.f32 %v473, %v481
    %v483 = vadd.f32 %v482, 1.1283791
    %v484 = vmul.f32 %v390, %v483
    %v485 = vmul.f32 %v473, 3.8918573e-05
    %v486 = vadd.f32 %v485, 0.001143296
    %v487 = vmul.f32 %v473, %v486
    %v488 = vadd.f32 %v487, 0.014752088
    %v489 = vmul.f32 %v473, %v488
    %v490 = vadd.f32 %v489, 0.112945676
    %v491 = vmul.f32 %v473, %v490
    %v492 = vadd.f32 %v491, 0.4994258
    %v493 = vmul.f32 %v473, %v492
    %v494 = vadd.f32 %v493, 1.0
    %v495 = vrcp.pop %v494
    %v496 = vmul.f32 %v494, %v495
    %v497 = vsub.f32 1.0, %v496
    %v498 = vmul.f32 %v495, %v497
    %v499 = vadd.f32 %v495, %v498
    %vm500 = vweird.f32 %v494
    %vm501 = vweird.f32 %v495
    %vm502 = vmor %vm500, %vm501
    %v503 = vsel %vm502, %v495, %v499
    %v504 = vand.u32 2147483647, %v494
    %vm505 = vcmp.eq.f32.partialorder %v504, 8.507059e+37
    %v506 = vand.u32 %v494, 2147483648
    %v507 = vor.u32 1.1754944e-38, %v506
    %v508 = vsel %vm505, %v507, %v503
    %v509 = vmul.f32 %v484, %v508
    %v510 = vmin.f32 %v509, 1.0
    %v511 = vmax.f32 %v510, -1.0
    %v512 = vmul.f32 %v391, %v391
    %v513 = vmin.f32 16.0, %v512
    %v514 = vmul.f32 %v513, 2.1237322e-06
    %v515 = vadd.f32 %v514, 0.00028619796
    %v516 = vmul.f32 %v513, %v515
    %v517 = vadd.f32 %v516, 0.0036580483
    %v518 = vmul.f32 %v513, %v517
    %v519 = vadd.f32 %v518, 0.05243302
    %v520 = vmul.f32 %v513, %v519
    %v521 = vadd.f32 %v520, 0.18741608
    %v522 = vmul.f32 %v513, %v521
    %v523 = vadd.f32 %v522, 1.1283791
    %v524 = vmul.f32 %v391, %v523
    %v525 = vmul.f32 %v513, 3.8918573e-05
    %v526 = vadd.f32 %v525, 0.001143296
    %v527 = vmul.f32 %v513, %v526
    %v528 = vadd.f32 %v527, 0.014752088
    %v529 = vmul.f32 %v513, %v528
    %v530 = vadd.f32 %v529, 0.112945676
    %v531 = vmul.f32 %v513, %v530
    %v532 = vadd.f32 %v531, 0.4994258
    %v533 = vmul.f32 %v513, %v532
    %v534 = vadd.f32 %v533, 1.0
    %v535 = vrcp.pop %v534
    %v536 = vmul.f32 %v534, %v535
    %v537 = vsub.f32 1.0, %v536
    %v538 = vmul.f32 %v535, %v537
    %v539 = vadd.f32 %v535, %v538
    %vm540 = vweird.f32 %v534
    %vm541 = vweird.f32 %v535
    %vm542 = vmor %vm540, %vm541
    %v543 = vsel %vm542, %v535, %v539
    %v544 = vand.u32 2147483647, %v534
    %vm545 = vcmp.eq.f32.partialorder %v544, 8.507059e+37
    %v546 = vand.u32 %v534, 2147483648
    %v547 = vor.u32 1.1754944e-38, %v546
    %v548 = vsel %vm545, %v547, %v543
    %v549 = vmul.f32 %v524, %v548
    %v550 = vmin.f32 %v549, 1.0
    %v551 = vmax.f32 %v550, -1.0
    %v552 = vadd.f32 %v431, 1.0
    %v553 = vadd.f32 %v471, 1.0
    %v554 = vadd.f32 %v511, 1.0
    %v555 = vadd.f32 %v551, 1.0
    %v556 = vmul.f32 %v384, %v552
    %v557 = vmul.f32 %v385, %v553
    %v558 = vmul.f32 %v386, %v554
    %v559 = vmul.f32 %v387, %v555
    %v560 = vpack.c.bf16 %v556, %v556
    %v561 = vpack.c.bf16 %v557, %v557
    %v562 = vpack.c.bf16 %v558, %v558
    %v563 = vpack.c.bf16 %v559, %v559
    %v564 = vld [vmem:[%s7] sm:$0xff]
    %v565 = vld [vmem:[%s7 + $0x8] sm:$0xff]
    %v566 = vld [vmem:[%s7 + $0x10] sm:$0xff]
    %v567 = vld [vmem:[%s7 + $0x18] sm:$0xff]
    %v568 = vld [vmem:[%s7 + $0x20] sm:$0xff]
    %v569 = vld [vmem:[%s7 + $0x28] sm:$0xff]
    %v570 = vld [vmem:[%s7 + $0x30] sm:$0xff]
    %v571 = vld [vmem:[%s7 + $0x38] sm:$0xff]
    %v572 = vld [vmem:[%s7 + $0x40] sm:$0xff]
    %v573 = vld [vmem:[%s7 + $0x48] sm:$0xff]
    %v574 = vld [vmem:[%s7 + $0x50] sm:$0xff]
    %v575 = vld [vmem:[%s7 + $0x58] sm:$0xff]
    %v576 = vld [vmem:[%s7 + $0x60] sm:$0xff]
    %v577 = vld [vmem:[%s7 + $0x68] sm:$0xff]
    %v578 = vld [vmem:[%s7 + $0x70] sm:$0xff]
    %v579 = vld [vmem:[%s7 + $0x78] sm:$0xff]
    %v580 = vld [vmem:[%s7 + $0x80] sm:$0xff]
    %v581 = vld [vmem:[%s7 + $0x88] sm:$0xff]
    %v582 = vld [vmem:[%s7 + $0x90] sm:$0xff]
    %v583 = vld [vmem:[%s7 + $0x98] sm:$0xff]
    %v584 = vld [vmem:[%s7 + $0xa0] sm:$0xff]
    %v585 = vld [vmem:[%s7 + $0xa8] sm:$0xff]
    %v586 = vld [vmem:[%s7 + $0xb0] sm:$0xff]
    %v587 = vld [vmem:[%s7 + $0xb8] sm:$0xff]
    %v588 = vld [vmem:[%s7 + $0xc0] sm:$0xff]
    %v589 = vld [vmem:[%s7 + $0xc8] sm:$0xff]
    %v590 = vld [vmem:[%s7 + $0xd0] sm:$0xff]
    %v591 = vld [vmem:[%s7 + $0xd8] sm:$0xff]
    %v592 = vld [vmem:[%s7 + $0xe0] sm:$0xff]
    %v593 = vld [vmem:[%s7 + $0xe8] sm:$0xff]
    %v594 = vld [vmem:[%s7 + $0xf0] sm:$0xff]
    %v595 = vld [vmem:[%s7 + $0xf8] sm:$0xff]
    %v596 = vld [vmem:[%s7 + $0x100] sm:$0xff]
    %v597 = vld [vmem:[%s7 + $0x108] sm:$0xff]
    %v598 = vld [vmem:[%s7 + $0x110] sm:$0xff]
    %v599 = vld [vmem:[%s7 + $0x118] sm:$0xff]
    %v600 = vld [vmem:[%s7 + $0x120] sm:$0xff]
    %v601 = vld [vmem:[%s7 + $0x128] sm:$0xff]
    %v602 = vld [vmem:[%s7 + $0x130] sm:$0xff]
    %v603 = vld [vmem:[%s7 + $0x138] sm:$0xff]
    %v604 = vld [vmem:[%s7 + $0x140] sm:$0xff]
    %v605 = vld [vmem:[%s7 + $0x148] sm:$0xff]
    %v606 = vld [vmem:[%s7 + $0x150] sm:$0xff]
    %v607 = vld [vmem:[%s7 + $0x158] sm:$0xff]
    %v608 = vld [vmem:[%s7 + $0x160] sm:$0xff]
    %v609 = vld [vmem:[%s7 + $0x168] sm:$0xff]
    %v610 = vld [vmem:[%s7 + $0x170] sm:$0xff]
    %v611 = vld [vmem:[%s7 + $0x178] sm:$0xff]
    %v612 = vld [vmem:[%s7 + $0x180] sm:$0xff]
    %v613 = vld [vmem:[%s7 + $0x188] sm:$0xff]
    %v614 = vld [vmem:[%s7 + $0x190] sm:$0xff]
    %v615 = vld [vmem:[%s7 + $0x198] sm:$0xff]
    %v616 = vld [vmem:[%s7 + $0x1a0] sm:$0xff]
    %v617 = vld [vmem:[%s7 + $0x1a8] sm:$0xff]
    %v618 = vld [vmem:[%s7 + $0x1b0] sm:$0xff]
    %v619 = vld [vmem:[%s7 + $0x1b8] sm:$0xff]
    %v620 = vld [vmem:[%s7 + $0x1c0] sm:$0xff]
    %v621 = vld [vmem:[%s7 + $0x1c8] sm:$0xff]
    %v622 = vld [vmem:[%s7 + $0x1d0] sm:$0xff]
    %v623 = vld [vmem:[%s7 + $0x1d8] sm:$0xff]
    %v624 = vld [vmem:[%s7 + $0x1e0] sm:$0xff]
    %v625 = vld [vmem:[%s7 + $0x1e8] sm:$0xff]
    %v626 = vld [vmem:[%s7 + $0x1f0] sm:$0xff]
    %v627 = vld [vmem:[%s7 + $0x1f8] sm:$0xff]
    %v628 = vld [vmem:[%s8] sm:$0x3]
    %v630 = vperm.slane %v628, 0
    %v631 = vperm.slane %v628, 1
    %v698 = vunpack.c.l.b16 %v564
    %v699 = vunpack.c.h.b16 %v564
    %v700 = vunpack.c.l.b16 %v565
    %v701 = vunpack.c.h.b16 %v565
    %v702 = vunpack.c.l.b16 %v566
    %v703 = vunpack.c.h.b16 %v566
    %v704 = vunpack.c.l.b16 %v567
    %v705 = vunpack.c.h.b16 %v567
    %v706 = vunpack.c.l.b16 %v568
    %v707 = vunpack.c.h.b16 %v568
    %v708 = vunpack.c.l.b16 %v569
    %v709 = vunpack.c.h.b16 %v569
    %v710 = vunpack.c.l.b16 %v570
    %v711 = vunpack.c.h.b16 %v570
    %v712 = vunpack.c.l.b16 %v571
    %v713 = vunpack.c.h.b16 %v571
    %v714 = vunpack.c.l.b16 %v572
    %v715 = vunpack.c.h.b16 %v572
    %v716 = vunpack.c.l.b16 %v573
    %v717 = vunpack.c.h.b16 %v573
    %v718 = vunpack.c.l.b16 %v574
    %v719 = vunpack.c.h.b16 %v574
    %v720 = vunpack.c.l.b16 %v575
    %v721 = vunpack.c.h.b16 %v575
    %v722 = vunpack.c.l.b16 %v576
    %v723 = vunpack.c.h.b16 %v576
    %v724 = vunpack.c.l.b16 %v577
    %v725 = vunpack.c.h.b16 %v577
    %v726 = vunpack.c.l.b16 %v578
    %v727 = vunpack.c.h.b16 %v578
    %v728 = vunpack.c.l.b16 %v579
    %v729 = vunpack.c.h.b16 %v579
    %v730 = vunpack.c.l.b16 %v580
    %v731 = vunpack.c.h.b16 %v580
    %v732 = vunpack.c.l.b16 %v581
    %v733 = vunpack.c.h.b16 %v581
    %v734 = vunpack.c.l.b16 %v582
    %v735 = vunpack.c.h.b16 %v582
    %v736 = vunpack.c.l.b16 %v583
    %v737 = vunpack.c.h.b16 %v583
    %v738 = vunpack.c.l.b16 %v584
    %v739 = vunpack.c.h.b16 %v584
    %v740 = vunpack.c.l.b16 %v585
    %v741 = vunpack.c.h.b16 %v585
    %v742 = vunpack.c.l.b16 %v586
    %v743 = vunpack.c.h.b16 %v586
    %v744 = vunpack.c.l.b16 %v587
    %v745 = vunpack.c.h.b16 %v587
    %v746 = vunpack.c.l.b16 %v588
    %v747 = vunpack.c.h.b16 %v588
    %v748 = vunpack.c.l.b16 %v589
    %v749 = vunpack.c.h.b16 %v589
    %v750 = vunpack.c.l.b16 %v590
    %v751 = vunpack.c.h.b16 %v590
    %v752 = vunpack.c.l.b16 %v591
    %v753 = vunpack.c.h.b16 %v591
    %v754 = vunpack.c.l.b16 %v592
    %v755 = vunpack.c.h.b16 %v592
    %v756 = vunpack.c.l.b16 %v593
    %v757 = vunpack.c.h.b16 %v593
    %v758 = vunpack.c.l.b16 %v594
    %v759 = vunpack.c.h.b16 %v594
    %v760 = vunpack.c.l.b16 %v595
    %v761 = vunpack.c.h.b16 %v595
    %v762 = vunpack.c.l.b16 %v596
    %v763 = vunpack.c.h.b16 %v596
    %v764 = vunpack.c.l.b16 %v597
    %v765 = vunpack.c.h.b16 %v597
    %v766 = vunpack.c.l.b16 %v598
    %v767 = vunpack.c.h.b16 %v598
    %v768 = vunpack.c.l.b16 %v599
    %v769 = vunpack.c.h.b16 %v599
    %v770 = vunpack.c.l.b16 %v600
    %v771 = vunpack.c.h.b16 %v600
    %v772 = vunpack.c.l.b16 %v601
    %v773 = vunpack.c.h.b16 %v601
    %v774 = vunpack.c.l.b16 %v602
    %v775 = vunpack.c.h.b16 %v602
    %v776 = vunpack.c.l.b16 %v603
    %v777 = vunpack.c.h.b16 %v603
    %v778 = vunpack.c.l.b16 %v604
    %v779 = vunpack.c.h.b16 %v604
    %v780 = vunpack.c.l.b16 %v605
    %v781 = vunpack.c.h.b16 %v605
    %v782 = vunpack.c.l.b16 %v606
    %v783 = vunpack.c.h.b16 %v606
    %v784 = vunpack.c.l.b16 %v607
    %v785 = vunpack.c.h.b16 %v607
    %v786 = vunpack.c.l.b16 %v608
    %v787 = vunpack.c.h.b16 %v608
    %v788 = vunpack.c.l.b16 %v609
    %v789 = vunpack.c.h.b16 %v609
    %v790 = vunpack.c.l.b16 %v610
    %v791 = vunpack.c.h.b16 %v610
    %v792 = vunpack.c.l.b16 %v611
    %v793 = vunpack.c.h.b16 %v611
    %v794 = vunpack.c.l.b16 %v612
    %v795 = vunpack.c.h.b16 %v612
    %v796 = vunpack.c.l.b16 %v613
    %v797 = vunpack.c.h.b16 %v613
    %v798 = vunpack.c.l.b16 %v614
    %v799 = vunpack.c.h.b16 %v614
    %v800 = vunpack.c.l.b16 %v615
    %v801 = vunpack.c.h.b16 %v615
    %v802 = vunpack.c.l.b16 %v616
    %v803 = vunpack.c.h.b16 %v616
    %v804 = vunpack.c.l.b16 %v617
    %v805 = vunpack.c.h.b16 %v617
    %v806 = vunpack.c.l.b16 %v618
    %v807 = vunpack.c.h.b16 %v618
    %v808 = vunpack.c.l.b16 %v619
    %v809 = vunpack.c.h.b16 %v619
    %v810 = vunpack.c.l.b16 %v620
    %v811 = vunpack.c.h.b16 %v620
    %v812 = vunpack.c.l.b16 %v621
    %v813 = vunpack.c.h.b16 %v621
    %v814 = vunpack.c.l.b16 %v622
    %v815 = vunpack.c.h.b16 %v622
    %v816 = vunpack.c.l.b16 %v623
    %v817 = vunpack.c.h.b16 %v623
    %v818 = vunpack.c.l.b16 %v624
    %v819 = vunpack.c.h.b16 %v624
    %v820 = vunpack.c.l.b16 %v625
    %v821 = vunpack.c.h.b16 %v625
    %v822 = vunpack.c.l.b16 %v626
    %v823 = vunpack.c.h.b16 %v626
    %v824 = vunpack.c.l.b16 %v627
    %v825 = vunpack.c.h.b16 %v627
    %v826 = vpack.c.b16 %v700, %v698
    %v827 = vpack.c.b16 %v701, %v699
    %v828 = vpack.c.b16 %v704, %v702
    %v829 = vpack.c.b16 %v705, %v703
    %v830 = vpack.c.b16 %v708, %v706
    %v831 = vpack.c.b16 %v709, %v707
    %v832 = vpack.c.b16 %v712, %v710
    %v833 = vpack.c.b16 %v713, %v711
    %v834 = vpack.c.b16 %v716, %v714
    %v835 = vpack.c.b16 %v717, %v715
    %v836 = vpack.c.b16 %v720, %v718
    %v837 = vpack.c.b16 %v721, %v719
    %v838 = vpack.c.b16 %v724, %v722
    %v839 = vpack.c.b16 %v725, %v723
    %v840 = vpack.c.b16 %v728, %v726
    %v841 = vpack.c.b16 %v729, %v727
    %v842 = vpack.c.b16 %v732, %v730
    %v843 = vpack.c.b16 %v733, %v731
    %v844 = vpack.c.b16 %v736, %v734
    %v845 = vpack.c.b16 %v737, %v735
    %v846 = vpack.c.b16 %v740, %v738
    %v847 = vpack.c.b16 %v741, %v739
    %v848 = vpack.c.b16 %v744, %v742
    %v849 = vpack.c.b16 %v745, %v743
    %v850 = vpack.c.b16 %v748, %v746
    %v851 = vpack.c.b16 %v749, %v747
    %v852 = vpack.c.b16 %v752, %v750
    %v853 = vpack.c.b16 %v753, %v751
    %v854 = vpack.c.b16 %v756, %v754
    %v855 = vpack.c.b16 %v757, %v755
    %v856 = vpack.c.b16 %v760, %v758
    %v857 = vpack.c.b16 %v761, %v759
    %v858 = vpack.c.b16 %v764, %v762
    %v859 = vpack.c.b16 %v765, %v763
    %v860 = vpack.c.b16 %v768, %v766
    %v861 = vpack.c.b16 %v769, %v767
    %v862 = vpack.c.b16 %v772, %v770
    %v863 = vpack.c.b16 %v773, %v771
    %v864 = vpack.c.b16 %v776, %v774
    %v865 = vpack.c.b16 %v777, %v775
    %v866 = vpack.c.b16 %v780, %v778
    %v867 = vpack.c.b16 %v781, %v779
    %v868 = vpack.c.b16 %v784, %v782
    %v869 = vpack.c.b16 %v785, %v783
    %v870 = vpack.c.b16 %v788, %v786
    %v871 = vpack.c.b16 %v789, %v787
    %v872 = vpack.c.b16 %v792, %v790
    %v873 = vpack.c.b16 %v793, %v791
    %v874 = vpack.c.b16 %v796, %v794
    %v875 = vpack.c.b16 %v797, %v795
    %v876 = vpack.c.b16 %v800, %v798
    %v877 = vpack.c.b16 %v801, %v799
    %v878 = vpack.c.b16 %v804, %v802
    %v879 = vpack.c.b16 %v805, %v803
    %v880 = vpack.c.b16 %v808, %v806
    %v881 = vpack.c.b16 %v809, %v807
    %v882 = vpack.c.b16 %v812, %v810
    %v883 = vpack.c.b16 %v813, %v811
    %v884 = vpack.c.b16 %v816, %v814
    %v885 = vpack.c.b16 %v817, %v815
    %v886 = vpack.c.b16 %v820, %v818
    %v887 = vpack.c.b16 %v821, %v819
    %v888 = vpack.c.b16 %v824, %v822
    %v889 = vpack.c.b16 %v825, %v823
    %954 = vmatpush.bf16.msra.mxu0 %v840
    %955 = vmatpush.bf16.msra.mxu0 %v838
    %956 = vmatpush.bf16.msra.mxu0 %v836
    %957 = vmatpush.bf16.msra.mxu0 %v834
    %958 = vmatpush.bf16.msra.mxu0 %v832
    %959 = vmatpush.bf16.msra.mxu0 %v830
    %960 = vmatpush.bf16.msra.mxu0 %v828
    %961 = vmatpush.bf16.msra.mxu0 %v826
    %962 = vmatmul.bf16.gmra.mxu0 %v560
    %v963 = vpop.f32.mrf.mxu0
    %v964 = vadd.f32 %v630, %v963
    %v965 = vpop.f32.mrf.mxu0
    %966 = vdwg.mxu0
    %967 = vmatpush.bf16.msra.mxu0 %v856
    %968 = vmatpush.bf16.msra.mxu0 %v854
    %969 = vmatpush.bf16.msra.mxu0 %v852
    %970 = vmatpush.bf16.msra.mxu0 %v850
    %971 = vmatpush.bf16.msra.mxu0 %v848
    %972 = vmatpush.bf16.msra.mxu0 %v846
    %973 = vmatpush.bf16.msra.mxu0 %v844
    %974 = vmatpush.bf16.msra.mxu0 %v842
    %975 = vmatmul.bf16.gmra.mxu0 %v561
    %v976 = vpop.f32.mrf.mxu0
    %v977 = vadd.f32 %v964, %v976
    %v978 = vpop.f32.mrf.mxu0
    %979 = vdwg.mxu0
    %980 = vmatpush.bf16.msra.mxu0 %v872
    %981 = vmatpush.bf16.msra.mxu0 %v870
    %982 = vmatpush.bf16.msra.mxu0 %v868
    %983 = vmatpush.bf16.msra.mxu0 %v866
    %984 = vmatpush.bf16.msra.mxu0 %v864
    %985 = vmatpush.bf16.msra.mxu0 %v862
    %986 = vmatpush.bf16.msra.mxu0 %v860
    %987 = vmatpush.bf16.msra.mxu0 %v858
    %988 = vmatmul.bf16.gmra.mxu0 %v562
    %v989 = vpop.f32.mrf.mxu0
    %v990 = vadd.f32 %v977, %v989
    %v991 = vpop.f32.mrf.mxu0
    %992 = vdwg.mxu0
    %993 = vmatpush.bf16.msra.mxu0 %v888
    %994 = vmatpush.bf16.msra.mxu0 %v886
    %995 = vmatpush.bf16.msra.mxu0 %v884
    %996 = vmatpush.bf16.msra.mxu0 %v882
    %997 = vmatpush.bf16.msra.mxu0 %v880
    %998 = vmatpush.bf16.msra.mxu0 %v878
    %999 = vmatpush.bf16.msra.mxu0 %v876
    %1000 = vmatpush.bf16.msra.mxu0 %v874
    %1001 = vmatmul.bf16.gmra.mxu0 %v563
    %v1002 = vpop.f32.mrf.mxu0
    %v1003 = vadd.f32 %v990, %v1002
    %v1004 = vpop.f32.mrf.mxu0
    %1005 = vdwg.mxu0
    %1006 = vmatpush.bf16.msra.mxu0 %v841
    %1007 = vmatpush.bf16.msra.mxu0 %v839
    %1008 = vmatpush.bf16.msra.mxu0 %v837
    %1009 = vmatpush.bf16.msra.mxu0 %v835
    %1010 = vmatpush.bf16.msra.mxu0 %v833
    %1011 = vmatpush.bf16.msra.mxu0 %v831
    %1012 = vmatpush.bf16.msra.mxu0 %v829
    %1013 = vmatpush.bf16.msra.mxu0 %v827
    %1014 = vmatmul.bf16.gmra.mxu0 %v560
    %v1015 = vpop.f32.mrf.mxu0
    %v1016 = vadd.f32 %v631, %v1015
    %v1017 = vpop.f32.mrf.mxu0
    %1018 = vdwg.mxu0
    %1019 = vmatpush.bf16.msra.mxu0 %v857
    %1020 = vmatpush.bf16.msra.mxu0 %v855
    %1021 = vmatpush.bf16.msra.mxu0 %v853
    %1022 = vmatpush.bf16.msra.mxu0 %v851
    %1023 = vmatpush.bf16.msra.mxu0 %v849
    %1024 = vmatpush.bf16.msra.mxu0 %v847
    %1025 = vmatpush.bf16.msra.mxu0 %v845
    %1026 = vmatpush.bf16.msra.mxu0 %v843
    %1027 = vmatmul.bf16.gmra.mxu0 %v561
    %v1028 = vpop.f32.mrf.mxu0
    %v1029 = vadd.f32 %v1016, %v1028
    %v1030 = vpop.f32.mrf.mxu0
    %1031 = vdwg.mxu0
    %1032 = vmatpush.bf16.msra.mxu0 %v873
    %1033 = vmatpush.bf16.msra.mxu0 %v871
    %1034 = vmatpush.bf16.msra.mxu0 %v869
    %1035 = vmatpush.bf16.msra.mxu0 %v867
    %1036 = vmatpush.bf16.msra.mxu0 %v865
    %1037 = vmatpush.bf16.msra.mxu0 %v863
    %1038 = vmatpush.bf16.msra.mxu0 %v861
    %1039 = vmatpush.bf16.msra.mxu0 %v859
    %1040 = vmatmul.bf16.gmra.mxu0 %v562
    %v1041 = vpop.f32.mrf.mxu0
    %v1042 = vadd.f32 %v1029, %v1041
    %v1043 = vpop.f32.mrf.mxu0
    %1044 = vdwg.mxu0
    %1045 = vmatpush.bf16.msra.mxu0 %v889
    %1046 = vmatpush.bf16.msra.mxu0 %v887
    %1047 = vmatpush.bf16.msra.mxu0 %v885
    %1048 = vmatpush.bf16.msra.mxu0 %v883
    %1049 = vmatpush.bf16.msra.mxu0 %v881
    %1050 = vmatpush.bf16.msra.mxu0 %v879
    %1051 = vmatpush.bf16.msra.mxu0 %v877
    %1052 = vmatpush.bf16.msra.mxu0 %v875
    %1053 = vmatmul.bf16.gmra.mxu0 %v563
    %v1054 = vpop.f32.mrf.mxu0
    %v1055 = vadd.f32 %v1042, %v1054
    %v1056 = vpop.f32.mrf.mxu0
    %1057 = vdwg.mxu0
    %v1058 = vmul.f32 %v1003, 0.5
    %v1059 = vmul.f32 %v1055, 0.5
    %v1060 = vmul.f32 %v1003, 0.70710677
    %v1061 = vmul.f32 %v1055, 0.70710677
    %v1062 = vmul.f32 %v1060, %v1060
    %v1063 = vmin.f32 16.0, %v1062
    %v1064 = vmul.f32 %v1063, 2.1237322e-06
    %v1065 = vadd.f32 %v1064, 0.00028619796
    %v1066 = vmul.f32 %v1063, %v1065
    %v1067 = vadd.f32 %v1066, 0.0036580483
    %v1068 = vmul.f32 %v1063, %v1067
    %v1069 = vadd.f32 %v1068, 0.05243302
    %v1070 = vmul.f32 %v1063, %v1069
    %v1071 = vadd.f32 %v1070, 0.18741608
    %v1072 = vmul.f32 %v1063, %v1071
    %v1073 = vadd.f32 %v1072, 1.1283791
    %v1074 = vmul.f32 %v1060, %v1073
    %v1075 = vmul.f32 %v1063, 3.8918573e-05
    %v1076 = vadd.f32 %v1075, 0.001143296
    %v1077 = vmul.f32 %v1063, %v1076
    %v1078 = vadd.f32 %v1077, 0.014752088
    %v1079 = vmul.f32 %v1063, %v1078
    %v1080 = vadd.f32 %v1079, 0.112945676
    %v1081 = vmul.f32 %v1063, %v1080
    %v1082 = vadd.f32 %v1081, 0.4994258
    %v1083 = vmul.f32 %v1063, %v1082
    %v1084 = vadd.f32 %v1083, 1.0
    %v1085 = vrcp.pop %v1084
    %v1086 = vmul.f32 %v1084, %v1085
    %v1087 = vsub.f32 1.0, %v1086
    %v1088 = vmul.f32 %v1085, %v1087
    %v1089 = vadd.f32 %v1085, %v1088
    %vm1090 = vweird.f32 %v1084
    %vm1091 = vweird.f32 %v1085
    %vm1092 = vmor %vm1090, %vm1091
    %v1093 = vsel %vm1092, %v1085, %v1089
    %v1094 = vand.u32 2147483647, %v1084
    %vm1095 = vcmp.eq.f32.partialorder %v1094, 8.507059e+37
    %v1096 = vand.u32 %v1084, 2147483648
    %v1097 = vor.u32 1.1754944e-38, %v1096
    %v1098 = vsel %vm1095, %v1097, %v1093
    %v1099 = vmul.f32 %v1074, %v1098
    %v1100 = vmin.f32 %v1099, 1.0
    %v1101 = vmax.f32 %v1100, -1.0
    %v1102 = vmul.f32 %v1061, %v1061
    %v1103 = vmin.f32 16.0, %v1102
    %v1104 = vmul.f32 %v1103, 2.1237322e-06
    %v1105 = vadd.f32 %v1104, 0.00028619796
    %v1106 = vmul.f32 %v1103, %v1105
    %v1107 = vadd.f32 %v1106, 0.0036580483
    %v1108 = vmul.f32 %v1103, %v1107
    %v1109 = vadd.f32 %v1108, 0.05243302
    %v1110 = vmul.f32 %v1103, %v1109
    %v1111 = vadd.f32 %v1110, 0.18741608
    %v1112 = vmul.f32 %v1103, %v1111
    %v1113 = vadd.f32 %v1112, 1.1283791
    %v1114 = vmul.f32 %v1061, %v1113
    %v1115 = vmul.f32 %v1103, 3.8918573e-05
    %v1116 = vadd.f32 %v1115, 0.001143296
    %v1117 = vmul.f32 %v1103, %v1116
    %v1118 = vadd.f32 %v1117, 0.014752088
    %v1119 = vmul.f32 %v1103, %v1118
    %v1120 = vadd.f32 %v1119, 0.112945676
    %v1121 = vmul.f32 %v1103, %v1120
    %v1122 = vadd.f32 %v1121, 0.4994258
    %v1123 = vmul.f32 %v1103, %v1122
    %v1124 = vadd.f32 %v1123, 1.0
    %v1125 = vrcp.pop %v1124
    %v1126 = vmul.f32 %v1124, %v1125
    %v1127 = vsub.f32 1.0, %v1126
    %v1128 = vmul.f32 %v1125, %v1127
    %v1129 = vadd.f32 %v1125, %v1128
    %vm1130 = vweird.f32 %v1124
    %vm1131 = vweird.f32 %v1125
    %vm1132 = vmor %vm1130, %vm1131
    %v1133 = vsel %vm1132, %v1125, %v1129
    %v1134 = vand.u32 2147483647, %v1124
    %vm1135 = vcmp.eq.f32.partialorder %v1134, 8.507059e+37
    %v1136 = vand.u32 %v1124, 2147483648
    %v1137 = vor.u32 1.1754944e-38, %v1136
    %v1138 = vsel %vm1135, %v1137, %v1133
    %v1139 = vmul.f32 %v1114, %v1138
    %v1140 = vmin.f32 %v1139, 1.0
    %v1141 = vmax.f32 %v1140, -1.0
    %v1142 = vadd.f32 %v1101, 1.0
    %v1143 = vadd.f32 %v1141, 1.0
    %v1144 = vmul.f32 %v1058, %v1142
    %v1145 = vmul.f32 %v1059, %v1143
    %v1146 = vpack.c.bf16 %v1144, %v1144
    %v1147 = vpack.c.bf16 %v1145, %v1145
    %v1148 = vld [vmem:[#allocation3] sm:$0xf]
    %v1149 = vld [vmem:[#allocation3 + $0x4] sm:$0xf]
    %v1150 = vld [vmem:[#allocation3 + $0x8] sm:$0xf]
    %v1151 = vld [vmem:[#allocation3 + $0xc] sm:$0xf]
    %v1152 = vld [vmem:[#allocation3 + $0x10] sm:$0xf]
    %v1153 = vld [vmem:[#allocation3 + $0x14] sm:$0xf]
    %v1154 = vld [vmem:[#allocation3 + $0x18] sm:$0xf]
    %v1155 = vld [vmem:[#allocation3 + $0x1c] sm:$0xf]
    %v1156 = vld [vmem:[#allocation3 + $0x20] sm:$0xf]
    %v1157 = vld [vmem:[#allocation3 + $0x24] sm:$0xf]
    %v1158 = vld [vmem:[#allocation3 + $0x28] sm:$0xf]
    %v1159 = vld [vmem:[#allocation3 + $0x2c] sm:$0xf]
    %v1160 = vld [vmem:[#allocation3 + $0x30] sm:$0xf]
    %v1161 = vld [vmem:[#allocation3 + $0x34] sm:$0xf]
    %v1162 = vld [vmem:[#allocation3 + $0x38] sm:$0xf]
    %v1163 = vld [vmem:[#allocation3 + $0x3c] sm:$0xf]
    %v1164 = vld [vmem:[#allocation3 + $0x40] sm:$0xf]
    %v1165 = vld [vmem:[#allocation3 + $0x44] sm:$0xf]
    %v1166 = vld [vmem:[#allocation3 + $0x48] sm:$0xf]
    %v1167 = vld [vmem:[#allocation3 + $0x4c] sm:$0xf]
    %v1168 = vld [vmem:[#allocation3 + $0x50] sm:$0xf]
    %v1169 = vld [vmem:[#allocation3 + $0x54] sm:$0xf]
    %v1170 = vld [vmem:[#allocation3 + $0x58] sm:$0xf]
    %v1171 = vld [vmem:[#allocation3 + $0x5c] sm:$0xf]
    %v1172 = vld [vmem:[#allocation3 + $0x60] sm:$0xf]
    %v1173 = vld [vmem:[#allocation3 + $0x64] sm:$0xf]
    %v1174 = vld [vmem:[#allocation3 + $0x68] sm:$0xf]
    %v1175 = vld [vmem:[#allocation3 + $0x6c] sm:$0xf]
    %v1176 = vld [vmem:[#allocation3 + $0x70] sm:$0xf]
    %v1177 = vld [vmem:[#allocation3 + $0x74] sm:$0xf]
    %v1178 = vld [vmem:[#allocation3 + $0x78] sm:$0xf]
    %v1179 = vld [vmem:[#allocation3 + $0x7c] sm:$0xf]
    %v1180 = vld [vmem:[#allocation2] sm:$0x1]
    %v1182 = vperm.slane %v1180, 0
    %v1216 = vunpack.c.l.b16 %v1148
    %v1217 = vunpack.c.l.b16 %v1149
    %v1218 = vunpack.c.l.b16 %v1150
    %v1219 = vunpack.c.l.b16 %v1151
    %v1220 = vunpack.c.l.b16 %v1152
    %v1221 = vunpack.c.l.b16 %v1153
    %v1222 = vunpack.c.l.b16 %v1154
    %v1223 = vunpack.c.l.b16 %v1155
    %v1224 = vunpack.c.l.b16 %v1156
    %v1225 = vunpack.c.l.b16 %v1157
    %v1226 = vunpack.c.l.b16 %v1158
    %v1227 = vunpack.c.l.b16 %v1159
    %v1228 = vunpack.c.l.b16 %v1160
    %v1229 = vunpack.c.l.b16 %v1161
    %v1230 = vunpack.c.l.b16 %v1162
    %v1231 = vunpack.c.l.b16 %v1163
    %v1232 = vunpack.c.l.b16 %v1164
    %v1233 = vunpack.c.l.b16 %v1165
    %v1234 = vunpack.c.l.b16 %v1166
    %v1235 = vunpack.c.l.b16 %v1167
    %v1236 = vunpack.c.l.b16 %v1168
    %v1237 = vunpack.c.l.b16 %v1169
    %v1238 = vunpack.c.l.b16 %v1170
    %v1239 = vunpack.c.l.b16 %v1171
    %v1240 = vunpack.c.l.b16 %v1172
    %v1241 = vunpack.c.l.b16 %v1173
    %v1242 = vunpack.c.l.b16 %v1174
    %v1243 = vunpack.c.l.b16 %v1175
    %v1244 = vunpack.c.l.b16 %v1176
    %v1245 = vunpack.c.l.b16 %v1177
    %v1246 = vunpack.c.l.b16 %v1178
    %v1247 = vunpack.c.l.b16 %v1179
    %v1248 = vpack.c.b16 %v1217, %v1216
    %v1249 = vpack.c.b16 %v1219, %v1218
    %v1250 = vpack.c.b16 %v1221, %v1220
    %v1251 = vpack.c.b16 %v1223, %v1222
    %v1252 = vpack.c.b16 %v1225, %v1224
    %v1253 = vpack.c.b16 %v1227, %v1226
    %v1254 = vpack.c.b16 %v1229, %v1228
    %v1255 = vpack.c.b16 %v1231, %v1230
    %v1256 = vpack.c.b16 %v1233, %v1232
    %v1257 = vpack.c.b16 %v1235, %v1234
    %v1258 = vpack.c.b16 %v1237, %v1236
    %v1259 = vpack.c.b16 %v1239, %v1238
    %v1260 = vpack.c.b16 %v1241, %v1240
    %v1261 = vpack.c.b16 %v1243, %v1242
    %v1262 = vpack.c.b16 %v1245, %v1244
    %v1263 = vpack.c.b16 %v1247, %v1246
    %1280 = vmatpush.bf16.msra.mxu0 %v1255
    %1281 = vmatpush.bf16.msra.mxu0 %v1254
    %1282 = vmatpush.bf16.msra.mxu0 %v1253
    %1283 = vmatpush.bf16.msra.mxu0 %v1252
    %1284 = vmatpush.bf16.msra.mxu0 %v1251
    %1285 = vmatpush.bf16.msra.mxu0 %v1250
    %1286 = vmatpush.bf16.msra.mxu0 %v1249
    %1287 = vmatpush.bf16.msra.mxu0 %v1248
    %1288 = vmatmul.bf16.gmra.mxu0 %v1146
    %v1289 = vpop.f32.mrf.mxu0
    %v1290 = vadd.f32 %v1182, %v1289
    %v1291 = vpop.f32.mrf.mxu0
    %1292 = vdwg.mxu0
    %1293 = vmatpush.bf16.msra.mxu0 %v1263
    %1294 = vmatpush.bf16.msra.mxu0 %v1262
    %1295 = vmatpush.bf16.msra.mxu0 %v1261
    %1296 = vmatpush.bf16.msra.mxu0 %v1260
    %1297 = vmatpush.bf16.msra.mxu0 %v1259
    %1298 = vmatpush.bf16.msra.mxu0 %v1258
    %1299 = vmatpush.bf16.msra.mxu0 %v1257
    %1300 = vmatpush.bf16.msra.mxu0 %v1256
    %1301 = vmatmul.bf16.gmra.mxu0 %v1147
    %v1302 = vpop.f32.mrf.mxu0
    %v1303 = vadd.f32 %v1290, %v1302
    %v1304 = vpop.f32.mrf.mxu0
    %1305 = vdwg.mxu0
    %vm1306 = vcmask 1024
    %1307 = vst.msk [vmem:[%s11] sm:$0x3] %vm1306, %v1303
    // Predicated region
    $region50: #{_lambda_.15} parent=1 // pred_check
      _
    $region51: #{_lambda_.15} parent=1 // pred_check_branch
      %1309 = sbr.rel (0) target = $region53
    $region52: #{_lambda_.15} parent=1 // pred_region
      _
    $region53: #{_lambda_.15} parent=1 // pred_fallthru
      _
    // Predicated region
    $region54: #{_lambda_.15} parent=1 // pred_check
      _
    $region55: #{_lambda_.15} parent=1 // pred_check_branch
      %1311 = sbr.rel (0) target = $region57
    $region56: #{_lambda_.15} parent=1 // pred_region
      _
    $region57: #{_lambda_.15} parent=1 // pred_fallthru
      _
    %1312 = vsyncpa [#allocation4], 1

</llo_original>
